<compile_context>
chip_gen: v7x
topology: tpu7x:2x2x1
jax: 0.10.0
libtpu: 0.0.40
codegen_flags: <defaults>
</compile_context>

<pallas_src>
import functools
import math

import jax
import jax.numpy as jnp
from jax.experimental import pallas as pl
from jax.experimental.pallas import tpu as pltpu


def _round_up(x, m):
    return ((x + m - 1) // m) * m


# ---------------------------------------------------------------------------
# Fused kernel: all LSTM layers + FC head, one batch block per grid step
# ---------------------------------------------------------------------------
def fused_lstm_fc_kernel(num_layers, seq_len, b_blk, h_pad, mm_dtype, *refs):
    """Ref layout (inputs..., output, scratch...):

      refs[0]            : x        (T*Bb, D_pad)  time-major rows of this
                                                   batch block (row = t*Bb + b)
      refs[1+3l : 4+3l]  : wih_t (Din_pad, 4*Hp), whh_t (Hp, 4*Hp), b (1, 4*Hp)
      refs[1+3L]         : wfc_t    (T*Hp, C_pad)  (= padded W_fc.T)
      refs[2+3L]         : bfc      (1, C_pad)
      refs[3+3L]         : out      (Bb, C_pad)
      refs[4+3L]         : xw_scr   (T*Bb, 4*Hp)   hoisted-projection scratch
      refs[5+3L]         : hseq_scr (T*Bb, Hp)     per-layer output sequence
    """
    T, Bb, Hp = seq_len, b_blk, h_pad
    L = num_layers

    x_ref = refs[0]
    layer_refs = [refs[1 + 3 * l: 4 + 3 * l] for l in range(L)]
    wfc_ref = refs[1 + 3 * L]
    bfc_ref = refs[2 + 3 * L]
    out_ref = refs[3 + 3 * L]
    xw_scr = refs[4 + 3 * L]
    hseq_scr = refs[5 + 3 * L]

    def mm(a, b):
        # MXU matmul; operands optionally bf16 (v6e/v7x), accumulate in f32.
        return jnp.dot(a.astype(mm_dtype), b.astype(mm_dtype),
                       preferred_element_type=jnp.float32)

    for l in range(L):
        wih_ref, whh_ref, b_ref = layer_refs[l]

        # ---- Hoisted input projection: the whole sequence in ONE MXU matmul,
        #      bias folded in.  The read of hseq_scr (previous layer) happens
        #      before this layer's recurrence overwrites it (program order).
        x_all = x_ref[...] if l == 0 else hseq_scr[...]
        xw_scr[...] = mm(x_all, wih_ref[...]) + b_ref[...]

        whh = whh_ref[...].astype(mm_dtype)          # load + cast once / layer
        # TODO(synk): for huge H / streamed weights, prefetch layer l+1's
        # W_ih/W_hh via pltpu.make_async_copy during this layer's recurrence.

        # ---- Serial recurrence: only h @ W_hh + elementwise per step.
        #      fori_loop bounds vreg live ranges; unroll keeps LLO visibility.
        def step(t, carry):
            h, c = carry
            row = pl.multiple_of(t * Bb, Bb)         # sublane-aligned start
            gates = xw_scr[pl.ds(row, Bb), :] + mm(h, whh)   # (Bb, 4*Hp)
            # Hp is a multiple of 128 -> every gate slice is whole lane groups
            # (no sub-vreg lane extracts on the XLU in the serial loop).
            i_g = jax.nn.sigmoid(gates[:, 0 * Hp:1 * Hp])
            f_g = jax.nn.sigmoid(gates[:, 1 * Hp:2 * Hp])
            g_g = jnp.tanh(gates[:, 2 * Hp:3 * Hp])
            o_g = jax.nn.sigmoid(gates[:, 3 * Hp:4 * Hp])
            c = f_g * c + i_g * g_g
            h = o_g * jnp.tanh(c)
            hseq_scr[pl.ds(row, Bb), :] = h          # feed next layer / FC
            return h, c

        h0 = jnp.zeros((Bb, Hp), jnp.float32)
        c0 = jnp.zeros((Bb, Hp), jnp.float32)
        unroll = True if T <= 16 else 8
        jax.lax.fori_loop(0, T, step, (h0, c0), unroll=unroll)

    # ---- FC head, OUTSIDE the serial recurrence, lane-dense C_pad output:
    #      out[b,:] = sum_t h_t[b,:] @ W_fc.T[t*Hp:(t+1)*Hp, :] + b_fc
    wfc = wfc_ref[...].astype(mm_dtype)
    acc = jnp.zeros((Bb, out_ref.shape[1]), jnp.float32)
    for t in range(T):
        acc = acc + mm(hseq_scr[t * Bb:(t + 1) * Bb, :],
                       wfc[t * Hp:(t + 1) * Hp, :])
    out_ref[...] = acc + bfc_ref[...]


# ---------------------------------------------------------------------------
# Wrapper: padding / layout plumbing + pallas_call
# ---------------------------------------------------------------------------
@functools.partial(jax.jit, static_argnames=("num_layers", "matmul_dtype"))
def rnn_lstm_forward(x_btd, params, num_layers, matmul_dtype="float32"):
    """x_btd: (B, T, D) batch-first.  params in raw PyTorch layout."""
    B, T, D = x_btd.shape
    lstm_params = params["lstm"]
    w_fc, b_fc = params["fc"]
    H = lstm_params[0][1].shape[1]        # w_hh: (4H, H)
    C = w_fc.shape[0]
    f32 = jnp.float32
    mm_dtype = jnp.dtype(matmul_dtype)

    # ---- hardware-friendly padded sizes ------------------------------------
    H_pad = _round_up(H, 128)             # gate blocks lane-group aligned
    D_pad = _round_up(D, 128)
    C_pad = _round_up(C, 128)             # lane-dense FC output (unmasked vst)
    B_sub = _round_up(B, 8)               # f32 sublane tile
    B_blk = min(128, B_sub)               # batch rows per grid step / core
    n_blk = -(-B_sub // B_blk)
    B_pad = n_blk * B_blk

    # ---- pad & transpose parameters.  Padded hidden units get zero weights
    #      and zero bias, so their state stays exactly 0 and never leaks into
    #      real outputs (their wfc rows are zero too). ------------------------
    def pad_gate_blocks(a):
        # a: (4H, ...) with gate blocks [i, f, g, o] -> (4*H_pad, ...)
        tail = a.shape[1:]
        a = a.reshape((4, H) + tail)
        pad = [(0, 0), (0, H_pad - H)] + [(0, 0)] * len(tail)
        return jnp.pad(a, pad).reshape((4 * H_pad,) + tail)

    layer_args = []
    for l in range(num_layers):
        w_ih, w_hh, b_ih, b_hh = lstm_params[l]
        d_in = w_ih.shape[1]
        d_in_pad = D_pad if l == 0 else H_pad
        wih = pad_gate_blocks(w_ih.astype(f32))
        wih = jnp.pad(wih, ((0, 0), (0, d_in_pad - d_in)))     # (4Hp, d_in_pad)
        whh = pad_gate_blocks(w_hh.astype(f32))
        whh = jnp.pad(whh, ((0, 0), (0, H_pad - H)))           # (4Hp, Hp)
        bias = pad_gate_blocks((b_ih + b_hh).astype(f32)).reshape(1, 4 * H_pad)
        layer_args.append((wih.T, whh.T, bias))

    wfc = w_fc.astype(f32).reshape(C, T, H)
    wfc = jnp.pad(wfc, ((0, C_pad - C), (0, 0), (0, H_pad - H)))
    wfc_t = jnp.transpose(wfc, (1, 2, 0)).reshape(T * H_pad, C_pad)
    bfc = jnp.pad(b_fc.astype(f32), (0, C_pad - C)).reshape(1, C_pad)

    # ---- input: batch-padded, batch-block-major, time-major inside a block.
    # TODO(synk): when gridding over time for very long sequences, fold this
    # transpose into the layer-0 BlockSpec index_map instead of an XLA shuffle.
    x_tbd = jnp.transpose(x_btd.astype(f32), (1, 0, 2))        # (T, B, D)
    x_tbd = jnp.pad(x_tbd, ((0, 0), (0, B_pad - B), (0, D_pad - D)))
    x_blk = x_tbd.reshape(T, n_blk, B_blk, D_pad).transpose(1, 0, 2, 3)
    x_blk = x_blk.reshape(n_blk, T * B_blk, D_pad)

    args = [x_blk]
    in_specs = [pl.BlockSpec((None, T * B_blk, D_pad), lambda i: (i, 0, 0))]
    for wih_t, whh_t, bias in layer_args:
        args += [wih_t, whh_t, bias]
        in_specs += [pl.BlockSpec(wih_t.shape, lambda i: (0, 0)),
                     pl.BlockSpec(whh_t.shape, lambda i: (0, 0)),
                     pl.BlockSpec(bias.shape, lambda i: (0, 0))]
    args += [wfc_t, bfc]
    in_specs += [pl.BlockSpec(wfc_t.shape, lambda i: (0, 0)),
                 pl.BlockSpec(bfc.shape, lambda i: (0, 0))]

    out_spec = pl.BlockSpec((B_blk, C_pad), lambda i: (i, 0))

    scratch_shapes = [
        pltpu.VMEM((T * B_blk, 4 * H_pad), jnp.float32),   # hoisted projection
        pltpu.VMEM((T * B_blk, H_pad), jnp.float32),       # inter-layer h sequence
    ]
    # TODO(synk): for very long T / large H on v7x (64 MiB VMEM), chunk the
    # hoisted projection over time with pltpu.emit_pipeline + double-buffered
    # chunk scratch instead of whole-sequence scratch buffers.

    # ---- explicit scoped-VMEM budget (defaults 16/32 MiB << physical) -------
    def nbytes(shape):
        return int(math.prod(shape)) * 4
    weight_bytes = sum(nbytes(a.shape) for a in args[1:])
    block_bytes = nbytes((T * B_blk, D_pad)) + nbytes((B_blk, C_pad))
    scratch_bytes = nbytes((T * B_blk, 4 * H_pad)) + nbytes((T * B_blk, H_pad))
    vmem_limit = int(min(48 * 2**20,
                         max(16 * 2**20,
                             2 * block_bytes + weight_bytes + scratch_bytes
                             + (1 << 20))))

    kernel = functools.partial(
        fused_lstm_fc_kernel, num_layers, T, B_blk, H_pad, mm_dtype)

    out_pad = pl.pallas_call(
        kernel,
        out_shape=jax.ShapeDtypeStruct((B_pad, C_pad), jnp.float32),
        grid=(n_blk,),
        in_specs=in_specs,
        out_specs=out_spec,
        scratch_shapes=scratch_shapes,
        compiler_params=pltpu.CompilerParams(
            # batch blocks are independent -> shard across TensorCores on v7x
            dimension_semantics=("parallel",),
            vmem_limit_bytes=vmem_limit,
        ),
    )(*args)

    return out_pad[:B, :C]


# ---------------------------------------------------------------------------
# Deterministic parameter init (PyTorch-style uniform(-1/sqrt(H), 1/sqrt(H)))
# Raw PyTorch layout: w_ih (4H, D_in), w_hh (4H, H), biases (4H,), fc (C, T*H)
# ---------------------------------------------------------------------------
def init_params(key, input_size, hidden_size, num_layers, seq_len, num_classes):
    params = {"lstm": [], "fc": None}
    bound = 1.0 / math.sqrt(hidden_size)
    for layer in range(num_layers):
        d_in = input_size if layer == 0 else hidden_size
        key, k1, k2, k3, k4 = jax.random.split(key, 5)
        w_ih = jax.random.uniform(k1, (4 * hidden_size, d_in), jnp.float32, -bound, bound)
        w_hh = jax.random.uniform(k2, (4 * hidden_size, hidden_size), jnp.float32, -bound, bound)
        b_ih = jax.random.uniform(k3, (4 * hidden_size,), jnp.float32, -bound, bound)
        b_hh = jax.random.uniform(k4, (4 * hidden_size,), jnp.float32, -bound, bound)
        params["lstm"].append((w_ih, w_hh, b_ih, b_hh))
    fc_in = hidden_size * seq_len
    fc_bound = 1.0 / math.sqrt(fc_in)
    key, k1, k2 = jax.random.split(key, 3)
    w_fc = jax.random.uniform(k1, (num_classes, fc_in), jnp.float32, -fc_bound, fc_bound)
    b_fc = jax.random.uniform(k2, (num_classes,), jnp.float32, -fc_bound, fc_bound)
    params["fc"] = (w_fc, b_fc)
    return params


# ---------------------------------------------------------------------------
# Pure-JAX reference (same math, optionally same matmul operand precision)
# ---------------------------------------------------------------------------
def reference_forward(x_btd, params, num_layers, matmul_dtype=jnp.float32):
    def mm(a, b):
        return jnp.dot(a.astype(matmul_dtype), b.astype(matmul_dtype),
                       preferred_element_type=jnp.float32)

    h_seq = jnp.transpose(x_btd.astype(jnp.float32), (1, 0, 2))   # (T, B, D)
    for layer in range(num_layers):
        w_ih, w_hh, b_ih, b_hh = params["lstm"][layer]
        H = w_hh.shape[1]
        B = h_seq.shape[1]
        b = (b_ih + b_hh)[None, :]
        h = jnp.zeros((B, H), jnp.float32)
        c = jnp.zeros((B, H), jnp.float32)
        outs = []
        for t in range(h_seq.shape[0]):
            gates = mm(h_seq[t], w_ih.T) + mm(h, w_hh.T) + b
            i_g = jax.nn.sigmoid(gates[:, 0 * H:1 * H])
            f_g = jax.nn.sigmoid(gates[:, 1 * H:2 * H])
            g_g = jnp.tanh(gates[:, 2 * H:3 * H])
            o_g = jax.nn.sigmoid(gates[:, 3 * H:4 * H])
            c = f_g * c + i_g * g_g
            h = o_g * jnp.tanh(c)
            outs.append(h)
        h_seq = jnp.stack(outs, axis=0)
    out_flat = jnp.transpose(h_seq, (1, 0, 2)).reshape(h_seq.shape[1], -1)
    w_fc, b_fc = params["fc"]
    return mm(out_flat, w_fc.T) + b_fc[None, :]


# ---------------------------------------------------------------------------
if __name__ == "__main__":
    batch = 2
    sequence_length = 8
    input_size = 16
    hidden_size = 32
    num_layers = 2
    num_classes = 10

    key = jax.random.PRNGKey(0)
    key, kx, kp = jax.random.split(key, 3)
    x = jax.random.normal(kx, (batch, sequence_length, input_size), jnp.float32)
    params = init_params(kp, input_size, hidden_size, num_layers,
                         sequence_length, num_classes)

    # f32-operand path: tight check against the pure-JAX reference.
    out = jax.block_until_ready(rnn_lstm_forward(x, params, num_layers))
    ref = reference_forward(x, params, num_layers)
    assert out.shape == (batch, num_classes), out.shape
    assert jnp.allclose(out, ref, atol=1e-4, rtol=1e-4), (
        float(jnp.max(jnp.abs(out - ref))))

    # bf16 MXU-operand path (recommended for v6e/v7x): f32 state/accumulation,
    # bf16 matmul operands; checked against a same-precision reference.
    out_bf16 = jax.block_until_ready(
        rnn_lstm_forward(x, params, num_layers, matmul_dtype="bfloat16"))
    ref_bf16 = reference_forward(x, params, num_layers,
                                 matmul_dtype=jnp.bfloat16)
    assert jnp.allclose(out_bf16, ref_bf16, atol=5e-3, rtol=5e-3), (
        float(jnp.max(jnp.abs(out_bf16 - ref_bf16))))

    print("KERNEL_OK")
</pallas_src>

<mosaic_0001>
module attributes {stable_mosaic.version = 11 : i64} {
  func.func @fused_lstm_fc_kernel(%arg0: i32, %arg1: memref<1x64x128xf32, #tpu.memory_space<vmem>>, %arg2: memref<128x512xf32, #tpu.memory_space<vmem>>, %arg3: memref<128x512xf32, #tpu.memory_space<vmem>>, %arg4: memref<1x512xf32, #tpu.memory_space<vmem>>, %arg5: memref<128x512xf32, #tpu.memory_space<vmem>>, %arg6: memref<128x512xf32, #tpu.memory_space<vmem>>, %arg7: memref<1x512xf32, #tpu.memory_space<vmem>>, %arg8: memref<1024x128xf32, #tpu.memory_space<vmem>>, %arg9: memref<1x128xf32, #tpu.memory_space<vmem>>, %arg10: memref<8x128xf32, #tpu.memory_space<vmem>>, %arg11: memref<64x512xf32, #tpu.memory_space<vmem>>, %arg12: memref<64x128xf32, #tpu.memory_space<vmem>>) attributes {dimension_semantics = [#tpu.dimension_semantics<parallel>], iteration_bounds = array<i64: 1>, scalar_prefetch = 0 : i64, scratch_operands = 2 : i64, tpu.core_type = #tpu.core_type<tc>, window_params = [{transform_indices = @transform_0, window_bounds = array<i64: 1, 64, 128>}, {pipeline_mode = #tpu.pipeline_mode<synchronous>, transform_indices = @transform_1, window_bounds = array<i64: 128, 512>}, {pipeline_mode = #tpu.pipeline_mode<synchronous>, transform_indices = @transform_2, window_bounds = array<i64: 128, 512>}, {pipeline_mode = #tpu.pipeline_mode<synchronous>, transform_indices = @transform_3, window_bounds = array<i64: 1, 512>}, {pipeline_mode = #tpu.pipeline_mode<synchronous>, transform_indices = @transform_4, window_bounds = array<i64: 128, 512>}, {pipeline_mode = #tpu.pipeline_mode<synchronous>, transform_indices = @transform_5, window_bounds = array<i64: 128, 512>}, {pipeline_mode = #tpu.pipeline_mode<synchronous>, transform_indices = @transform_6, window_bounds = array<i64: 1, 512>}, {pipeline_mode = #tpu.pipeline_mode<synchronous>, transform_indices = @transform_7, window_bounds = array<i64: 1024, 128>}, {pipeline_mode = #tpu.pipeline_mode<synchronous>, transform_indices = @transform_8, window_bounds = array<i64: 1, 128>}, {transform_indices = @transform_9, window_bounds = array<i64: 8, 128>}]} {
    %c0 = arith.constant 0 : index
    %c0_0 = arith.constant 0 : index
    %c0_1 = arith.constant 0 : index
    %0 = vector.load %arg1[%c0, %c0_0, %c0_1] : memref<1x64x128xf32, #tpu.memory_space<vmem>>, vector<1x64x128xf32>
    %1 = vector.shape_cast %0 : vector<1x64x128xf32> to vector<64x128xf32>
    %c0_2 = arith.constant 0 : index
    %c0_3 = arith.constant 0 : index
    %2 = vector.load %arg2[%c0_2, %c0_3] : memref<128x512xf32, #tpu.memory_space<vmem>>, vector<128x512xf32>
    %cst = arith.constant dense<0.000000e+00> : vector<64x512xf32>
    %3 = tpu.matmul %1, %2, %cst {dimension_numbers = #tpu.dot_dimension_numbers<[1], [0], [0], [1], [0, 0, 1, 1], [], []>} : vector<64x128xf32>, vector<128x512xf32>, vector<64x512xf32> -> vector<64x512xf32>
    %c0_4 = arith.constant 0 : index
    %c0_5 = arith.constant 0 : index
    %4 = vector.load %arg4[%c0_4, %c0_5] : memref<1x512xf32, #tpu.memory_space<vmem>>, vector<1x512xf32>
    %5 = vector.broadcast %4 : vector<1x512xf32> to vector<64x512xf32>
    %6 = arith.addf %3, %5 : vector<64x512xf32>
    %c0_6 = arith.constant 0 : index
    %c0_7 = arith.constant 0 : index
    %7 = vector.load %arg11[%c0_6, %c0_7] : memref<64x512xf32, #tpu.memory_space<vmem>>, vector<64x512xf32>
    tpu.vector_store %arg11[%c0_6, %c0_7], %6 {strides = array<i32>} : memref<64x512xf32, #tpu.memory_space<vmem>>, vector<64x512xf32>,
    %c0_8 = arith.constant 0 : index
    %c0_9 = arith.constant 0 : index
    %8 = vector.load %arg3[%c0_8, %c0_9] : memref<128x512xf32, #tpu.memory_space<vmem>>, vector<128x512xf32>
    %cst_10 = arith.constant 0.000000e+00 : f32
    %9 = vector.broadcast %cst_10 : f32 to vector<8x128xf32>
    %cst_11 = arith.constant 0.000000e+00 : f32
    %10 = vector.broadcast %cst_11 : f32 to vector<8x128xf32>
    %c0_i32 = arith.constant 0 : i32
    %c8_i32 = arith.constant 8 : i32
    %11 = arith.muli %c0_i32, %c8_i32 : i32
    %12 = tpu.assume_multiple %11, 8 : i32
    %13 = arith.index_cast %12 : i32 to index
    %c0_12 = arith.constant 0 : index
    %14 = vector.load %arg11[%13, %c0_12] : memref<64x512xf32, #tpu.memory_space<vmem>>, vector<8x512xf32>
    %cst_13 = arith.constant dense<0.000000e+00> : vector<8x512xf32>
    %15 = tpu.matmul %9, %8, %cst_13 {dimension_numbers = #tpu.dot_dimension_numbers<[1], [0], [0], [1], [0, 0, 1, 1], [], []>} : vector<8x128xf32>, vector<128x512xf32>, vector<8x512xf32> -> vector<8x512xf32>
    %16 = arith.addf %14, %15 : vector<8x512xf32>
    %17 = vector.extract_strided_slice %16 {offsets = [0, 0], sizes = [8, 128], strides = [1, 1]} : vector<8x512xf32> to vector<8x128xf32>
    %18 = arith.negf %17 : vector<8x128xf32>
    %19 = math.exp %18 : vector<8x128xf32>
    %cst_14 = arith.constant 1.000000e+00 : f32
    %20 = vector.broadcast %cst_14 : f32 to vector<8x128xf32>
    %21 = arith.addf %20, %19 : vector<8x128xf32>
    %22 = arith.divf %20, %21 : vector<8x128xf32>
    %23 = vector.extract_strided_slice %16 {offsets = [0, 128], sizes = [8, 128], strides = [1, 1]} : vector<8x512xf32> to vector<8x128xf32>
    %24 = arith.negf %23 : vector<8x128xf32>
    %25 = math.exp %24 : vector<8x128xf32>
    %cst_15 = arith.constant 1.000000e+00 : f32
    %26 = vector.broadcast %cst_15 : f32 to vector<8x128xf32>
    %27 = arith.addf %26, %25 : vector<8x128xf32>
    %28 = arith.divf %26, %27 : vector<8x128xf32>
    %29 = vector.extract_strided_slice %16 {offsets = [0, 256], sizes = [8, 128], strides = [1, 1]} : vector<8x512xf32> to vector<8x128xf32>
    %30 = math.tanh %29 : vector<8x128xf32>
    %31 = vector.extract_strided_slice %16 {offsets = [0, 384], sizes = [8, 128], strides = [1, 1]} : vector<8x512xf32> to vector<8x128xf32>
    %32 = arith.negf %31 : vector<8x128xf32>
    %33 = math.exp %32 : vector<8x128xf32>
    %cst_16 = arith.constant 1.000000e+00 : f32
    %34 = vector.broadcast %cst_16 : f32 to vector<8x128xf32>
    %35 = arith.addf %34, %33 : vector<8x128xf32>
    %36 = arith.divf %34, %35 : vector<8x128xf32>
    %37 = arith.mulf %28, %10 : vector<8x128xf32>
    %38 = arith.mulf %22, %30 : vector<8x128xf32>
    %39 = arith.addf %37, %38 : vector<8x128xf32>
    %40 = math.tanh %39 : vector<8x128xf32>
    %41 = arith.mulf %36, %40 : vector<8x128xf32>
    %42 = arith.index_cast %12 : i32 to index
    %c0_17 = arith.constant 0 : index
    %43 = vector.load %arg12[%42, %c0_17] : memref<64x128xf32, #tpu.memory_space<vmem>>, vector<8x128xf32>
    tpu.vector_store %arg12[%42, %c0_17], %41 {strides = array<i32>} : memref<64x128xf32, #tpu.memory_space<vmem>>, vector<8x128xf32>,
    %c1_i32 = arith.constant 1 : i32
    %c8_i32_18 = arith.constant 8 : i32
    %44 = arith.muli %c1_i32, %c8_i32_18 : i32
    %45 = tpu.assume_multiple %44, 8 : i32
    %46 = arith.index_cast %45 : i32 to index
    %c0_19 = arith.constant 0 : index
    %47 = vector.load %arg11[%46, %c0_19] : memref<64x512xf32, #tpu.memory_space<vmem>>, vector<8x512xf32>
    %cst_20 = arith.constant dense<0.000000e+00> : vector<8x512xf32>
    %48 = tpu.matmul %41, %8, %cst_20 {dimension_numbers = #tpu.dot_dimension_numbers<[1], [0], [0], [1], [0, 0, 1, 1], [], []>} : vector<8x128xf32>, vector<128x512xf32>, vector<8x512xf32> -> vector<8x512xf32>
    %49 = arith.addf %47, %48 : vector<8x512xf32>
    %50 = vector.extract_strided_slice %49 {offsets = [0, 0], sizes = [8, 128], strides = [1, 1]} : vector<8x512xf32> to vector<8x128xf32>
    %51 = arith.negf %50 : vector<8x128xf32>
    %52 = math.exp %51 : vector<8x128xf32>
    %cst_21 = arith.constant 1.000000e+00 : f32
    %53 = vector.broadcast %cst_21 : f32 to vector<8x128xf32>
    %54 = arith.addf %53, %52 : vector<8x128xf32>
    %55 = arith.divf %53, %54 : vector<8x128xf32>
    %56 = vector.extract_strided_slice %49 {offsets = [0, 128], sizes = [8, 128], strides = [1, 1]} : vector<8x512xf32> to vector<8x128xf32>
    %57 = arith.negf %56 : vector<8x128xf32>
    %58 = math.exp %57 : vector<8x128xf32>
    %cst_22 = arith.constant 1.000000e+00 : f32
    %59 = vector.broadcast %cst_22 : f32 to vector<8x128xf32>
    %60 = arith.addf %59, %58 : vector<8x128xf32>
    %61 = arith.divf %59, %60 : vector<8x128xf32>
    %62 = vector.extract_strided_slice %49 {offsets = [0, 256], sizes = [8, 128], strides = [1, 1]} : vector<8x512xf32> to vector<8x128xf32>
    %63 = math.tanh %62 : vector<8x128xf32>
    %64 = vector.extract_strided_slice %49 {offsets = [0, 384], sizes = [8, 128], strides = [1, 1]} : vector<8x512xf32> to vector<8x128xf32>
    %65 = arith.negf %64 : vector<8x128xf32>
    %66 = math.exp %65 : vector<8x128xf32>
    %cst_23 = arith.constant 1.000000e+00 : f32
    %67 = vector.broadcast %cst_23 : f32 to vector<8x128xf32>
    %68 = arith.addf %67, %66 : vector<8x128xf32>
    %69 = arith.divf %67, %68 : vector<8x128xf32>
    %70 = arith.mulf %61, %39 : vector<8x128xf32>
    %71 = arith.mulf %55, %63 : vector<8x128xf32>
    %72 = arith.addf %70, %71 : vector<8x128xf32>
    %73 = math.tanh %72 : vector<8x128xf32>
    %74 = arith.mulf %69, %73 : vector<8x128xf32>
    %75 = arith.index_cast %45 : i32 to index
    %c0_24 = arith.constant 0 : index
    %76 = vector.load %arg12[%75, %c0_24] : memref<64x128xf32, #tpu.memory_space<vmem>>, vector<8x128xf32>
    tpu.vector_store %arg12[%75, %c0_24], %74 {strides = array<i32>} : memref<64x128xf32, #tpu.memory_space<vmem>>, vector<8x128xf32>,
    %c2_i32 = arith.constant 2 : i32
    %c8_i32_25 = arith.constant 8 : i32
    %77 = arith.muli %c2_i32, %c8_i32_25 : i32
    %78 = tpu.assume_multiple %77, 8 : i32
    %79 = arith.index_cast %78 : i32 to index
    %c0_26 = arith.constant 0 : index
    %80 = vector.load %arg11[%79, %c0_26] : memref<64x512xf32, #tpu.memory_space<vmem>>, vector<8x512xf32>
    %cst_27 = arith.constant dense<0.000000e+00> : vector<8x512xf32>
    %81 = tpu.matmul %74, %8, %cst_27 {dimension_numbers = #tpu.dot_dimension_numbers<[1], [0], [0], [1], [0, 0, 1, 1], [], []>} : vector<8x128xf32>, vector<128x512xf32>, vector<8x512xf32> -> vector<8x512xf32>
    %82 = arith.addf %80, %81 : vector<8x512xf32>
    %83 = vector.extract_strided_slice %82 {offsets = [0, 0], sizes = [8, 128], strides = [1, 1]} : vector<8x512xf32> to vector<8x128xf32>
    %84 = arith.negf %83 : vector<8x128xf32>
    %85 = math.exp %84 : vector<8x128xf32>
    %cst_28 = arith.constant 1.000000e+00 : f32
    %86 = vector.broadcast %cst_28 : f32 to vector<8x128xf32>
    %87 = arith.addf %86, %85 : vector<8x128xf32>
    %88 = arith.divf %86, %87 : vector<8x128xf32>
    %89 = vector.extract_strided_slice %82 {offsets = [0, 128], sizes = [8, 128], strides = [1, 1]} : vector<8x512xf32> to vector<8x128xf32>
    %90 = arith.negf %89 : vector<8x128xf32>
    %91 = math.exp %90 : vector<8x128xf32>
    %cst_29 = arith.constant 1.000000e+00 : f32
    %92 = vector.broadcast %cst_29 : f32 to vector<8x128xf32>
    %93 = arith.addf %92, %91 : vector<8x128xf32>
    %94 = arith.divf %92, %93 : vector<8x128xf32>
    %95 = vector.extract_strided_slice %82 {offsets = [0, 256], sizes = [8, 128], strides = [1, 1]} : vector<8x512xf32> to vector<8x128xf32>
    %96 = math.tanh %95 : vector<8x128xf32>
    %97 = vector.extract_strided_slice %82 {offsets = [0, 384], sizes = [8, 128], strides = [1, 1]} : vector<8x512xf32> to vector<8x128xf32>
    %98 = arith.negf %97 : vector<8x128xf32>
    %99 = math.exp %98 : vector<8x128xf32>
    %cst_30 = arith.constant 1.000000e+00 : f32
    %100 = vector.broadcast %cst_30 : f32 to vector<8x128xf32>
    %101 = arith.addf %100, %99 : vector<8x128xf32>
    %102 = arith.divf %100, %101 : vector<8x128xf32>
    %103 = arith.mulf %94, %72 : vector<8x128xf32>
    %104 = arith.mulf %88, %96 : vector<8x128xf32>
    %105 = arith.addf %103, %104 : vector<8x128xf32>
    %106 = math.tanh %105 : vector<8x128xf32>
    %107 = arith.mulf %102, %106 : vector<8x128xf32>
    %108 = arith.index_cast %78 : i32 to index
    %c0_31 = arith.constant 0 : index
    %109 = vector.load %arg12[%108, %c0_31] : memref<64x128xf32, #tpu.memory_space<vmem>>, vector<8x128xf32>
    tpu.vector_store %arg12[%108, %c0_31], %107 {strides = array<i32>} : memref<64x128xf32, #tpu.memory_space<vmem>>, vector<8x128xf32>,
    %c3_i32 = arith.constant 3 : i32
    %c8_i32_32 = arith.constant 8 : i32
    %110 = arith.muli %c3_i32, %c8_i32_32 : i32
    %111 = tpu.assume_multiple %110, 8 : i32
    %112 = arith.index_cast %111 : i32 to index
    %c0_33 = arith.constant 0 : index
    %113 = vector.load %arg11[%112, %c0_33] : memref<64x512xf32, #tpu.memory_space<vmem>>, vector<8x512xf32>
    %cst_34 = arith.constant dense<0.000000e+00> : vector<8x512xf32>
    %114 = tpu.matmul %107, %8, %cst_34 {dimension_numbers = #tpu.dot_dimension_numbers<[1], [0], [0], [1], [0, 0, 1, 1], [], []>} : vector<8x128xf32>, vector<128x512xf32>, vector<8x512xf32> -> vector<8x512xf32>
    %115 = arith.addf %113, %114 : vector<8x512xf32>
    %116 = vector.extract_strided_slice %115 {offsets = [0, 0], sizes = [8, 128], strides = [1, 1]} : vector<8x512xf32> to vector<8x128xf32>
    %117 = arith.negf %116 : vector<8x128xf32>
    %118 = math.exp %117 : vector<8x128xf32>
    %cst_35 = arith.constant 1.000000e+00 : f32
    %119 = vector.broadcast %cst_35 : f32 to vector<8x128xf32>
    %120 = arith.addf %119, %118 : vector<8x128xf32>
    %121 = arith.divf %119, %120 : vector<8x128xf32>
    %122 = vector.extract_strided_slice %115 {offsets = [0, 128], sizes = [8, 128], strides = [1, 1]} : vector<8x512xf32> to vector<8x128xf32>
    %123 = arith.negf %122 : vector<8x128xf32>
    %124 = math.exp %123 : vector<8x128xf32>
    %cst_36 = arith.constant 1.000000e+00 : f32
    %125 = vector.broadcast %cst_36 : f32 to vector<8x128xf32>
    %126 = arith.addf %125, %124 : vector<8x128xf32>
    %127 = arith.divf %125, %126 : vector<8x128xf32>
    %128 = vector.extract_strided_slice %115 {offsets = [0, 256], sizes = [8, 128], strides = [1, 1]} : vector<8x512xf32> to vector<8x128xf32>
    %129 = math.tanh %128 : vector<8x128xf32>
    %130 = vector.extract_strided_slice %115 {offsets = [0, 384], sizes = [8, 128], strides = [1, 1]} : vector<8x512xf32> to vector<8x128xf32>
    %131 = arith.negf %130 : vector<8x128xf32>
    %132 = math.exp %131 : vector<8x128xf32>
    %cst_37 = arith.constant 1.000000e+00 : f32
    %133 = vector.broadcast %cst_37 : f32 to vector<8x128xf32>
    %134 = arith.addf %133, %132 : vector<8x128xf32>
    %135 = arith.divf %133, %134 : vector<8x128xf32>
    %136 = arith.mulf %127, %105 : vector<8x128xf32>
    %137 = arith.mulf %121, %129 : vector<8x128xf32>
    %138 = arith.addf %136, %137 : vector<8x128xf32>
    %139 = math.tanh %138 : vector<8x128xf32>
    %140 = arith.mulf %135, %139 : vector<8x128xf32>
    %141 = arith.index_cast %111 : i32 to index
    %c0_38 = arith.constant 0 : index
    %142 = vector.load %arg12[%141, %c0_38] : memref<64x128xf32, #tpu.memory_space<vmem>>, vector<8x128xf32>
    tpu.vector_store %arg12[%141, %c0_38], %140 {strides = array<i32>} : memref<64x128xf32, #tpu.memory_space<vmem>>, vector<8x128xf32>,
    %c4_i32 = arith.constant 4 : i32
    %c8_i32_39 = arith.constant 8 : i32
    %143 = arith.muli %c4_i32, %c8_i32_39 : i32
    %144 = tpu.assume_multiple %143, 8 : i32
    %145 = arith.index_cast %144 : i32 to index
    %c0_40 = arith.constant 0 : index
    %146 = vector.load %arg11[%145, %c0_40] : memref<64x512xf32, #tpu.memory_space<vmem>>, vector<8x512xf32>
    %cst_41 = arith.constant dense<0.000000e+00> : vector<8x512xf32>
    %147 = tpu.matmul %140, %8, %cst_41 {dimension_numbers = #tpu.dot_dimension_numbers<[1], [0], [0], [1], [0, 0, 1, 1], [], []>} : vector<8x128xf32>, vector<128x512xf32>, vector<8x512xf32> -> vector<8x512xf32>
    %148 = arith.addf %146, %147 : vector<8x512xf32>
    %149 = vector.extract_strided_slice %148 {offsets = [0, 0], sizes = [8, 128], strides = [1, 1]} : vector<8x512xf32> to vector<8x128xf32>
    %150 = arith.negf %149 : vector<8x128xf32>
    %151 = math.exp %150 : vector<8x128xf32>
    %cst_42 = arith.constant 1.000000e+00 : f32
    %152 = vector.broadcast %cst_42 : f32 to vector<8x128xf32>
    %153 = arith.addf %152, %151 : vector<8x128xf32>
    %154 = arith.divf %152, %153 : vector<8x128xf32>
    %155 = vector.extract_strided_slice %148 {offsets = [0, 128], sizes = [8, 128], strides = [1, 1]} : vector<8x512xf32> to vector<8x128xf32>
    %156 = arith.negf %155 : vector<8x128xf32>
    %157 = math.exp %156 : vector<8x128xf32>
    %cst_43 = arith.constant 1.000000e+00 : f32
    %158 = vector.broadcast %cst_43 : f32 to vector<8x128xf32>
    %159 = arith.addf %158, %157 : vector<8x128xf32>
    %160 = arith.divf %158, %159 : vector<8x128xf32>
    %161 = vector.extract_strided_slice %148 {offsets = [0, 256], sizes = [8, 128], strides = [1, 1]} : vector<8x512xf32> to vector<8x128xf32>
    %162 = math.tanh %161 : vector<8x128xf32>
    %163 = vector.extract_strided_slice %148 {offsets = [0, 384], sizes = [8, 128], strides = [1, 1]} : vector<8x512xf32> to vector<8x128xf32>
    %164 = arith.negf %163 : vector<8x128xf32>
    %165 = math.exp %164 : vector<8x128xf32>
    %cst_44 = arith.constant 1.000000e+00 : f32
    %166 = vector.broadcast %cst_44 : f32 to vector<8x128xf32>
    %167 = arith.addf %166, %165 : vector<8x128xf32>
    %168 = arith.divf %166, %167 : vector<8x128xf32>
    %169 = arith.mulf %160, %138 : vector<8x128xf32>
    %170 = arith.mulf %154, %162 : vector<8x128xf32>
    %171 = arith.addf %169, %170 : vector<8x128xf32>
    %172 = math.tanh %171 : vector<8x128xf32>
    %173 = arith.mulf %168, %172 : vector<8x128xf32>
    %174 = arith.index_cast %144 : i32 to index
    %c0_45 = arith.constant 0 : index
    %175 = vector.load %arg12[%174, %c0_45] : memref<64x128xf32, #tpu.memory_space<vmem>>, vector<8x128xf32>
    tpu.vector_store %arg12[%174, %c0_45], %173 {strides = array<i32>} : memref<64x128xf32, #tpu.memory_space<vmem>>, vector<8x128xf32>,
    %c5_i32 = arith.constant 5 : i32
    %c8_i32_46 = arith.constant 8 : i32
    %176 = arith.muli %c5_i32, %c8_i32_46 : i32
    %177 = tpu.assume_multiple %176, 8 : i32
    %178 = arith.index_cast %177 : i32 to index
    %c0_47 = arith.constant 0 : index
    %179 = vector.load %arg11[%178, %c0_47] : memref<64x512xf32, #tpu.memory_space<vmem>>, vector<8x512xf32>
    %cst_48 = arith.constant dense<0.000000e+00> : vector<8x512xf32>
    %180 = tpu.matmul %173, %8, %cst_48 {dimension_numbers = #tpu.dot_dimension_numbers<[1], [0], [0], [1], [0, 0, 1, 1], [], []>} : vector<8x128xf32>, vector<128x512xf32>, vector<8x512xf32> -> vector<8x512xf32>
    %181 = arith.addf %179, %180 : vector<8x512xf32>
    %182 = vector.extract_strided_slice %181 {offsets = [0, 0], sizes = [8, 128], strides = [1, 1]} : vector<8x512xf32> to vector<8x128xf32>
    %183 = arith.negf %182 : vector<8x128xf32>
    %184 = math.exp %183 : vector<8x128xf32>
    %cst_49 = arith.constant 1.000000e+00 : f32
    %185 = vector.broadcast %cst_49 : f32 to vector<8x128xf32>
    %186 = arith.addf %185, %184 : vector<8x128xf32>
    %187 = arith.divf %185, %186 : vector<8x128xf32>
    %188 = vector.extract_strided_slice %181 {offsets = [0, 128], sizes = [8, 128], strides = [1, 1]} : vector<8x512xf32> to vector<8x128xf32>
    %189 = arith.negf %188 : vector<8x128xf32>
    %190 = math.exp %189 : vector<8x128xf32>
    %cst_50 = arith.constant 1.000000e+00 : f32
    %191 = vector.broadcast %cst_50 : f32 to vector<8x128xf32>
    %192 = arith.addf %191, %190 : vector<8x128xf32>
    %193 = arith.divf %191, %192 : vector<8x128xf32>
    %194 = vector.extract_strided_slice %181 {offsets = [0, 256], sizes = [8, 128], strides = [1, 1]} : vector<8x512xf32> to vector<8x128xf32>
    %195 = math.tanh %194 : vector<8x128xf32>
    %196 = vector.extract_strided_slice %181 {offsets = [0, 384], sizes = [8, 128], strides = [1, 1]} : vector<8x512xf32> to vector<8x128xf32>
    %197 = arith.negf %196 : vector<8x128xf32>
    %198 = math.exp %197 : vector<8x128xf32>
    %cst_51 = arith.constant 1.000000e+00 : f32
    %199 = vector.broadcast %cst_51 : f32 to vector<8x128xf32>
    %200 = arith.addf %199, %198 : vector<8x128xf32>
    %201 = arith.divf %199, %200 : vector<8x128xf32>
    %202 = arith.mulf %193, %171 : vector<8x128xf32>
    %203 = arith.mulf %187, %195 : vector<8x128xf32>
    %204 = arith.addf %202, %203 : vector<8x128xf32>
    %205 = math.tanh %204 : vector<8x128xf32>
    %206 = arith.mulf %201, %205 : vector<8x128xf32>
    %207 = arith.index_cast %177 : i32 to index
    %c0_52 = arith.constant 0 : index
    %208 = vector.load %arg12[%207, %c0_52] : memref<64x128xf32, #tpu.memory_space<vmem>>, vector<8x128xf32>
    tpu.vector_store %arg12[%207, %c0_52], %206 {strides = array<i32>} : memref<64x128xf32, #tpu.memory_space<vmem>>, vector<8x128xf32>,
    %c6_i32 = arith.constant 6 : i32
    %c8_i32_53 = arith.constant 8 : i32
    %209 = arith.muli %c6_i32, %c8_i32_53 : i32
    %210 = tpu.assume_multiple %209, 8 : i32
    %211 = arith.index_cast %210 : i32 to index
    %c0_54 = arith.constant 0 : index
    %212 = vector.load %arg11[%211, %c0_54] : memref<64x512xf32, #tpu.memory_space<vmem>>, vector<8x512xf32>
    %cst_55 = arith.constant dense<0.000000e+00> : vector<8x512xf32>
    %213 = tpu.matmul %206, %8, %cst_55 {dimension_numbers = #tpu.dot_dimension_numbers<[1], [0], [0], [1], [0, 0, 1, 1], [], []>} : vector<8x128xf32>, vector<128x512xf32>, vector<8x512xf32> -> vector<8x512xf32>
    %214 = arith.addf %212, %213 : vector<8x512xf32>
    %215 = vector.extract_strided_slice %214 {offsets = [0, 0], sizes = [8, 128], strides = [1, 1]} : vector<8x512xf32> to vector<8x128xf32>
    %216 = arith.negf %215 : vector<8x128xf32>
    %217 = math.exp %216 : vector<8x128xf32>
    %cst_56 = arith.constant 1.000000e+00 : f32
    %218 = vector.broadcast %cst_56 : f32 to vector<8x128xf32>
    %219 = arith.addf %218, %217 : vector<8x128xf32>
    %220 = arith.divf %218, %219 : vector<8x128xf32>
    %221 = vector.extract_strided_slice %214 {offsets = [0, 128], sizes = [8, 128], strides = [1, 1]} : vector<8x512xf32> to vector<8x128xf32>
    %222 = arith.negf %221 : vector<8x128xf32>
    %223 = math.exp %222 : vector<8x128xf32>
    %cst_57 = arith.constant 1.000000e+00 : f32
    %224 = vector.broadcast %cst_57 : f32 to vector<8x128xf32>
    %225 = arith.addf %224, %223 : vector<8x128xf32>
    %226 = arith.divf %224, %225 : vector<8x128xf32>
    %227 = vector.extract_strided_slice %214 {offsets = [0, 256], sizes = [8, 128], strides = [1, 1]} : vector<8x512xf32> to vector<8x128xf32>
    %228 = math.tanh %227 : vector<8x128xf32>
    %229 = vector.extract_strided_slice %214 {offsets = [0, 384], sizes = [8, 128], strides = [1, 1]} : vector<8x512xf32> to vector<8x128xf32>
    %230 = arith.negf %229 : vector<8x128xf32>
    %231 = math.exp %230 : vector<8x128xf32>
    %cst_58 = arith.constant 1.000000e+00 : f32
    %232 = vector.broadcast %cst_58 : f32 to vector<8x128xf32>
    %233 = arith.addf %232, %231 : vector<8x128xf32>
    %234 = arith.divf %232, %233 : vector<8x128xf32>
    %235 = arith.mulf %226, %204 : vector<8x128xf32>
    %236 = arith.mulf %220, %228 : vector<8x128xf32>
    %237 = arith.addf %235, %236 : vector<8x128xf32>
    %238 = math.tanh %237 : vector<8x128xf32>
    %239 = arith.mulf %234, %238 : vector<8x128xf32>
    %240 = arith.index_cast %210 : i32 to index
    %c0_59 = arith.constant 0 : index
    %241 = vector.load %arg12[%240, %c0_59] : memref<64x128xf32, #tpu.memory_space<vmem>>, vector<8x128xf32>
    tpu.vector_store %arg12[%240, %c0_59], %239 {strides = array<i32>} : memref<64x128xf32, #tpu.memory_space<vmem>>, vector<8x128xf32>,
    %c7_i32 = arith.constant 7 : i32
    %c8_i32_60 = arith.constant 8 : i32
    %242 = arith.muli %c7_i32, %c8_i32_60 : i32
    %243 = tpu.assume_multiple %242, 8 : i32
    %244 = arith.index_cast %243 : i32 to index
    %c0_61 = arith.constant 0 : index
    %245 = vector.load %arg11[%244, %c0_61] : memref<64x512xf32, #tpu.memory_space<vmem>>, vector<8x512xf32>
    %cst_62 = arith.constant dense<0.000000e+00> : vector<8x512xf32>
    %246 = tpu.matmul %239, %8, %cst_62 {dimension_numbers = #tpu.dot_dimension_numbers<[1], [0], [0], [1], [0, 0, 1, 1], [], []>} : vector<8x128xf32>, vector<128x512xf32>, vector<8x512xf32> -> vector<8x512xf32>
    %247 = arith.addf %245, %246 : vector<8x512xf32>
    %248 = vector.extract_strided_slice %247 {offsets = [0, 0], sizes = [8, 128], strides = [1, 1]} : vector<8x512xf32> to vector<8x128xf32>
    %249 = arith.negf %248 : vector<8x128xf32>
    %250 = math.exp %249 : vector<8x128xf32>
    %cst_63 = arith.constant 1.000000e+00 : f32
    %251 = vector.broadcast %cst_63 : f32 to vector<8x128xf32>
    %252 = arith.addf %251, %250 : vector<8x128xf32>
    %253 = arith.divf %251, %252 : vector<8x128xf32>
    %254 = vector.extract_strided_slice %247 {offsets = [0, 128], sizes = [8, 128], strides = [1, 1]} : vector<8x512xf32> to vector<8x128xf32>
    %255 = arith.negf %254 : vector<8x128xf32>
    %256 = math.exp %255 : vector<8x128xf32>
    %cst_64 = arith.constant 1.000000e+00 : f32
    %257 = vector.broadcast %cst_64 : f32 to vector<8x128xf32>
    %258 = arith.addf %257, %256 : vector<8x128xf32>
    %259 = arith.divf %257, %258 : vector<8x128xf32>
    %260 = vector.extract_strided_slice %247 {offsets = [0, 256], sizes = [8, 128], strides = [1, 1]} : vector<8x512xf32> to vector<8x128xf32>
    %261 = math.tanh %260 : vector<8x128xf32>
    %262 = vector.extract_strided_slice %247 {offsets = [0, 384], sizes = [8, 128], strides = [1, 1]} : vector<8x512xf32> to vector<8x128xf32>
    %263 = arith.negf %262 : vector<8x128xf32>
    %264 = math.exp %263 : vector<8x128xf32>
    %cst_65 = arith.constant 1.000000e+00 : f32
    %265 = vector.broadcast %cst_65 : f32 to vector<8x128xf32>
    %266 = arith.addf %265, %264 : vector<8x128xf32>
    %267 = arith.divf %265, %266 : vector<8x128xf32>
    %268 = arith.mulf %259, %237 : vector<8x128xf32>
    %269 = arith.mulf %253, %261 : vector<8x128xf32>
    %270 = arith.addf %268, %269 : vector<8x128xf32>
    %271 = math.tanh %270 : vector<8x128xf32>
    %272 = arith.mulf %267, %271 : vector<8x128xf32>
    %273 = arith.index_cast %243 : i32 to index
    %c0_66 = arith.constant 0 : index
    %274 = vector.load %arg12[%273, %c0_66] : memref<64x128xf32, #tpu.memory_space<vmem>>, vector<8x128xf32>
    tpu.vector_store %arg12[%273, %c0_66], %272 {strides = array<i32>} : memref<64x128xf32, #tpu.memory_space<vmem>>, vector<8x128xf32>,
    %c8_i32_67 = arith.constant 8 : i32
    %c0_68 = arith.constant 0 : index
    %c0_69 = arith.constant 0 : index
    %275 = vector.load %arg12[%c0_68, %c0_69] : memref<64x128xf32, #tpu.memory_space<vmem>>, vector<64x128xf32>
    %c0_70 = arith.constant 0 : index
    %c0_71 = arith.constant 0 : index
    %276 = vector.load %arg5[%c0_70, %c0_71] : memref<128x512xf32, #tpu.memory_space<vmem>>, vector<128x512xf32>
    %cst_72 = arith.constant dense<0.000000e+00> : vector<64x512xf32>
    %277 = tpu.matmul %275, %276, %cst_72 {dimension_numbers = #tpu.dot_dimension_numbers<[1], [0], [0], [1], [0, 0, 1, 1], [], []>} : vector<64x128xf32>, vector<128x512xf32>, vector<64x512xf32> -> vector<64x512xf32>
    %c0_73 = arith.constant 0 : index
    %c0_74 = arith.constant 0 : index
    %278 = vector.load %arg7[%c0_73, %c0_74] : memref<1x512xf32, #tpu.memory_space<vmem>>, vector<1x512xf32>
    %279 = vector.broadcast %278 : vector<1x512xf32> to vector<64x512xf32>
    %280 = arith.addf %277, %279 : vector<64x512xf32>
    %c0_75 = arith.constant 0 : index
    %c0_76 = arith.constant 0 : index
    %281 = vector.load %arg11[%c0_75, %c0_76] : memref<64x512xf32, #tpu.memory_space<vmem>>, vector<64x512xf32>
    tpu.vector_store %arg11[%c0_75, %c0_76], %280 {strides = array<i32>} : memref<64x512xf32, #tpu.memory_space<vmem>>, vector<64x512xf32>,
    %c0_77 = arith.constant 0 : index
    %c0_78 = arith.constant 0 : index
    %282 = vector.load %arg6[%c0_77, %c0_78] : memref<128x512xf32, #tpu.memory_space<vmem>>, vector<128x512xf32>
    %cst_79 = arith.constant 0.000000e+00 : f32
    %283 = vector.broadcast %cst_79 : f32 to vector<8x128xf32>
    %cst_80 = arith.constant 0.000000e+00 : f32
    %284 = vector.broadcast %cst_80 : f32 to vector<8x128xf32>
    %c0_i32_81 = arith.constant 0 : i32
    %c8_i32_82 = arith.constant 8 : i32
    %285 = arith.muli %c0_i32_81, %c8_i32_82 : i32
    %286 = tpu.assume_multiple %285, 8 : i32
    %287 = arith.index_cast %286 : i32 to index
    %c0_83 = arith.constant 0 : index
    %288 = vector.load %arg11[%287, %c0_83] : memref<64x512xf32, #tpu.memory_space<vmem>>, vector<8x512xf32>
    %cst_84 = arith.constant dense<0.000000e+00> : vector<8x512xf32>
    %289 = tpu.matmul %283, %282, %cst_84 {dimension_numbers = #tpu.dot_dimension_numbers<[1], [0], [0], [1], [0, 0, 1, 1], [], []>} : vector<8x128xf32>, vector<128x512xf32>, vector<8x512xf32> -> vector<8x512xf32>
    %290 = arith.addf %288, %289 : vector<8x512xf32>
    %291 = vector.extract_strided_slice %290 {offsets = [0, 0], sizes = [8, 128], strides = [1, 1]} : vector<8x512xf32> to vector<8x128xf32>
    %292 = arith.negf %291 : vector<8x128xf32>
    %293 = math.exp %292 : vector<8x128xf32>
    %cst_85 = arith.constant 1.000000e+00 : f32
    %294 = vector.broadcast %cst_85 : f32 to vector<8x128xf32>
    %295 = arith.addf %294, %293 : vector<8x128xf32>
    %296 = arith.divf %294, %295 : vector<8x128xf32>
    %297 = vector.extract_strided_slice %290 {offsets = [0, 128], sizes = [8, 128], strides = [1, 1]} : vector<8x512xf32> to vector<8x128xf32>
    %298 = arith.negf %297 : vector<8x128xf32>
    %299 = math.exp %298 : vector<8x128xf32>
    %cst_86 = arith.constant 1.000000e+00 : f32
    %300 = vector.broadcast %cst_86 : f32 to vector<8x128xf32>
    %301 = arith.addf %300, %299 : vector<8x128xf32>
    %302 = arith.divf %300, %301 : vector<8x128xf32>
    %303 = vector.extract_strided_slice %290 {offsets = [0, 256], sizes = [8, 128], strides = [1, 1]} : vector<8x512xf32> to vector<8x128xf32>
    %304 = math.tanh %303 : vector<8x128xf32>
    %305 = vector.extract_strided_slice %290 {offsets = [0, 384], sizes = [8, 128], strides = [1, 1]} : vector<8x512xf32> to vector<8x128xf32>
    %306 = arith.negf %305 : vector<8x128xf32>
    %307 = math.exp %306 : vector<8x128xf32>
    %cst_87 = arith.constant 1.000000e+00 : f32
    %308 = vector.broadcast %cst_87 : f32 to vector<8x128xf32>
    %309 = arith.addf %308, %307 : vector<8x128xf32>
    %310 = arith.divf %308, %309 : vector<8x128xf32>
    %311 = arith.mulf %302, %284 : vector<8x128xf32>
    %312 = arith.mulf %296, %304 : vector<8x128xf32>
    %313 = arith.addf %311, %312 : vector<8x128xf32>
    %314 = math.tanh %313 : vector<8x128xf32>
    %315 = arith.mulf %310, %314 : vector<8x128xf32>
    %316 = arith.index_cast %286 : i32 to index
    %c0_88 = arith.constant 0 : index
    %317 = vector.load %arg12[%316, %c0_88] : memref<64x128xf32, #tpu.memory_space<vmem>>, vector<8x128xf32>
    tpu.vector_store %arg12[%316, %c0_88], %315 {strides = array<i32>} : memref<64x128xf32, #tpu.memory_space<vmem>>, vector<8x128xf32>,
    %c1_i32_89 = arith.constant 1 : i32
    %c8_i32_90 = arith.constant 8 : i32
    %318 = arith.muli %c1_i32_89, %c8_i32_90 : i32
    %319 = tpu.assume_multiple %318, 8 : i32
    %320 = arith.index_cast %319 : i32 to index
    %c0_91 = arith.constant 0 : index
    %321 = vector.load %arg11[%320, %c0_91] : memref<64x512xf32, #tpu.memory_space<vmem>>, vector<8x512xf32>
    %cst_92 = arith.constant dense<0.000000e+00> : vector<8x512xf32>
    %322 = tpu.matmul %315, %282, %cst_92 {dimension_numbers = #tpu.dot_dimension_numbers<[1], [0], [0], [1], [0, 0, 1, 1], [], []>} : vector<8x128xf32>, vector<128x512xf32>, vector<8x512xf32> -> vector<8x512xf32>
    %323 = arith.addf %321, %322 : vector<8x512xf32>
    %324 = vector.extract_strided_slice %323 {offsets = [0, 0], sizes = [8, 128], strides = [1, 1]} : vector<8x512xf32> to vector<8x128xf32>
    %325 = arith.negf %324 : vector<8x128xf32>
    %326 = math.exp %325 : vector<8x128xf32>
    %cst_93 = arith.constant 1.000000e+00 : f32
    %327 = vector.broadcast %cst_93 : f32 to vector<8x128xf32>
    %328 = arith.addf %327, %326 : vector<8x128xf32>
    %329 = arith.divf %327, %328 : vector<8x128xf32>
    %330 = vector.extract_strided_slice %323 {offsets = [0, 128], sizes = [8, 128], strides = [1, 1]} : vector<8x512xf32> to vector<8x128xf32>
    %331 = arith.negf %330 : vector<8x128xf32>
    %332 = math.exp %331 : vector<8x128xf32>
    %cst_94 = arith.constant 1.000000e+00 : f32
    %333 = vector.broadcast %cst_94 : f32 to vector<8x128xf32>
    %334 = arith.addf %333, %332 : vector<8x128xf32>
    %335 = arith.divf %333, %334 : vector<8x128xf32>
    %336 = vector.extract_strided_slice %323 {offsets = [0, 256], sizes = [8, 128], strides = [1, 1]} : vector<8x512xf32> to vector<8x128xf32>
    %337 = math.tanh %336 : vector<8x128xf32>
    %338 = vector.extract_strided_slice %323 {offsets = [0, 384], sizes = [8, 128], strides = [1, 1]} : vector<8x512xf32> to vector<8x128xf32>
    %339 = arith.negf %338 : vector<8x128xf32>
    %340 = math.exp %339 : vector<8x128xf32>
    %cst_95 = arith.constant 1.000000e+00 : f32
    %341 = vector.broadcast %cst_95 : f32 to vector<8x128xf32>
    %342 = arith.addf %341, %340 : vector<8x128xf32>
    %343 = arith.divf %341, %342 : vector<8x128xf32>
    %344 = arith.mulf %335, %313 : vector<8x128xf32>
    %345 = arith.mulf %329, %337 : vector<8x128xf32>
    %346 = arith.addf %344, %345 : vector<8x128xf32>
    %347 = math.tanh %346 : vector<8x128xf32>
    %348 = arith.mulf %343, %347 : vector<8x128xf32>
    %349 = arith.index_cast %319 : i32 to index
    %c0_96 = arith.constant 0 : index
    %350 = vector.load %arg12[%349, %c0_96] : memref<64x128xf32, #tpu.memory_space<vmem>>, vector<8x128xf32>
    tpu.vector_store %arg12[%349, %c0_96], %348 {strides = array<i32>} : memref<64x128xf32, #tpu.memory_space<vmem>>, vector<8x128xf32>,
    %c2_i32_97 = arith.constant 2 : i32
    %c8_i32_98 = arith.constant 8 : i32
    %351 = arith.muli %c2_i32_97, %c8_i32_98 : i32
    %352 = tpu.assume_multiple %351, 8 : i32
    %353 = arith.index_cast %352 : i32 to index
    %c0_99 = arith.constant 0 : index
    %354 = vector.load %arg11[%353, %c0_99] : memref<64x512xf32, #tpu.memory_space<vmem>>, vector<8x512xf32>
    %cst_100 = arith.constant dense<0.000000e+00> : vector<8x512xf32>
    %355 = tpu.matmul %348, %282, %cst_100 {dimension_numbers = #tpu.dot_dimension_numbers<[1], [0], [0], [1], [0, 0, 1, 1], [], []>} : vector<8x128xf32>, vector<128x512xf32>, vector<8x512xf32> -> vector<8x512xf32>
    %356 = arith.addf %354, %355 : vector<8x512xf32>
    %357 = vector.extract_strided_slice %356 {offsets = [0, 0], sizes = [8, 128], strides = [1, 1]} : vector<8x512xf32> to vector<8x128xf32>
    %358 = arith.negf %357 : vector<8x128xf32>
    %359 = math.exp %358 : vector<8x128xf32>
    %cst_101 = arith.constant 1.000000e+00 : f32
    %360 = vector.broadcast %cst_101 : f32 to vector<8x128xf32>
    %361 = arith.addf %360, %359 : vector<8x128xf32>
    %362 = arith.divf %360, %361 : vector<8x128xf32>
    %363 = vector.extract_strided_slice %356 {offsets = [0, 128], sizes = [8, 128], strides = [1, 1]} : vector<8x512xf32> to vector<8x128xf32>
    %364 = arith.negf %363 : vector<8x128xf32>
    %365 = math.exp %364 : vector<8x128xf32>
    %cst_102 = arith.constant 1.000000e+00 : f32
    %366 = vector.broadcast %cst_102 : f32 to vector<8x128xf32>
    %367 = arith.addf %366, %365 : vector<8x128xf32>
    %368 = arith.divf %366, %367 : vector<8x128xf32>
    %369 = vector.extract_strided_slice %356 {offsets = [0, 256], sizes = [8, 128], strides = [1, 1]} : vector<8x512xf32> to vector<8x128xf32>
    %370 = math.tanh %369 : vector<8x128xf32>
    %371 = vector.extract_strided_slice %356 {offsets = [0, 384], sizes = [8, 128], strides = [1, 1]} : vector<8x512xf32> to vector<8x128xf32>
    %372 = arith.negf %371 : vector<8x128xf32>
    %373 = math.exp %372 : vector<8x128xf32>
    %cst_103 = arith.constant 1.000000e+00 : f32
    %374 = vector.broadcast %cst_103 : f32 to vector<8x128xf32>
    %375 = arith.addf %374, %373 : vector<8x128xf32>
    %376 = arith.divf %374, %375 : vector<8x128xf32>
    %377 = arith.mulf %368, %346 : vector<8x128xf32>
    %378 = arith.mulf %362, %370 : vector<8x128xf32>
    %379 = arith.addf %377, %378 : vector<8x128xf32>
    %380 = math.tanh %379 : vector<8x128xf32>
    %381 = arith.mulf %376, %380 : vector<8x128xf32>
    %382 = arith.index_cast %352 : i32 to index
    %c0_104 = arith.constant 0 : index
    %383 = vector.load %arg12[%382, %c0_104] : memref<64x128xf32, #tpu.memory_space<vmem>>, vector<8x128xf32>
    tpu.vector_store %arg12[%382, %c0_104], %381 {strides = array<i32>} : memref<64x128xf32, #tpu.memory_space<vmem>>, vector<8x128xf32>,
    %c3_i32_105 = arith.constant 3 : i32
    %c8_i32_106 = arith.constant 8 : i32
    %384 = arith.muli %c3_i32_105, %c8_i32_106 : i32
    %385 = tpu.assume_multiple %384, 8 : i32
    %386 = arith.index_cast %385 : i32 to index
    %c0_107 = arith.constant 0 : index
    %387 = vector.load %arg11[%386, %c0_107] : memref<64x512xf32, #tpu.memory_space<vmem>>, vector<8x512xf32>
    %cst_108 = arith.constant dense<0.000000e+00> : vector<8x512xf32>
    %388 = tpu.matmul %381, %282, %cst_108 {dimension_numbers = #tpu.dot_dimension_numbers<[1], [0], [0], [1], [0, 0, 1, 1], [], []>} : vector<8x128xf32>, vector<128x512xf32>, vector<8x512xf32> -> vector<8x512xf32>
    %389 = arith.addf %387, %388 : vector<8x512xf32>
    %390 = vector.extract_strided_slice %389 {offsets = [0, 0], sizes = [8, 128], strides = [1, 1]} : vector<8x512xf32> to vector<8x128xf32>
    %391 = arith.negf %390 : vector<8x128xf32>
    %392 = math.exp %391 : vector<8x128xf32>
    %cst_109 = arith.constant 1.000000e+00 : f32
    %393 = vector.broadcast %cst_109 : f32 to vector<8x128xf32>
    %394 = arith.addf %393, %392 : vector<8x128xf32>
    %395 = arith.divf %393, %394 : vector<8x128xf32>
    %396 = vector.extract_strided_slice %389 {offsets = [0, 128], sizes = [8, 128], strides = [1, 1]} : vector<8x512xf32> to vector<8x128xf32>
    %397 = arith.negf %396 : vector<8x128xf32>
    %398 = math.exp %397 : vector<8x128xf32>
    %cst_110 = arith.constant 1.000000e+00 : f32
    %399 = vector.broadcast %cst_110 : f32 to vector<8x128xf32>
    %400 = arith.addf %399, %398 : vector<8x128xf32>
    %401 = arith.divf %399, %400 : vector<8x128xf32>
    %402 = vector.extract_strided_slice %389 {offsets = [0, 256], sizes = [8, 128], strides = [1, 1]} : vector<8x512xf32> to vector<8x128xf32>
    %403 = math.tanh %402 : vector<8x128xf32>
    %404 = vector.extract_strided_slice %389 {offsets = [0, 384], sizes = [8, 128], strides = [1, 1]} : vector<8x512xf32> to vector<8x128xf32>
    %405 = arith.negf %404 : vector<8x128xf32>
    %406 = math.exp %405 : vector<8x128xf32>
    %cst_111 = arith.constant 1.000000e+00 : f32
    %407 = vector.broadcast %cst_111 : f32 to vector<8x128xf32>
    %408 = arith.addf %407, %406 : vector<8x128xf32>
    %409 = arith.divf %407, %408 : vector<8x128xf32>
    %410 = arith.mulf %401, %379 : vector<8x128xf32>
    %411 = arith.mulf %395, %403 : vector<8x128xf32>
    %412 = arith.addf %410, %411 : vector<8x128xf32>
    %413 = math.tanh %412 : vector<8x128xf32>
    %414 = arith.mulf %409, %413 : vector<8x128xf32>
    %415 = arith.index_cast %385 : i32 to index
    %c0_112 = arith.constant 0 : index
    %416 = vector.load %arg12[%415, %c0_112] : memref<64x128xf32, #tpu.memory_space<vmem>>, vector<8x128xf32>
    tpu.vector_store %arg12[%415, %c0_112], %414 {strides = array<i32>} : memref<64x128xf32, #tpu.memory_space<vmem>>, vector<8x128xf32>,
    %c4_i32_113 = arith.constant 4 : i32
    %c8_i32_114 = arith.constant 8 : i32
    %417 = arith.muli %c4_i32_113, %c8_i32_114 : i32
    %418 = tpu.assume_multiple %417, 8 : i32
    %419 = arith.index_cast %418 : i32 to index
    %c0_115 = arith.constant 0 : index
    %420 = vector.load %arg11[%419, %c0_115] : memref<64x512xf32, #tpu.memory_space<vmem>>, vector<8x512xf32>
    %cst_116 = arith.constant dense<0.000000e+00> : vector<8x512xf32>
    %421 = tpu.matmul %414, %282, %cst_116 {dimension_numbers = #tpu.dot_dimension_numbers<[1], [0], [0], [1], [0, 0, 1, 1], [], []>} : vector<8x128xf32>, vector<128x512xf32>, vector<8x512xf32> -> vector<8x512xf32>
    %422 = arith.addf %420, %421 : vector<8x512xf32>
    %423 = vector.extract_strided_slice %422 {offsets = [0, 0], sizes = [8, 128], strides = [1, 1]} : vector<8x512xf32> to vector<8x128xf32>
    %424 = arith.negf %423 : vector<8x128xf32>
    %425 = math.exp %424 : vector<8x128xf32>
    %cst_117 = arith.constant 1.000000e+00 : f32
    %426 = vector.broadcast %cst_117 : f32 to vector<8x128xf32>
    %427 = arith.addf %426, %425 : vector<8x128xf32>
    %428 = arith.divf %426, %427 : vector<8x128xf32>
    %429 = vector.extract_strided_slice %422 {offsets = [0, 128], sizes = [8, 128], strides = [1, 1]} : vector<8x512xf32> to vector<8x128xf32>
    %430 = arith.negf %429 : vector<8x128xf32>
    %431 = math.exp %430 : vector<8x128xf32>
    %cst_118 = arith.constant 1.000000e+00 : f32
    %432 = vector.broadcast %cst_118 : f32 to vector<8x128xf32>
    %433 = arith.addf %432, %431 : vector<8x128xf32>
    %434 = arith.divf %432, %433 : vector<8x128xf32>
    %435 = vector.extract_strided_slice %422 {offsets = [0, 256], sizes = [8, 128], strides = [1, 1]} : vector<8x512xf32> to vector<8x128xf32>
    %436 = math.tanh %435 : vector<8x128xf32>
    %437 = vector.extract_strided_slice %422 {offsets = [0, 384], sizes = [8, 128], strides = [1, 1]} : vector<8x512xf32> to vector<8x128xf32>
    %438 = arith.negf %437 : vector<8x128xf32>
    %439 = math.exp %438 : vector<8x128xf32>
    %cst_119 = arith.constant 1.000000e+00 : f32
    %440 = vector.broadcast %cst_119 : f32 to vector<8x128xf32>
    %441 = arith.addf %440, %439 : vector<8x128xf32>
    %442 = arith.divf %440, %441 : vector<8x128xf32>
    %443 = arith.mulf %434, %412 : vector<8x128xf32>
    %444 = arith.mulf %428, %436 : vector<8x128xf32>
    %445 = arith.addf %443, %444 : vector<8x128xf32>
    %446 = math.tanh %445 : vector<8x128xf32>
    %447 = arith.mulf %442, %446 : vector<8x128xf32>
    %448 = arith.index_cast %418 : i32 to index
    %c0_120 = arith.constant 0 : index
    %449 = vector.load %arg12[%448, %c0_120] : memref<64x128xf32, #tpu.memory_space<vmem>>, vector<8x128xf32>
    tpu.vector_store %arg12[%448, %c0_120], %447 {strides = array<i32>} : memref<64x128xf32, #tpu.memory_space<vmem>>, vector<8x128xf32>,
    %c5_i32_121 = arith.constant 5 : i32
    %c8_i32_122 = arith.constant 8 : i32
    %450 = arith.muli %c5_i32_121, %c8_i32_122 : i32
    %451 = tpu.assume_multiple %450, 8 : i32
    %452 = arith.index_cast %451 : i32 to index
    %c0_123 = arith.constant 0 : index
    %453 = vector.load %arg11[%452, %c0_123] : memref<64x512xf32, #tpu.memory_space<vmem>>, vector<8x512xf32>
    %cst_124 = arith.constant dense<0.000000e+00> : vector<8x512xf32>
    %454 = tpu.matmul %447, %282, %cst_124 {dimension_numbers = #tpu.dot_dimension_numbers<[1], [0], [0], [1], [0, 0, 1, 1], [], []>} : vector<8x128xf32>, vector<128x512xf32>, vector<8x512xf32> -> vector<8x512xf32>
    %455 = arith.addf %453, %454 : vector<8x512xf32>
    %456 = vector.extract_strided_slice %455 {offsets = [0, 0], sizes = [8, 128], strides = [1, 1]} : vector<8x512xf32> to vector<8x128xf32>
    %457 = arith.negf %456 : vector<8x128xf32>
    %458 = math.exp %457 : vector<8x128xf32>
    %cst_125 = arith.constant 1.000000e+00 : f32
    %459 = vector.broadcast %cst_125 : f32 to vector<8x128xf32>
    %460 = arith.addf %459, %458 : vector<8x128xf32>
    %461 = arith.divf %459, %460 : vector<8x128xf32>
    %462 = vector.extract_strided_slice %455 {offsets = [0, 128], sizes = [8, 128], strides = [1, 1]} : vector<8x512xf32> to vector<8x128xf32>
    %463 = arith.negf %462 : vector<8x128xf32>
    %464 = math.exp %463 : vector<8x128xf32>
    %cst_126 = arith.constant 1.000000e+00 : f32
    %465 = vector.broadcast %cst_126 : f32 to vector<8x128xf32>
    %466 = arith.addf %465, %464 : vector<8x128xf32>
    %467 = arith.divf %465, %466 : vector<8x128xf32>
    %468 = vector.extract_strided_slice %455 {offsets = [0, 256], sizes = [8, 128], strides = [1, 1]} : vector<8x512xf32> to vector<8x128xf32>
    %469 = math.tanh %468 : vector<8x128xf32>
    %470 = vector.extract_strided_slice %455 {offsets = [0, 384], sizes = [8, 128], strides = [1, 1]} : vector<8x512xf32> to vector<8x128xf32>
    %471 = arith.negf %470 : vector<8x128xf32>
    %472 = math.exp %471 : vector<8x128xf32>
    %cst_127 = arith.constant 1.000000e+00 : f32
    %473 = vector.broadcast %cst_127 : f32 to vector<8x128xf32>
    %474 = arith.addf %473, %472 : vector<8x128xf32>
    %475 = arith.divf %473, %474 : vector<8x128xf32>
    %476 = arith.mulf %467, %445 : vector<8x128xf32>
    %477 = arith.mulf %461, %469 : vector<8x128xf32>
    %478 = arith.addf %476, %477 : vector<8x128xf32>
    %479 = math.tanh %478 : vector<8x128xf32>
    %480 = arith.mulf %475, %479 : vector<8x128xf32>
    %481 = arith.index_cast %451 : i32 to index
    %c0_128 = arith.constant 0 : index
    %482 = vector.load %arg12[%481, %c0_128] : memref<64x128xf32, #tpu.memory_space<vmem>>, vector<8x128xf32>
    tpu.vector_store %arg12[%481, %c0_128], %480 {strides = array<i32>} : memref<64x128xf32, #tpu.memory_space<vmem>>, vector<8x128xf32>,
    %c6_i32_129 = arith.constant 6 : i32
    %c8_i32_130 = arith.constant 8 : i32
    %483 = arith.muli %c6_i32_129, %c8_i32_130 : i32
    %484 = tpu.assume_multiple %483, 8 : i32
    %485 = arith.index_cast %484 : i32 to index
    %c0_131 = arith.constant 0 : index
    %486 = vector.load %arg11[%485, %c0_131] : memref<64x512xf32, #tpu.memory_space<vmem>>, vector<8x512xf32>
    %cst_132 = arith.constant dense<0.000000e+00> : vector<8x512xf32>
    %487 = tpu.matmul %480, %282, %cst_132 {dimension_numbers = #tpu.dot_dimension_numbers<[1], [0], [0], [1], [0, 0, 1, 1], [], []>} : vector<8x128xf32>, vector<128x512xf32>, vector<8x512xf32> -> vector<8x512xf32>
    %488 = arith.addf %486, %487 : vector<8x512xf32>
    %489 = vector.extract_strided_slice %488 {offsets = [0, 0], sizes = [8, 128], strides = [1, 1]} : vector<8x512xf32> to vector<8x128xf32>
    %490 = arith.negf %489 : vector<8x128xf32>
    %491 = math.exp %490 : vector<8x128xf32>
    %cst_133 = arith.constant 1.000000e+00 : f32
    %492 = vector.broadcast %cst_133 : f32 to vector<8x128xf32>
    %493 = arith.addf %492, %491 : vector<8x128xf32>
    %494 = arith.divf %492, %493 : vector<8x128xf32>
    %495 = vector.extract_strided_slice %488 {offsets = [0, 128], sizes = [8, 128], strides = [1, 1]} : vector<8x512xf32> to vector<8x128xf32>
    %496 = arith.negf %495 : vector<8x128xf32>
    %497 = math.exp %496 : vector<8x128xf32>
    %cst_134 = arith.constant 1.000000e+00 : f32
    %498 = vector.broadcast %cst_134 : f32 to vector<8x128xf32>
    %499 = arith.addf %498, %497 : vector<8x128xf32>
    %500 = arith.divf %498, %499 : vector<8x128xf32>
    %501 = vector.extract_strided_slice %488 {offsets = [0, 256], sizes = [8, 128], strides = [1, 1]} : vector<8x512xf32> to vector<8x128xf32>
    %502 = math.tanh %501 : vector<8x128xf32>
    %503 = vector.extract_strided_slice %488 {offsets = [0, 384], sizes = [8, 128], strides = [1, 1]} : vector<8x512xf32> to vector<8x128xf32>
    %504 = arith.negf %503 : vector<8x128xf32>
    %505 = math.exp %504 : vector<8x128xf32>
    %cst_135 = arith.constant 1.000000e+00 : f32
    %506 = vector.broadcast %cst_135 : f32 to vector<8x128xf32>
    %507 = arith.addf %506, %505 : vector<8x128xf32>
    %508 = arith.divf %506, %507 : vector<8x128xf32>
    %509 = arith.mulf %500, %478 : vector<8x128xf32>
    %510 = arith.mulf %494, %502 : vector<8x128xf32>
    %511 = arith.addf %509, %510 : vector<8x128xf32>
    %512 = math.tanh %511 : vector<8x128xf32>
    %513 = arith.mulf %508, %512 : vector<8x128xf32>
    %514 = arith.index_cast %484 : i32 to index
    %c0_136 = arith.constant 0 : index
    %515 = vector.load %arg12[%514, %c0_136] : memref<64x128xf32, #tpu.memory_space<vmem>>, vector<8x128xf32>
    tpu.vector_store %arg12[%514, %c0_136], %513 {strides = array<i32>} : memref<64x128xf32, #tpu.memory_space<vmem>>, vector<8x128xf32>,
    %c7_i32_137 = arith.constant 7 : i32
    %c8_i32_138 = arith.constant 8 : i32
    %516 = arith.muli %c7_i32_137, %c8_i32_138 : i32
    %517 = tpu.assume_multiple %516, 8 : i32
    %518 = arith.index_cast %517 : i32 to index
    %c0_139 = arith.constant 0 : index
    %519 = vector.load %arg11[%518, %c0_139] : memref<64x512xf32, #tpu.memory_space<vmem>>, vector<8x512xf32>
    %cst_140 = arith.constant dense<0.000000e+00> : vector<8x512xf32>
    %520 = tpu.matmul %513, %282, %cst_140 {dimension_numbers = #tpu.dot_dimension_numbers<[1], [0], [0], [1], [0, 0, 1, 1], [], []>} : vector<8x128xf32>, vector<128x512xf32>, vector<8x512xf32> -> vector<8x512xf32>
    %521 = arith.addf %519, %520 : vector<8x512xf32>
    %522 = vector.extract_strided_slice %521 {offsets = [0, 0], sizes = [8, 128], strides = [1, 1]} : vector<8x512xf32> to vector<8x128xf32>
    %523 = arith.negf %522 : vector<8x128xf32>
    %524 = math.exp %523 : vector<8x128xf32>
    %cst_141 = arith.constant 1.000000e+00 : f32
    %525 = vector.broadcast %cst_141 : f32 to vector<8x128xf32>
    %526 = arith.addf %525, %524 : vector<8x128xf32>
    %527 = arith.divf %525, %526 : vector<8x128xf32>
    %528 = vector.extract_strided_slice %521 {offsets = [0, 128], sizes = [8, 128], strides = [1, 1]} : vector<8x512xf32> to vector<8x128xf32>
    %529 = arith.negf %528 : vector<8x128xf32>
    %530 = math.exp %529 : vector<8x128xf32>
    %cst_142 = arith.constant 1.000000e+00 : f32
    %531 = vector.broadcast %cst_142 : f32 to vector<8x128xf32>
    %532 = arith.addf %531, %530 : vector<8x128xf32>
    %533 = arith.divf %531, %532 : vector<8x128xf32>
    %534 = vector.extract_strided_slice %521 {offsets = [0, 256], sizes = [8, 128], strides = [1, 1]} : vector<8x512xf32> to vector<8x128xf32>
    %535 = math.tanh %534 : vector<8x128xf32>
    %536 = vector.extract_strided_slice %521 {offsets = [0, 384], sizes = [8, 128], strides = [1, 1]} : vector<8x512xf32> to vector<8x128xf32>
    %537 = arith.negf %536 : vector<8x128xf32>
    %538 = math.exp %537 : vector<8x128xf32>
    %cst_143 = arith.constant 1.000000e+00 : f32
    %539 = vector.broadcast %cst_143 : f32 to vector<8x128xf32>
    %540 = arith.addf %539, %538 : vector<8x128xf32>
    %541 = arith.divf %539, %540 : vector<8x128xf32>
    %542 = arith.mulf %533, %511 : vector<8x128xf32>
    %543 = arith.mulf %527, %535 : vector<8x128xf32>
    %544 = arith.addf %542, %543 : vector<8x128xf32>
    %545 = math.tanh %544 : vector<8x128xf32>
    %546 = arith.mulf %541, %545 : vector<8x128xf32>
    %547 = arith.index_cast %517 : i32 to index
    %c0_144 = arith.constant 0 : index
    %548 = vector.load %arg12[%547, %c0_144] : memref<64x128xf32, #tpu.memory_space<vmem>>, vector<8x128xf32>
    tpu.vector_store %arg12[%547, %c0_144], %546 {strides = array<i32>} : memref<64x128xf32, #tpu.memory_space<vmem>>, vector<8x128xf32>,
    %c8_i32_145 = arith.constant 8 : i32
    %c0_146 = arith.constant 0 : index
    %c0_147 = arith.constant 0 : index
    %549 = vector.load %arg8[%c0_146, %c0_147] : memref<1024x128xf32, #tpu.memory_space<vmem>>, vector<1024x128xf32>
    %cst_148 = arith.constant 0.000000e+00 : f32
    %550 = vector.broadcast %cst_148 : f32 to vector<8x128xf32>
    %c0_149 = arith.constant 0 : index
    %c0_150 = arith.constant 0 : index
    %551 = vector.load %arg12[%c0_149, %c0_150] : memref<64x128xf32, #tpu.memory_space<vmem>>, vector<8x128xf32>
    %552 = vector.extract_strided_slice %549 {offsets = [0, 0], sizes = [128, 128], strides = [1, 1]} : vector<1024x128xf32> to vector<128x128xf32>
    %cst_151 = arith.constant dense<0.000000e+00> : vector<8x128xf32>
    %553 = tpu.matmul %551, %552, %cst_151 {dimension_numbers = #tpu.dot_dimension_numbers<[1], [0], [0], [1], [0, 0, 1, 1], [], []>} : vector<8x128xf32>, vector<128x128xf32>, vector<8x128xf32> -> vector<8x128xf32>
    %554 = arith.addf %550, %553 : vector<8x128xf32>
    %c8 = arith.constant 8 : index
    %c0_152 = arith.constant 0 : index
    %555 = vector.load %arg12[%c8, %c0_152] : memref<64x128xf32, #tpu.memory_space<vmem>>, vector<8x128xf32>
    %556 = vector.extract_strided_slice %549 {offsets = [128, 0], sizes = [128, 128], strides = [1, 1]} : vector<1024x128xf32> to vector<128x128xf32>
    %cst_153 = arith.constant dense<0.000000e+00> : vector<8x128xf32>
    %557 = tpu.matmul %555, %556, %cst_153 {dimension_numbers = #tpu.dot_dimension_numbers<[1], [0], [0], [1], [0, 0, 1, 1], [], []>} : vector<8x128xf32>, vector<128x128xf32>, vector<8x128xf32> -> vector<8x128xf32>
    %558 = arith.addf %554, %557 : vector<8x128xf32>
    %c16 = arith.constant 16 : index
    %c0_154 = arith.constant 0 : index
    %559 = vector.load %arg12[%c16, %c0_154] : memref<64x128xf32, #tpu.memory_space<vmem>>, vector<8x128xf32>
    %560 = vector.extract_strided_slice %549 {offsets = [256, 0], sizes = [128, 128], strides = [1, 1]} : vector<1024x128xf32> to vector<128x128xf32>
    %cst_155 = arith.constant dense<0.000000e+00> : vector<8x128xf32>
    %561 = tpu.matmul %559, %560, %cst_155 {dimension_numbers = #tpu.dot_dimension_numbers<[1], [0], [0], [1], [0, 0, 1, 1], [], []>} : vector<8x128xf32>, vector<128x128xf32>, vector<8x128xf32> -> vector<8x128xf32>
    %562 = arith.addf %558, %561 : vector<8x128xf32>
    %c24 = arith.constant 24 : index
    %c0_156 = arith.constant 0 : index
    %563 = vector.load %arg12[%c24, %c0_156] : memref<64x128xf32, #tpu.memory_space<vmem>>, vector<8x128xf32>
    %564 = vector.extract_strided_slice %549 {offsets = [384, 0], sizes = [128, 128], strides = [1, 1]} : vector<1024x128xf32> to vector<128x128xf32>
    %cst_157 = arith.constant dense<0.000000e+00> : vector<8x128xf32>
    %565 = tpu.matmul %563, %564, %cst_157 {dimension_numbers = #tpu.dot_dimension_numbers<[1], [0], [0], [1], [0, 0, 1, 1], [], []>} : vector<8x128xf32>, vector<128x128xf32>, vector<8x128xf32> -> vector<8x128xf32>
    %566 = arith.addf %562, %565 : vector<8x128xf32>
    %c32 = arith.constant 32 : index
    %c0_158 = arith.constant 0 : index
    %567 = vector.load %arg12[%c32, %c0_158] : memref<64x128xf32, #tpu.memory_space<vmem>>, vector<8x128xf32>
    %568 = vector.extract_strided_slice %549 {offsets = [512, 0], sizes = [128, 128], strides = [1, 1]} : vector<1024x128xf32> to vector<128x128xf32>
    %cst_159 = arith.constant dense<0.000000e+00> : vector<8x128xf32>
    %569 = tpu.matmul %567, %568, %cst_159 {dimension_numbers = #tpu.dot_dimension_numbers<[1], [0], [0], [1], [0, 0, 1, 1], [], []>} : vector<8x128xf32>, vector<128x128xf32>, vector<8x128xf32> -> vector<8x128xf32>
    %570 = arith.addf %566, %569 : vector<8x128xf32>
    %c40 = arith.constant 40 : index
    %c0_160 = arith.constant 0 : index
    %571 = vector.load %arg12[%c40, %c0_160] : memref<64x128xf32, #tpu.memory_space<vmem>>, vector<8x128xf32>
    %572 = vector.extract_strided_slice %549 {offsets = [640, 0], sizes = [128, 128], strides = [1, 1]} : vector<1024x128xf32> to vector<128x128xf32>
    %cst_161 = arith.constant dense<0.000000e+00> : vector<8x128xf32>
    %573 = tpu.matmul %571, %572, %cst_161 {dimension_numbers = #tpu.dot_dimension_numbers<[1], [0], [0], [1], [0, 0, 1, 1], [], []>} : vector<8x128xf32>, vector<128x128xf32>, vector<8x128xf32> -> vector<8x128xf32>
    %574 = arith.addf %570, %573 : vector<8x128xf32>
    %c48 = arith.constant 48 : index
    %c0_162 = arith.constant 0 : index
    %575 = vector.load %arg12[%c48, %c0_162] : memref<64x128xf32, #tpu.memory_space<vmem>>, vector<8x128xf32>
    %576 = vector.extract_strided_slice %549 {offsets = [768, 0], sizes = [128, 128], strides = [1, 1]} : vector<1024x128xf32> to vector<128x128xf32>
    %cst_163 = arith.constant dense<0.000000e+00> : vector<8x128xf32>
    %577 = tpu.matmul %575, %576, %cst_163 {dimension_numbers = #tpu.dot_dimension_numbers<[1], [0], [0], [1], [0, 0, 1, 1], [], []>} : vector<8x128xf32>, vector<128x128xf32>, vector<8x128xf32> -> vector<8x128xf32>
    %578 = arith.addf %574, %577 : vector<8x128xf32>
    %c56 = arith.constant 56 : index
    %c0_164 = arith.constant 0 : index
    %579 = vector.load %arg12[%c56, %c0_164] : memref<64x128xf32, #tpu.memory_space<vmem>>, vector<8x128xf32>
    %580 = vector.extract_strided_slice %549 {offsets = [896, 0], sizes = [128, 128], strides = [1, 1]} : vector<1024x128xf32> to vector<128x128xf32>
    %cst_165 = arith.constant dense<0.000000e+00> : vector<8x128xf32>
    %581 = tpu.matmul %579, %580, %cst_165 {dimension_numbers = #tpu.dot_dimension_numbers<[1], [0], [0], [1], [0, 0, 1, 1], [], []>} : vector<8x128xf32>, vector<128x128xf32>, vector<8x128xf32> -> vector<8x128xf32>
    %582 = arith.addf %578, %581 : vector<8x128xf32>
    %c0_166 = arith.constant 0 : index
    %c0_167 = arith.constant 0 : index
    %583 = vector.load %arg9[%c0_166, %c0_167] : memref<1x128xf32, #tpu.memory_space<vmem>>, vector<1x128xf32>
    %584 = vector.broadcast %583 : vector<1x128xf32> to vector<8x128xf32>
    %585 = arith.addf %582, %584 : vector<8x128xf32>
    %c0_168 = arith.constant 0 : index
    %c0_169 = arith.constant 0 : index
    %586 = vector.load %arg10[%c0_168, %c0_169] : memref<8x128xf32, #tpu.memory_space<vmem>>, vector<8x128xf32>
    tpu.vector_store %arg10[%c0_168, %c0_169], %585 {strides = array<i32>} : memref<8x128xf32, #tpu.memory_space<vmem>>, vector<8x128xf32>,
    return
  }
  func.func @transform_0(%arg0: i32) -> (i32, i32, i32) {
    %c0_i32 = arith.constant 0 : i32
    %c0_i32_0 = arith.constant 0 : i32
    %c0_i32_1 = arith.constant 0 : i32
    return %arg0, %c0_i32, %c0_i32_0 : i32, i32, i32
  }
  func.func @transform_1(%arg0: i32) -> (i32, i32) {
    %c0_i32 = arith.constant 0 : i32
    %c0_i32_0 = arith.constant 0 : i32
    %c0_i32_1 = arith.constant 0 : i32
    return %c0_i32, %c0_i32_0 : i32, i32
  }
  func.func @transform_2(%arg0: i32) -> (i32, i32) {
    %c0_i32 = arith.constant 0 : i32
    %c0_i32_0 = arith.constant 0 : i32
    %c0_i32_1 = arith.constant 0 : i32
    return %c0_i32, %c0_i32_0 : i32, i32
  }
  func.func @transform_3(%arg0: i32) -> (i32, i32) {
    %c0_i32 = arith.constant 0 : i32
    %c0_i32_0 = arith.constant 0 : i32
    %c0_i32_1 = arith.constant 0 : i32
    return %c0_i32, %c0_i32_0 : i32, i32
  }
  func.func @transform_4(%arg0: i32) -> (i32, i32) {
    %c0_i32 = arith.constant 0 : i32
    %c0_i32_0 = arith.constant 0 : i32
    %c0_i32_1 = arith.constant 0 : i32
    return %c0_i32, %c0_i32_0 : i32, i32
  }
  func.func @transform_5(%arg0: i32) -> (i32, i32) {
    %c0_i32 = arith.constant 0 : i32
    %c0_i32_0 = arith.constant 0 : i32
    %c0_i32_1 = arith.constant 0 : i32
    return %c0_i32, %c0_i32_0 : i32, i32
  }
  func.func @transform_6(%arg0: i32) -> (i32, i32) {
    %c0_i32 = arith.constant 0 : i32
    %c0_i32_0 = arith.constant 0 : i32
    %c0_i32_1 = arith.constant 0 : i32
    return %c0_i32, %c0_i32_0 : i32, i32
  }
  func.func @transform_7(%arg0: i32) -> (i32, i32) {
    %c0_i32 = arith.constant 0 : i32
    %c0_i32_0 = arith.constant 0 : i32
    %c0_i32_1 = arith.constant 0 : i32
    return %c0_i32, %c0_i32_0 : i32, i32
  }
  func.func @transform_8(%arg0: i32) -> (i32, i32) {
    %c0_i32 = arith.constant 0 : i32
    %c0_i32_0 = arith.constant 0 : i32
    %c0_i32_1 = arith.constant 0 : i32
    return %c0_i32, %c0_i32_0 : i32, i32
  }
  func.func @transform_9(%arg0: i32) -> (i32, i32) {
    %c0_i32 = arith.constant 0 : i32
    %c0_i32_0 = arith.constant 0 : i32
    return %arg0, %c0_i32 : i32, i32
  }
}

</mosaic_0001>

<llo_original>
// kernel: rnn_lstm_forward.1
$region0: #{rnn_lstm_forward.1}
  #allocation0 [shape = 'u32[]', space=smem, size = 0x4, offset = 0x4, fixed_abs, tag = 'smem constant byte address 0x4 - core index']
  #allocation1 [shape = 'u32[144,128]{1,0:T(1,128)}', space=vmem, size = 0x12000, scoped, tag = 'internal scratch']
  #allocation2 [shape = 'f32[64,512]{1,0:T(8,128)}', space=vmem, size = 0x20000, scoped, tag = 'scratch operand']
  #allocation3 [shape = 'f32[64,128]{1,0:T(8,128)}', space=vmem, size = 0x8000, scoped, tag = 'scratch operand']
  %s0 = inlined_call_operand.vmem [shape: f32[1,64,128], index: 0, kind: input, shape index: {}]
  %s1 = inlined_call_operand.vmem [shape: f32[128,512], index: 1, kind: input, shape index: {}]
  %s2 = inlined_call_operand.vmem [shape: f32[128,512], index: 2, kind: input, shape index: {}]
  %s3 = inlined_call_operand.vmem [shape: f32[1,512], index: 3, kind: input, shape index: {}]
  %s4 = inlined_call_operand.vmem [shape: f32[128,512], index: 4, kind: input, shape index: {}]
  %s5 = inlined_call_operand.vmem [shape: f32[128,512], index: 5, kind: input, shape index: {}]
  %s6 = inlined_call_operand.vmem [shape: f32[1,512], index: 6, kind: input, shape index: {}]
  %s7 = inlined_call_operand.vmem [shape: f32[1024,128], index: 7, kind: input, shape index: {}]
  %s8 = inlined_call_operand.vmem [shape: f32[1,128], index: 8, kind: input, shape index: {}]
  %s9 = inlined_call_operand.vmem [shape: f32[8,128], index: 9, kind: output, shape index: {}]
  %s10 = sld [smem:[#allocation0]]
  $region46: #{rnn_lstm_forward.1} parent=0
    _
  %s12 = ssub.s32 1, %s10
  %s13 = scalar_select 0, %s12, %s10
  // Predicated region
  $region2: #{rnn_lstm_forward.1} parent=0 // pred_check
    _
  $region3: #{rnn_lstm_forward.1} parent=0 // pred_check_branch
    %15 = sbr.rel (0) target = $region5
  $region4: #{rnn_lstm_forward.1} parent=0 // pred_region
    _
  $region5: #{rnn_lstm_forward.1} parent=0 // pred_fallthru
    _
  // Predicated region
  $region6: #{rnn_lstm_forward.1} parent=0 // pred_check
    _
  $region7: #{rnn_lstm_forward.1} parent=0 // pred_check_branch
    %17 = sbr.rel (0) target = $region9
  $region8: #{rnn_lstm_forward.1} parent=0 // pred_region
    _
  $region9: #{rnn_lstm_forward.1} parent=0 // pred_fallthru
    _
  // Predicated region
  $region10: #{rnn_lstm_forward.1} parent=0 // pred_check
    _
  $region11: #{rnn_lstm_forward.1} parent=0 // pred_check_branch
    %19 = sbr.rel (0) target = $region13
  $region12: #{rnn_lstm_forward.1} parent=0 // pred_region
    _
  $region13: #{rnn_lstm_forward.1} parent=0 // pred_fallthru
    _
  // Predicated region
  $region14: #{rnn_lstm_forward.1} parent=0 // pred_check
    _
  $region15: #{rnn_lstm_forward.1} parent=0 // pred_check_branch
    %21 = sbr.rel (0) target = $region17
  $region16: #{rnn_lstm_forward.1} parent=0 // pred_region
    _
  $region17: #{rnn_lstm_forward.1} parent=0 // pred_fallthru
    _
  // Predicated region
  $region18: #{rnn_lstm_forward.1} parent=0 // pred_check
    _
  $region19: #{rnn_lstm_forward.1} parent=0 // pred_check_branch
    %23 = sbr.rel (0) target = $region21
  $region20: #{rnn_lstm_forward.1} parent=0 // pred_region
    _
  $region21: #{rnn_lstm_forward.1} parent=0 // pred_fallthru
    _
  // Predicated region
  $region22: #{rnn_lstm_forward.1} parent=0 // pred_check
    _
  $region23: #{rnn_lstm_forward.1} parent=0 // pred_check_branch
    %25 = sbr.rel (0) target = $region25
  $region24: #{rnn_lstm_forward.1} parent=0 // pred_region
    _
  $region25: #{rnn_lstm_forward.1} parent=0 // pred_fallthru
    _
  // Predicated region
  $region26: #{rnn_lstm_forward.1} parent=0 // pred_check
    _
  $region27: #{rnn_lstm_forward.1} parent=0 // pred_check_branch
    %27 = sbr.rel (0) target = $region29
  $region28: #{rnn_lstm_forward.1} parent=0 // pred_region
    _
  $region29: #{rnn_lstm_forward.1} parent=0 // pred_fallthru
    _
  // Predicated region
  $region30: #{rnn_lstm_forward.1} parent=0 // pred_check
    _
  $region31: #{rnn_lstm_forward.1} parent=0 // pred_check_branch
    %29 = sbr.rel (0) target = $region33
  $region32: #{rnn_lstm_forward.1} parent=0 // pred_region
    _
  $region33: #{rnn_lstm_forward.1} parent=0 // pred_fallthru
    _
  // Predicated region
  $region34: #{rnn_lstm_forward.1} parent=0 // pred_check
    _
  $region35: #{rnn_lstm_forward.1} parent=0 // pred_check_branch
    %31 = sbr.rel (0) target = $region37
  $region36: #{rnn_lstm_forward.1} parent=0 // pred_region
    _
  $region37: #{rnn_lstm_forward.1} parent=0 // pred_fallthru
    _
  %v32 = vld [vmem:[%s0] sm:$0xff]
  %v33 = vld [vmem:[%s0 + $0x8] sm:$0xff]
  %v34 = vld [vmem:[%s0 + $0x10] sm:$0xff]
  %v35 = vld [vmem:[%s0 + $0x18] sm:$0xff]
  %v36 = vld [vmem:[%s0 + $0x20] sm:$0xff]
  %v37 = vld [vmem:[%s0 + $0x28] sm:$0xff]
  %v38 = vld [vmem:[%s0 + $0x30] sm:$0xff]
  %v39 = vld [vmem:[%s0 + $0x38] sm:$0xff]
  %v40 = vld [vmem:[%s1] sm:$0xff]
  %v41 = vld [vmem:[%s1 + $0x8] sm:$0xff]
  %v42 = vld [vmem:[%s1 + $0x10] sm:$0xff]
  %v43 = vld [vmem:[%s1 + $0x18] sm:$0xff]
  %v44 = vld [vmem:[%s1 + $0x20] sm:$0xff]
  %v45 = vld [vmem:[%s1 + $0x28] sm:$0xff]
  %v46 = vld [vmem:[%s1 + $0x30] sm:$0xff]
  %v47 = vld [vmem:[%s1 + $0x38] sm:$0xff]
  %v48 = vld [vmem:[%s1 + $0x40] sm:$0xff]
  %v49 = vld [vmem:[%s1 + $0x48] sm:$0xff]
  %v50 = vld [vmem:[%s1 + $0x50] sm:$0xff]
  %v51 = vld [vmem:[%s1 + $0x58] sm:$0xff]
  %v52 = vld [vmem:[%s1 + $0x60] sm:$0xff]
  %v53 = vld [vmem:[%s1 + $0x68] sm:$0xff]
  %v54 = vld [vmem:[%s1 + $0x70] sm:$0xff]
  %v55 = vld [vmem:[%s1 + $0x78] sm:$0xff]
  %v56 = vld [vmem:[%s1 + $0x80] sm:$0xff]
  %v57 = vld [vmem:[%s1 + $0x88] sm:$0xff]
  %v58 = vld [vmem:[%s1 + $0x90] sm:$0xff]
  %v59 = vld [vmem:[%s1 + $0x98] sm:$0xff]
  %v60 = vld [vmem:[%s1 + $0xa0] sm:$0xff]
  %v61 = vld [vmem:[%s1 + $0xa8] sm:$0xff]
  %v62 = vld [vmem:[%s1 + $0xb0] sm:$0xff]
  %v63 = vld [vmem:[%s1 + $0xb8] sm:$0xff]
  %v64 = vld [vmem:[%s1 + $0xc0] sm:$0xff]
  %v65 = vld [vmem:[%s1 + $0xc8] sm:$0xff]
  %v66 = vld [vmem:[%s1 + $0xd0] sm:$0xff]
  %v67 = vld [vmem:[%s1 + $0xd8] sm:$0xff]
  %v68 = vld [vmem:[%s1 + $0xe0] sm:$0xff]
  %v69 = vld [vmem:[%s1 + $0xe8] sm:$0xff]
  %v70 = vld [vmem:[%s1 + $0xf0] sm:$0xff]
  %v71 = vld [vmem:[%s1 + $0xf8] sm:$0xff]
  %v72 = vld [vmem:[%s1 + $0x100] sm:$0xff]
  %v73 = vld [vmem:[%s1 + $0x108] sm:$0xff]
  %v74 = vld [vmem:[%s1 + $0x110] sm:$0xff]
  %v75 = vld [vmem:[%s1 + $0x118] sm:$0xff]
  %v76 = vld [vmem:[%s1 + $0x120] sm:$0xff]
  %v77 = vld [vmem:[%s1 + $0x128] sm:$0xff]
  %v78 = vld [vmem:[%s1 + $0x130] sm:$0xff]
  %v79 = vld [vmem:[%s1 + $0x138] sm:$0xff]
  %v80 = vld [vmem:[%s1 + $0x140] sm:$0xff]
  %v81 = vld [vmem:[%s1 + $0x148] sm:$0xff]
  %v82 = vld [vmem:[%s1 + $0x150] sm:$0xff]
  %v83 = vld [vmem:[%s1 + $0x158] sm:$0xff]
  %v84 = vld [vmem:[%s1 + $0x160] sm:$0xff]
  %v85 = vld [vmem:[%s1 + $0x168] sm:$0xff]
  %v86 = vld [vmem:[%s1 + $0x170] sm:$0xff]
  %v87 = vld [vmem:[%s1 + $0x178] sm:$0xff]
  %v88 = vld [vmem:[%s1 + $0x180] sm:$0xff]
  %v89 = vld [vmem:[%s1 + $0x188] sm:$0xff]
  %v90 = vld [vmem:[%s1 + $0x190] sm:$0xff]
  %v91 = vld [vmem:[%s1 + $0x198] sm:$0xff]
  %v92 = vld [vmem:[%s1 + $0x1a0] sm:$0xff]
  %v93 = vld [vmem:[%s1 + $0x1a8] sm:$0xff]
  %v94 = vld [vmem:[%s1 + $0x1b0] sm:$0xff]
  %v95 = vld [vmem:[%s1 + $0x1b8] sm:$0xff]
  %v96 = vld [vmem:[%s1 + $0x1c0] sm:$0xff]
  %v97 = vld [vmem:[%s1 + $0x1c8] sm:$0xff]
  %v98 = vld [vmem:[%s1 + $0x1d0] sm:$0xff]
  %v99 = vld [vmem:[%s1 + $0x1d8] sm:$0xff]
  %v100 = vld [vmem:[%s1 + $0x1e0] sm:$0xff]
  %v101 = vld [vmem:[%s1 + $0x1e8] sm:$0xff]
  %v102 = vld [vmem:[%s1 + $0x1f0] sm:$0xff]
  %v103 = vld [vmem:[%s1 + $0x1f8] sm:$0xff]
  %v104 = vld [vmem:[%s3] sm:$0xf]
  %v106 = vlaneseq
  %v107 = vshrl.u32 %v106, 7
  %v108 = vsub.s32 0, %v107
  %v109 = vrot.slane %v104, %v108
  %v110 = vlaneseq
  %v111 = vshrl.u32 %v110, 7
  %v112 = vsub.s32 1, %v111
  %v113 = vrot.slane %v104, %v112
  %v114 = vlaneseq
  %v115 = vshrl.u32 %v114, 7
  %v116 = vsub.s32 2, %v115
  %v117 = vrot.slane %v104, %v116
  %v118 = vlaneseq
  %v119 = vshrl.u32 %v118, 7
  %v120 = vsub.s32 3, %v119
  %v121 = vrot.slane %v104, %v120
  %126 = vmatprep.subr.mxu0 %v41
  %127 = vmatpush1.msra.mxu0 %v40
  %128 = vmatprep.subr.mxu0 %v45
  %129 = vmatpush1.msra.mxu0 %v44
  %130 = vmatprep.subr.mxu0 %v49
  %131 = vmatpush1.msra.mxu0 %v48
  %132 = vmatprep.subr.mxu0 %v53
  %133 = vmatpush1.msra.mxu0 %v52
  %134 = vmatprep.subr.mxu0 %v57
  %135 = vmatpush1.msra.mxu0 %v56
  %136 = vmatprep.subr.mxu0 %v61
  %137 = vmatpush1.msra.mxu0 %v60
  %138 = vmatprep.subr.mxu0 %v65
  %139 = vmatpush1.msra.mxu0 %v64
  %140 = vmatprep.subr.mxu0 %v69
  %141 = vmatpush1.msra.mxu0 %v68
  %142 = vmatprep.subr.mxu0 %v73
  %143 = vmatpush1.msra.mxu0 %v72
  %144 = vmatprep.subr.mxu0 %v77
  %145 = vmatpush1.msra.mxu0 %v76
  %146 = vmatprep.subr.mxu0 %v81
  %147 = vmatpush1.msra.mxu0 %v80
  %148 = vmatprep.subr.mxu0 %v85
  %149 = vmatpush1.msra.mxu0 %v84
  %150 = vmatprep.subr.mxu0 %v89
  %151 = vmatpush1.msra.mxu0 %v88
  %152 = vmatprep.subr.mxu0 %v93
  %153 = vmatpush1.msra.mxu0 %v92
  %154 = vmatprep.subr.mxu0 %v97
  %155 = vmatpush1.msra.mxu0 %v96
  %156 = vmatprep.subr.mxu0 %v101
  %157 = vmatpush1.msra.mxu0 %v100
  %158 = vmatprep.subr.mxu0 0.0
  %159 = vmatpush1.msra.mxu0 0.0
  %160 = vmatprep.subr.mxu0 0.0
  %161 = vmatpush1.msra.mxu0 0.0
  %162 = vmatprep.subr.mxu0 0.0
  %163 = vmatpush1.msra.mxu0 0.0
  %164 = vmatprep.subr.mxu0 0.0
  %165 = vmatpush1.msra.mxu0 0.0
  %166 = vmatprep.subr.mxu0 0.0
  %167 = vmatpush1.msra.mxu0 0.0
  %168 = vmatprep.subr.mxu0 0.0
  %169 = vmatpush1.msra.mxu0 0.0
  %170 = vmatprep.subr.mxu0 0.0
  %171 = vmatpush1.msra.mxu0 0.0
  %172 = vmatprep.subr.mxu0 0.0
  %173 = vmatpush1.msra.mxu0 0.0
  %174 = vmatprep.subr.mxu0 0.0
  %175 = vmatpush1.msra.mxu0 0.0
  %176 = vmatprep.subr.mxu0 0.0
  %177 = vmatpush1.msra.mxu0 0.0
  %178 = vmatprep.subr.mxu0 0.0
  %179 = vmatpush1.msra.mxu0 0.0
  %180 = vmatprep.subr.mxu0 0.0
  %181 = vmatpush1.msra.mxu0 0.0
  %182 = vmatprep.subr.mxu0 0.0
  %183 = vmatpush1.msra.mxu0 0.0
  %184 = vmatprep.subr.mxu0 0.0
  %185 = vmatpush1.msra.mxu0 0.0
  %186 = vmatprep.subr.mxu0 0.0
  %187 = vmatpush1.msra.mxu0 0.0
  %188 = vmatprep.subr.mxu0 0.0
  %189 = vmatpush1.msra.mxu0 0.0
  %190 = vmatprep.mubr.f32.mxu0 0.0
  %191 = vmatmul.mubr.f32.gmra.mrb[0].mxu0 %v32
  %v192 = vpop.f32.mrb[0].mxu0
  %v193 = vadd.f32 %v109, %v192
  %v194 = vpop.f32.mrb[0].mxu0
  %v195 = vadd.f32 %v113, %v194
  %196 = vmatprep.mubr.f32.mxu0 0.0
  %197 = vmatmul.mubr.f32.gmra.mrb[0].mxu0 %v33
  %v198 = vpop.f32.mrb[0].mxu0
  %v199 = vadd.f32 %v109, %v198
  %v200 = vpop.f32.mrb[0].mxu0
  %v201 = vadd.f32 %v113, %v200
  %202 = vmatprep.mubr.f32.mxu0 0.0
  %203 = vmatmul.mubr.f32.gmra.mrb[0].mxu0 %v34
  %v204 = vpop.f32.mrb[0].mxu0
  %v205 = vadd.f32 %v109, %v204
  %v206 = vpop.f32.mrb[0].mxu0
  %v207 = vadd.f32 %v113, %v206
  %208 = vmatprep.mubr.f32.mxu0 0.0
  %209 = vmatmul.mubr.f32.gmra.mrb[0].mxu0 %v35
  %v210 = vpop.f32.mrb[0].mxu0
  %v211 = vadd.f32 %v109, %v210
  %v212 = vpop.f32.mrb[0].mxu0
  %v213 = vadd.f32 %v113, %v212
  %214 = vmatprep.mubr.f32.mxu0 0.0
  %215 = vmatmul.mubr.f32.gmra.mrb[0].mxu0 %v36
  %v216 = vpop.f32.mrb[0].mxu0
  %v217 = vadd.f32 %v109, %v216
  %v218 = vpop.f32.mrb[0].mxu0
  %v219 = vadd.f32 %v113, %v218
  %220 = vmatprep.mubr.f32.mxu0 0.0
  %221 = vmatmul.mubr.f32.gmra.mrb[0].mxu0 %v37
  %v222 = vpop.f32.mrb[0].mxu0
  %v223 = vadd.f32 %v109, %v222
  %v224 = vpop.f32.mrb[0].mxu0
  %v225 = vadd.f32 %v113, %v224
  %226 = vmatprep.mubr.f32.mxu0 0.0
  %227 = vmatmul.mubr.f32.gmra.mrb[0].mxu0 %v38
  %v228 = vpop.f32.mrb[0].mxu0
  %v229 = vadd.f32 %v109, %v228
  %v230 = vpop.f32.mrb[0].mxu0
  %v231 = vadd.f32 %v113, %v230
  %232 = vmatprep.mubr.f32.mxu0 0.0
  %233 = vmatmul.mubr.f32.gmra.mrb[0].mxu0 %v39
  %v234 = vpop.f32.mrb[0].mxu0
  %v235 = vadd.f32 %v109, %v234
  %v236 = vpop.f32.mrb[0].mxu0
  %v237 = vadd.f32 %v113, %v236
  %238 = vdwg.mxu0
  %239 = vmatprep.subr.mxu0 %v43
  %240 = vmatpush1.msra.mxu0 %v42
  %241 = vmatprep.subr.mxu0 %v47
  %242 = vmatpush1.msra.mxu0 %v46
  %243 = vmatprep.subr.mxu0 %v51
  %244 = vmatpush1.msra.mxu0 %v50
  %245 = vmatprep.subr.mxu0 %v55
  %246 = vmatpush1.msra.mxu0 %v54
  %247 = vmatprep.subr.mxu0 %v59
  %248 = vmatpush1.msra.mxu0 %v58
  %249 = vmatprep.subr.mxu0 %v63
  %250 = vmatpush1.msra.mxu0 %v62
  %251 = vmatprep.subr.mxu0 %v67
  %252 = vmatpush1.msra.mxu0 %v66
  %253 = vmatprep.subr.mxu0 %v71
  %254 = vmatpush1.msra.mxu0 %v70
  %255 = vmatprep.subr.mxu0 %v75
  %256 = vmatpush1.msra.mxu0 %v74
  %257 = vmatprep.subr.mxu0 %v79
  %258 = vmatpush1.msra.mxu0 %v78
  %259 = vmatprep.subr.mxu0 %v83
  %260 = vmatpush1.msra.mxu0 %v82
  %261 = vmatprep.subr.mxu0 %v87
  %262 = vmatpush1.msra.mxu0 %v86
  %263 = vmatprep.subr.mxu0 %v91
  %264 = vmatpush1.msra.mxu0 %v90
  %265 = vmatprep.subr.mxu0 %v95
  %266 = vmatpush1.msra.mxu0 %v94
  %267 = vmatprep.subr.mxu0 %v99
  %268 = vmatpush1.msra.mxu0 %v98
  %269 = vmatprep.subr.mxu0 %v103
  %270 = vmatpush1.msra.mxu0 %v102
  %271 = vmatprep.subr.mxu0 0.0
  %272 = vmatpush1.msra.mxu0 0.0
  %273 = vmatprep.subr.mxu0 0.0
  %274 = vmatpush1.msra.mxu0 0.0
  %275 = vmatprep.subr.mxu0 0.0
  %276 = vmatpush1.msra.mxu0 0.0
  %277 = vmatprep.subr.mxu0 0.0
  %278 = vmatpush1.msra.mxu0 0.0
  %279 = vmatprep.subr.mxu0 0.0
  %280 = vmatpush1.msra.mxu0 0.0
  %281 = vmatprep.subr.mxu0 0.0
  %282 = vmatpush1.msra.mxu0 0.0
  %283 = vmatprep.subr.mxu0 0.0
  %284 = vmatpush1.msra.mxu0 0.0
  %285 = vmatprep.subr.mxu0 0.0
  %286 = vmatpush1.msra.mxu0 0.0
  %287 = vmatprep.subr.mxu0 0.0
  %288 = vmatpush1.msra.mxu0 0.0
  %289 = vmatprep.subr.mxu0 0.0
  %290 = vmatpush1.msra.mxu0 0.0
  %291 = vmatprep.subr.mxu0 0.0
  %292 = vmatpush1.msra.mxu0 0.0
  %293 = vmatprep.subr.mxu0 0.0
  %294 = vmatpush1.msra.mxu0 0.0
  %295 = vmatprep.subr.mxu0 0.0
  %296 = vmatpush1.msra.mxu0 0.0
  %297 = vmatprep.subr.mxu0 0.0
  %298 = vmatpush1.msra.mxu0 0.0
  %299 = vmatprep.subr.mxu0 0.0
  %300 = vmatpush1.msra.mxu0 0.0
  %301 = vmatprep.subr.mxu0 0.0
  %302 = vmatpush1.msra.mxu0 0.0
  %303 = vmatprep.mubr.f32.mxu0 0.0
  %304 = vmatmul.mubr.f32.gmra.mrb[0].mxu0 %v32
  %v305 = vpop.f32.mrb[0].mxu0
  %v306 = vadd.f32 %v117, %v305
  %v307 = vpop.f32.mrb[0].mxu0
  %v308 = vadd.f32 %v121, %v307
  %309 = vmatprep.mubr.f32.mxu0 0.0
  %310 = vmatmul.mubr.f32.gmra.mrb[0].mxu0 %v33
  %v311 = vpop.f32.mrb[0].mxu0
  %v312 = vadd.f32 %v117, %v311
  %v313 = vpop.f32.mrb[0].mxu0
  %v314 = vadd.f32 %v121, %v313
  %315 = vmatprep.mubr.f32.mxu0 0.0
  %316 = vmatmul.mubr.f32.gmra.mrb[0].mxu0 %v34
  %v317 = vpop.f32.mrb[0].mxu0
  %v318 = vadd.f32 %v117, %v317
  %v319 = vpop.f32.mrb[0].mxu0
  %v320 = vadd.f32 %v121, %v319
  %321 = vmatprep.mubr.f32.mxu0 0.0
  %322 = vmatmul.mubr.f32.gmra.mrb[0].mxu0 %v35
  %v323 = vpop.f32.mrb[0].mxu0
  %v324 = vadd.f32 %v117, %v323
  %v325 = vpop.f32.mrb[0].mxu0
  %v326 = vadd.f32 %v121, %v325
  %327 = vmatprep.mubr.f32.mxu0 0.0
  %328 = vmatmul.mubr.f32.gmra.mrb[0].mxu0 %v36
  %v329 = vpop.f32.mrb[0].mxu0
  %v330 = vadd.f32 %v117, %v329
  %v331 = vpop.f32.mrb[0].mxu0
  %v332 = vadd.f32 %v121, %v331
  %333 = vmatprep.mubr.f32.mxu0 0.0
  %334 = vmatmul.mubr.f32.gmra.mrb[0].mxu0 %v37
  %v335 = vpop.f32.mrb[0].mxu0
  %v336 = vadd.f32 %v117, %v335
  %v337 = vpop.f32.mrb[0].mxu0
  %v338 = vadd.f32 %v121, %v337
  %339 = vmatprep.mubr.f32.mxu0 0.0
  %340 = vmatmul.mubr.f32.gmra.mrb[0].mxu0 %v38
  %v341 = vpop.f32.mrb[0].mxu0
  %v342 = vadd.f32 %v117, %v341
  %v343 = vpop.f32.mrb[0].mxu0
  %v344 = vadd.f32 %v121, %v343
  %345 = vmatprep.mubr.f32.mxu0 0.0
  %346 = vmatmul.mubr.f32.gmra.mrb[0].mxu0 %v39
  %v347 = vpop.f32.mrb[0].mxu0
  %v348 = vadd.f32 %v117, %v347
  %v349 = vpop.f32.mrb[0].mxu0
  %v350 = vadd.f32 %v121, %v349
  %351 = vdwg.mxu0
  %352 = vst [vmem:[#allocation2] sm:$0xff] %v193
  %353 = vst [vmem:[#allocation2 + $0x8] sm:$0xff] %v195
  %354 = vst [vmem:[#allocation2 + $0x10] sm:$0xff] %v306
  %355 = vst [vmem:[#allocation2 + $0x18] sm:$0xff] %v308
  %356 = vst [vmem:[#allocation2 + $0x20] sm:$0xff] %v199
  %357 = vst [vmem:[#allocation2 + $0x28] sm:$0xff] %v201
  %358 = vst [vmem:[#allocation2 + $0x30] sm:$0xff] %v312
  %359 = vst [vmem:[#allocation2 + $0x38] sm:$0xff] %v314
  %360 = vst [vmem:[#allocation2 + $0x40] sm:$0xff] %v205
  %361 = vst [vmem:[#allocation2 + $0x48] sm:$0xff] %v207
  %362 = vst [vmem:[#allocation2 + $0x50] sm:$0xff] %v318
  %363 = vst [vmem:[#allocation2 + $0x58] sm:$0xff] %v320
  %364 = vst [vmem:[#allocation2 + $0x60] sm:$0xff] %v211
  %365 = vst [vmem:[#allocation2 + $0x68] sm:$0xff] %v213
  %366 = vst [vmem:[#allocation2 + $0x70] sm:$0xff] %v324
  %367 = vst [vmem:[#allocation2 + $0x78] sm:$0xff] %v326
  %368 = vst [vmem:[#allocation2 + $0x80] sm:$0xff] %v217
  %369 = vst [vmem:[#allocation2 + $0x88] sm:$0xff] %v219
  %370 = vst [vmem:[#allocation2 + $0x90] sm:$0xff] %v330
  %371 = vst [vmem:[#allocation2 + $0x98] sm:$0xff] %v332
  %372 = vst [vmem:[#allocation2 + $0xa0] sm:$0xff] %v223
  %373 = vst [vmem:[#allocation2 + $0xa8] sm:$0xff] %v225
  %374 = vst [vmem:[#allocation2 + $0xb0] sm:$0xff] %v336
  %375 = vst [vmem:[#allocation2 + $0xb8] sm:$0xff] %v338
  %376 = vst [vmem:[#allocation2 + $0xc0] sm:$0xff] %v229
  %377 = vst [vmem:[#allocation2 + $0xc8] sm:$0xff] %v231
  %378 = vst [vmem:[#allocation2 + $0xd0] sm:$0xff] %v342
  %379 = vst [vmem:[#allocation2 + $0xd8] sm:$0xff] %v344
  %380 = vst [vmem:[#allocation2 + $0xe0] sm:$0xff] %v235
  %381 = vst [vmem:[#allocation2 + $0xe8] sm:$0xff] %v237
  %382 = vst [vmem:[#allocation2 + $0xf0] sm:$0xff] %v348
  %383 = vst [vmem:[#allocation2 + $0xf8] sm:$0xff] %v350
  %v384 = vld [vmem:[%s2] sm:$0xff]
  %v385 = vld [vmem:[%s2 + $0x8] sm:$0xff]
  %v386 = vld [vmem:[%s2 + $0x10] sm:$0xff]
  %v387 = vld [vmem:[%s2 + $0x18] sm:$0xff]
  %v388 = vld [vmem:[%s2 + $0x20] sm:$0xff]
  %v389 = vld [vmem:[%s2 + $0x28] sm:$0xff]
  %v390 = vld [vmem:[%s2 + $0x30] sm:$0xff]
  %v391 = vld [vmem:[%s2 + $0x38] sm:$0xff]
  %v392 = vld [vmem:[%s2 + $0x40] sm:$0xff]
  %v393 = vld [vmem:[%s2 + $0x48] sm:$0xff]
  %v394 = vld [vmem:[%s2 + $0x50] sm:$0xff]
  %v395 = vld [vmem:[%s2 + $0x58] sm:$0xff]
  %v396 = vld [vmem:[%s2 + $0x60] sm:$0xff]
  %v397 = vld [vmem:[%s2 + $0x68] sm:$0xff]
  %v398 = vld [vmem:[%s2 + $0x70] sm:$0xff]
  %v399 = vld [vmem:[%s2 + $0x78] sm:$0xff]
  %v400 = vld [vmem:[%s2 + $0x80] sm:$0xff]
  %v401 = vld [vmem:[%s2 + $0x88] sm:$0xff]
  %v402 = vld [vmem:[%s2 + $0x90] sm:$0xff]
  %v403 = vld [vmem:[%s2 + $0x98] sm:$0xff]
  %v404 = vld [vmem:[%s2 + $0xa0] sm:$0xff]
  %v405 = vld [vmem:[%s2 + $0xa8] sm:$0xff]
  %v406 = vld [vmem:[%s2 + $0xb0] sm:$0xff]
  %v407 = vld [vmem:[%s2 + $0xb8] sm:$0xff]
  %v408 = vld [vmem:[%s2 + $0xc0] sm:$0xff]
  %v409 = vld [vmem:[%s2 + $0xc8] sm:$0xff]
  %v410 = vld [vmem:[%s2 + $0xd0] sm:$0xff]
  %v411 = vld [vmem:[%s2 + $0xd8] sm:$0xff]
  %v412 = vld [vmem:[%s2 + $0xe0] sm:$0xff]
  %v413 = vld [vmem:[%s2 + $0xe8] sm:$0xff]
  %v414 = vld [vmem:[%s2 + $0xf0] sm:$0xff]
  %v415 = vld [vmem:[%s2 + $0xf8] sm:$0xff]
  %v416 = vld [vmem:[%s2 + $0x100] sm:$0xff]
  %v417 = vld [vmem:[%s2 + $0x108] sm:$0xff]
  %v418 = vld [vmem:[%s2 + $0x110] sm:$0xff]
  %v419 = vld [vmem:[%s2 + $0x118] sm:$0xff]
  %v420 = vld [vmem:[%s2 + $0x120] sm:$0xff]
  %v421 = vld [vmem:[%s2 + $0x128] sm:$0xff]
  %v422 = vld [vmem:[%s2 + $0x130] sm:$0xff]
  %v423 = vld [vmem:[%s2 + $0x138] sm:$0xff]
  %v424 = vld [vmem:[%s2 + $0x140] sm:$0xff]
  %v425 = vld [vmem:[%s2 + $0x148] sm:$0xff]
  %v426 = vld [vmem:[%s2 + $0x150] sm:$0xff]
  %v427 = vld [vmem:[%s2 + $0x158] sm:$0xff]
  %v428 = vld [vmem:[%s2 + $0x160] sm:$0xff]
  %v429 = vld [vmem:[%s2 + $0x168] sm:$0xff]
  %v430 = vld [vmem:[%s2 + $0x170] sm:$0xff]
  %v431 = vld [vmem:[%s2 + $0x178] sm:$0xff]
  %v432 = vld [vmem:[%s2 + $0x180] sm:$0xff]
  %v433 = vld [vmem:[%s2 + $0x188] sm:$0xff]
  %v434 = vld [vmem:[%s2 + $0x190] sm:$0xff]
  %v435 = vld [vmem:[%s2 + $0x198] sm:$0xff]
  %v436 = vld [vmem:[%s2 + $0x1a0] sm:$0xff]
  %v437 = vld [vmem:[%s2 + $0x1a8] sm:$0xff]
  %v438 = vld [vmem:[%s2 + $0x1b0] sm:$0xff]
  %v439 = vld [vmem:[%s2 + $0x1b8] sm:$0xff]
  %v440 = vld [vmem:[%s2 + $0x1c0] sm:$0xff]
  %v441 = vld [vmem:[%s2 + $0x1c8] sm:$0xff]
  %v442 = vld [vmem:[%s2 + $0x1d0] sm:$0xff]
  %v443 = vld [vmem:[%s2 + $0x1d8] sm:$0xff]
  %v444 = vld [vmem:[%s2 + $0x1e0] sm:$0xff]
  %v445 = vld [vmem:[%s2 + $0x1e8] sm:$0xff]
  %v446 = vld [vmem:[%s2 + $0x1f0] sm:$0xff]
  %v447 = vld [vmem:[%s2 + $0x1f8] sm:$0xff]
  %s448 = smul.u32 0, 4
  %s449 = smul.addr %s448, 8
  %s450 = scalar_lea.vmem [#allocation2], %s449
  %v451 = vld [vmem:[%s450] sm:$0xff]
  %v452 = vld [vmem:[%s450 + $0x8] sm:$0xff]
  %v453 = vld [vmem:[%s450 + $0x10] sm:$0xff]
  %v454 = vld [vmem:[%s450 + $0x18] sm:$0xff]
  %455 = vmatprep.subr.mxu0 %v385
  %456 = vmatpush1.msra.mxu0 %v384
  %457 = vmatprep.subr.mxu0 %v389
  %458 = vmatpush1.msra.mxu0 %v388
  %459 = vmatprep.subr.mxu0 %v393
  %460 = vmatpush1.msra.mxu0 %v392
  %461 = vmatprep.subr.mxu0 %v397
  %462 = vmatpush1.msra.mxu0 %v396
  %463 = vmatprep.subr.mxu0 %v401
  %464 = vmatpush1.msra.mxu0 %v400
  %465 = vmatprep.subr.mxu0 %v405
  %466 = vmatpush1.msra.mxu0 %v404
  %467 = vmatprep.subr.mxu0 %v409
  %468 = vmatpush1.msra.mxu0 %v408
  %469 = vmatprep.subr.mxu0 %v413
  %470 = vmatpush1.msra.mxu0 %v412
  %471 = vmatprep.subr.mxu0 %v417
  %472 = vmatpush1.msra.mxu0 %v416
  %473 = vmatprep.subr.mxu0 %v421
  %474 = vmatpush1.msra.mxu0 %v420
  %475 = vmatprep.subr.mxu0 %v425
  %476 = vmatpush1.msra.mxu0 %v424
  %477 = vmatprep.subr.mxu0 %v429
  %478 = vmatpush1.msra.mxu0 %v428
  %479 = vmatprep.subr.mxu0 %v433
  %480 = vmatpush1.msra.mxu0 %v432
  %481 = vmatprep.subr.mxu0 %v437
  %482 = vmatpush1.msra.mxu0 %v436
  %483 = vmatprep.subr.mxu0 %v441
  %484 = vmatpush1.msra.mxu0 %v440
  %485 = vmatprep.subr.mxu0 %v445
  %486 = vmatpush1.msra.mxu0 %v444
  %487 = vmatprep.subr.mxu0 0.0
  %488 = vmatpush1.msra.mxu0 0.0
  %489 = vmatprep.subr.mxu0 0.0
  %490 = vmatpush1.msra.mxu0 0.0
  %491 = vmatprep.subr.mxu0 0.0
  %492 = vmatpush1.msra.mxu0 0.0
  %493 = vmatprep.subr.mxu0 0.0
  %494 = vmatpush1.msra.mxu0 0.0
  %495 = vmatprep.subr.mxu0 0.0
  %496 = vmatpush1.msra.mxu0 0.0
  %497 = vmatprep.subr.mxu0 0.0
  %498 = vmatpush1.msra.mxu0 0.0
  %499 = vmatprep.subr.mxu0 0.0
  %500 = vmatpush1.msra.mxu0 0.0
  %501 = vmatprep.subr.mxu0 0.0
  %502 = vmatpush1.msra.mxu0 0.0
  %503 = vmatprep.subr.mxu0 0.0
  %504 = vmatpush1.msra.mxu0 0.0
  %505 = vmatprep.subr.mxu0 0.0
  %506 = vmatpush1.msra.mxu0 0.0
  %507 = vmatprep.subr.mxu0 0.0
  %508 = vmatpush1.msra.mxu0 0.0
  %509 = vmatprep.subr.mxu0 0.0
  %510 = vmatpush1.msra.mxu0 0.0
  %511 = vmatprep.subr.mxu0 0.0
  %512 = vmatpush1.msra.mxu0 0.0
  %513 = vmatprep.subr.mxu0 0.0
  %514 = vmatpush1.msra.mxu0 0.0
  %515 = vmatprep.subr.mxu0 0.0
  %516 = vmatpush1.msra.mxu0 0.0
  %517 = vmatprep.subr.mxu0 0.0
  %518 = vmatpush1.msra.mxu0 0.0
  %519 = vmatprep.mubr.f32.mxu0 0.0
  %520 = vmatmul.mubr.f32.gmra.mrb[0].mxu0 0.0
  %v521 = vpop.f32.mrb[0].mxu0
  %v522 = vadd.f32 0.0, %v521
  %v523 = vpop.f32.mrb[0].mxu0
  %v524 = vadd.f32 0.0, %v523
  %525 = vdwg.mxu0
  %526 = vmatprep.subr.mxu0 %v387
  %527 = vmatpush1.msra.mxu0 %v386
  %528 = vmatprep.subr.mxu0 %v391
  %529 = vmatpush1.msra.mxu0 %v390
  %530 = vmatprep.subr.mxu0 %v395
  %531 = vmatpush1.msra.mxu0 %v394
  %532 = vmatprep.subr.mxu0 %v399
  %533 = vmatpush1.msra.mxu0 %v398
  %534 = vmatprep.subr.mxu0 %v403
  %535 = vmatpush1.msra.mxu0 %v402
  %536 = vmatprep.subr.mxu0 %v407
  %537 = vmatpush1.msra.mxu0 %v406
  %538 = vmatprep.subr.mxu0 %v411
  %539 = vmatpush1.msra.mxu0 %v410
  %540 = vmatprep.subr.mxu0 %v415
  %541 = vmatpush1.msra.mxu0 %v414
  %542 = vmatprep.subr.mxu0 %v419
  %543 = vmatpush1.msra.mxu0 %v418
  %544 = vmatprep.subr.mxu0 %v423
  %545 = vmatpush1.msra.mxu0 %v422
  %546 = vmatprep.subr.mxu0 %v427
  %547 = vmatpush1.msra.mxu0 %v426
  %548 = vmatprep.subr.mxu0 %v431
  %549 = vmatpush1.msra.mxu0 %v430
  %550 = vmatprep.subr.mxu0 %v435
  %551 = vmatpush1.msra.mxu0 %v434
  %552 = vmatprep.subr.mxu0 %v439
  %553 = vmatpush1.msra.mxu0 %v438
  %554 = vmatprep.subr.mxu0 %v443
  %555 = vmatpush1.msra.mxu0 %v442
  %556 = vmatprep.subr.mxu0 %v447
  %557 = vmatpush1.msra.mxu0 %v446
  %558 = vmatprep.subr.mxu0 0.0
  %559 = vmatpush1.msra.mxu0 0.0
  %560 = vmatprep.subr.mxu0 0.0
  %561 = vmatpush1.msra.mxu0 0.0
  %562 = vmatprep.subr.mxu0 0.0
  %563 = vmatpush1.msra.mxu0 0.0
  %564 = vmatprep.subr.mxu0 0.0
  %565 = vmatpush1.msra.mxu0 0.0
  %566 = vmatprep.subr.mxu0 0.0
  %567 = vmatpush1.msra.mxu0 0.0
  %568 = vmatprep.subr.mxu0 0.0
  %569 = vmatpush1.msra.mxu0 0.0
  %570 = vmatprep.subr.mxu0 0.0
  %571 = vmatpush1.msra.mxu0 0.0
  %572 = vmatprep.subr.mxu0 0.0
  %573 = vmatpush1.msra.mxu0 0.0
  %574 = vmatprep.subr.mxu0 0.0
  %575 = vmatpush1.msra.mxu0 0.0
  %576 = vmatprep.subr.mxu0 0.0
  %577 = vmatpush1.msra.mxu0 0.0
  %578 = vmatprep.subr.mxu0 0.0
  %579 = vmatpush1.msra.mxu0 0.0
  %580 = vmatprep.subr.mxu0 0.0
  %581 = vmatpush1.msra.mxu0 0.0
  %582 = vmatprep.subr.mxu0 0.0
  %583 = vmatpush1.msra.mxu0 0.0
  %584 = vmatprep.subr.mxu0 0.0
  %585 = vmatpush1.msra.mxu0 0.0
  %586 = vmatprep.subr.mxu0 0.0
  %587 = vmatpush1.msra.mxu0 0.0
  %588 = vmatprep.subr.mxu0 0.0
  %589 = vmatpush1.msra.mxu0 0.0
  %590 = vmatprep.mubr.f32.mxu0 0.0
  %591 = vmatmul.mubr.f32.gmra.mrb[0].mxu0 0.0
  %v592 = vpop.f32.mrb[0].mxu0
  %v593 = vadd.f32 0.0, %v592
  %v594 = vpop.f32.mrb[0].mxu0
  %v595 = vadd.f32 0.0, %v594
  %596 = vdwg.mxu0
  %v597 = vadd.f32 %v451, %v522
  %v598 = vadd.f32 %v452, %v524
  %v599 = vadd.f32 %v453, %v593
  %v600 = vadd.f32 %v454, %v595
  %v601 = vxor.u32 %v597, 2147483648
  %v602 = vmul.f32 %v601, 1.442695
  %v603 = vpow.pop %v602
  %v604 = vadd.f32 %v603, 1.0
  %v605 = vrcp.pop %v604
  %v606 = vmul.f32 1.0, %v605
  %v607 = vxor.u32 %v598, 2147483648
  %v608 = vmul.f32 %v607, 1.442695
  %v609 = vpow.pop %v608
  %v610 = vadd.f32 %v609, 1.0
  %v611 = vrcp.pop %v610
  %v612 = vmul.f32 1.0, %v611
  %v613 = vtanh.pop %v599
  %v614 = vxor.u32 %v600, 2147483648
  %v615 = vmul.f32 %v614, 1.442695
  %v616 = vpow.pop %v615
  %v617 = vadd.f32 %v616, 1.0
  %v618 = vrcp.pop %v617
  %v619 = vmul.f32 1.0, %v618
  %v620 = vmul.f32 %v612, 0.0
  %v621 = vmul.f32 %v606, %v613
  %v622 = vadd.f32 %v620, %v621
  %v623 = vtanh.pop %v622
  %v624 = vmul.f32 %v619, %v623
  %625 = vst [vmem:[#allocation3] sm:$0xff] %v624
  %s626 = smul.u32 1, 4
  %s627 = smul.addr %s626, 8
  %s628 = scalar_lea.vmem [#allocation2], %s627
  %v629 = vld [vmem:[%s628] sm:$0xff]
  %v630 = vld [vmem:[%s628 + $0x8] sm:$0xff]
  %v631 = vld [vmem:[%s628 + $0x10] sm:$0xff]
  %v632 = vld [vmem:[%s628 + $0x18] sm:$0xff]
  %633 = vmatprep.subr.mxu0 %v385
  %634 = vmatpush1.msra.mxu0 %v384
  %635 = vmatprep.subr.mxu0 %v389
  %636 = vmatpush1.msra.mxu0 %v388
  %637 = vmatprep.subr.mxu0 %v393
  %638 = vmatpush1.msra.mxu0 %v392
  %639 = vmatprep.subr.mxu0 %v397
  %640 = vmatpush1.msra.mxu0 %v396
  %641 = vmatprep.subr.mxu0 %v401
  %642 = vmatpush1.msra.mxu0 %v400
  %643 = vmatprep.subr.mxu0 %v405
  %644 = vmatpush1.msra.mxu0 %v404
  %645 = vmatprep.subr.mxu0 %v409
  %646 = vmatpush1.msra.mxu0 %v408
  %647 = vmatprep.subr.mxu0 %v413
  %648 = vmatpush1.msra.mxu0 %v412
  %649 = vmatprep.subr.mxu0 %v417
  %650 = vmatpush1.msra.mxu0 %v416
  %651 = vmatprep.subr.mxu0 %v421
  %652 = vmatpush1.msra.mxu0 %v420
  %653 = vmatprep.subr.mxu0 %v425
  %654 = vmatpush1.msra.mxu0 %v424
  %655 = vmatprep.subr.mxu0 %v429
  %656 = vmatpush1.msra.mxu0 %v428
  %657 = vmatprep.subr.mxu0 %v433
  %658 = vmatpush1.msra.mxu0 %v432
  %659 = vmatprep.subr.mxu0 %v437
  %660 = vmatpush1.msra.mxu0 %v436
  %661 = vmatprep.subr.mxu0 %v441
  %662 = vmatpush1.msra.mxu0 %v440
  %663 = vmatprep.subr.mxu0 %v445
  %664 = vmatpush1.msra.mxu0 %v444
  %665 = vmatprep.subr.mxu0 0.0
  %666 = vmatpush1.msra.mxu0 0.0
  %667 = vmatprep.subr.mxu0 0.0
  %668 = vmatpush1.msra.mxu0 0.0
  %669 = vmatprep.subr.mxu0 0.0
  %670 = vmatpush1.msra.mxu0 0.0
  %671 = vmatprep.subr.mxu0 0.0
  %672 = vmatpush1.msra.mxu0 0.0
  %673 = vmatprep.subr.mxu0 0.0
  %674 = vmatpush1.msra.mxu0 0.0
  %675 = vmatprep.subr.mxu0 0.0
  %676 = vmatpush1.msra.mxu0 0.0
  %677 = vmatprep.subr.mxu0 0.0
  %678 = vmatpush1.msra.mxu0 0.0
  %679 = vmatprep.subr.mxu0 0.0
  %680 = vmatpush1.msra.mxu0 0.0
  %681 = vmatprep.subr.mxu0 0.0
  %682 = vmatpush1.msra.mxu0 0.0
  %683 = vmatprep.subr.mxu0 0.0
  %684 = vmatpush1.msra.mxu0 0.0
  %685 = vmatprep.subr.mxu0 0.0
  %686 = vmatpush1.msra.mxu0 0.0
  %687 = vmatprep.subr.mxu0 0.0
  %688 = vmatpush1.msra.mxu0 0.0
  %689 = vmatprep.subr.mxu0 0.0
  %690 = vmatpush1.msra.mxu0 0.0
  %691 = vmatprep.subr.mxu0 0.0
  %692 = vmatpush1.msra.mxu0 0.0
  %693 = vmatprep.subr.mxu0 0.0
  %694 = vmatpush1.msra.mxu0 0.0
  %695 = vmatprep.subr.mxu0 0.0
  %696 = vmatpush1.msra.mxu0 0.0
  %697 = vmatprep.mubr.f32.mxu0 0.0
  %698 = vmatmul.mubr.f32.gmra.mrb[0].mxu0 %v624
  %v699 = vpop.f32.mrb[0].mxu0
  %v700 = vadd.f32 0.0, %v699
  %v701 = vpop.f32.mrb[0].mxu0
  %v702 = vadd.f32 0.0, %v701
  %703 = vdwg.mxu0
  %704 = vmatprep.subr.mxu0 %v387
  %705 = vmatpush1.msra.mxu0 %v386
  %706 = vmatprep.subr.mxu0 %v391
  %707 = vmatpush1.msra.mxu0 %v390
  %708 = vmatprep.subr.mxu0 %v395
  %709 = vmatpush1.msra.mxu0 %v394
  %710 = vmatprep.subr.mxu0 %v399
  %711 = vmatpush1.msra.mxu0 %v398
  %712 = vmatprep.subr.mxu0 %v403
  %713 = vmatpush1.msra.mxu0 %v402
  %714 = vmatprep.subr.mxu0 %v407
  %715 = vmatpush1.msra.mxu0 %v406
  %716 = vmatprep.subr.mxu0 %v411
  %717 = vmatpush1.msra.mxu0 %v410
  %718 = vmatprep.subr.mxu0 %v415
  %719 = vmatpush1.msra.mxu0 %v414
  %720 = vmatprep.subr.mxu0 %v419
  %721 = vmatpush1.msra.mxu0 %v418
  %722 = vmatprep.subr.mxu0 %v423
  %723 = vmatpush1.msra.mxu0 %v422
  %724 = vmatprep.subr.mxu0 %v427
  %725 = vmatpush1.msra.mxu0 %v426
  %726 = vmatprep.subr.mxu0 %v431
  %727 = vmatpush1.msra.mxu0 %v430
  %728 = vmatprep.subr.mxu0 %v435
  %729 = vmatpush1.msra.mxu0 %v434
  %730 = vmatprep.subr.mxu0 %v439
  %731 = vmatpush1.msra.mxu0 %v438
  %732 = vmatprep.subr.mxu0 %v443
  %733 = vmatpush1.msra.mxu0 %v442
  %734 = vmatprep.subr.mxu0 %v447
  %735 = vmatpush1.msra.mxu0 %v446
  %736 = vmatprep.subr.mxu0 0.0
  %737 = vmatpush1.msra.mxu0 0.0
  %738 = vmatprep.subr.mxu0 0.0
  %739 = vmatpush1.msra.mxu0 0.0
  %740 = vmatprep.subr.mxu0 0.0
  %741 = vmatpush1.msra.mxu0 0.0
  %742 = vmatprep.subr.mxu0 0.0
  %743 = vmatpush1.msra.mxu0 0.0
  %744 = vmatprep.subr.mxu0 0.0
  %745 = vmatpush1.msra.mxu0 0.0
  %746 = vmatprep.subr.mxu0 0.0
  %747 = vmatpush1.msra.mxu0 0.0
  %748 = vmatprep.subr.mxu0 0.0
  %749 = vmatpush1.msra.mxu0 0.0
  %750 = vmatprep.subr.mxu0 0.0
  %751 = vmatpush1.msra.mxu0 0.0
  %752 = vmatprep.subr.mxu0 0.0
  %753 = vmatpush1.msra.mxu0 0.0
  %754 = vmatprep.subr.mxu0 0.0
  %755 = vmatpush1.msra.mxu0 0.0
  %756 = vmatprep.subr.mxu0 0.0
  %757 = vmatpush1.msra.mxu0 0.0
  %758 = vmatprep.subr.mxu0 0.0
  %759 = vmatpush1.msra.mxu0 0.0
  %760 = vmatprep.subr.mxu0 0.0
  %761 = vmatpush1.msra.mxu0 0.0
  %762 = vmatprep.subr.mxu0 0.0
  %763 = vmatpush1.msra.mxu0 0.0
  %764 = vmatprep.subr.mxu0 0.0
  %765 = vmatpush1.msra.mxu0 0.0
  %766 = vmatprep.subr.mxu0 0.0
  %767 = vmatpush1.msra.mxu0 0.0
  %768 = vmatprep.mubr.f32.mxu0 0.0
  %769 = vmatmul.mubr.f32.gmra.mrb[0].mxu0 %v624
  %v770 = vpop.f32.mrb[0].mxu0
  %v771 = vadd.f32 0.0, %v770
  %v772 = vpop.f32.mrb[0].mxu0
  %v773 = vadd.f32 0.0, %v772
  %774 = vdwg.mxu0
  %v775 = vadd.f32 %v629, %v700
  %v776 = vadd.f32 %v630, %v702
  %v777 = vadd.f32 %v631, %v771
  %v778 = vadd.f32 %v632, %v773
  %v779 = vxor.u32 %v775, 2147483648
  %v780 = vmul.f32 %v779, 1.442695
  %v781 = vpow.pop %v780
  %v782 = vadd.f32 %v781, 1.0
  %v783 = vrcp.pop %v782
  %v784 = vmul.f32 1.0, %v783
  %v785 = vxor.u32 %v776, 2147483648
  %v786 = vmul.f32 %v785, 1.442695
  %v787 = vpow.pop %v786
  %v788 = vadd.f32 %v787, 1.0
  %v789 = vrcp.pop %v788
  %v790 = vmul.f32 1.0, %v789
  %v791 = vtanh.pop %v777
  %v792 = vxor.u32 %v778, 2147483648
  %v793 = vmul.f32 %v792, 1.442695
  %v794 = vpow.pop %v793
  %v795 = vadd.f32 %v794, 1.0
  %v796 = vrcp.pop %v795
  %v797 = vmul.f32 1.0, %v796
  %v798 = vmul.f32 %v790, %v622
  %v799 = vmul.f32 %v784, %v791
  %v800 = vadd.f32 %v798, %v799
  %v801 = vtanh.pop %v800
  %v802 = vmul.f32 %v797, %v801
  %s803 = scalar_lea.vmem [#allocation3], 8
  %804 = vst [vmem:[%s803] sm:$0xff] %v802
  %s805 = smul.u32 2, 4
  %s806 = smul.addr %s805, 8
  %s807 = scalar_lea.vmem [#allocation2], %s806
  %v808 = vld [vmem:[%s807] sm:$0xff]
  %v809 = vld [vmem:[%s807 + $0x8] sm:$0xff]
  %v810 = vld [vmem:[%s807 + $0x10] sm:$0xff]
  %v811 = vld [vmem:[%s807 + $0x18] sm:$0xff]
  %812 = vmatprep.subr.mxu0 %v385
  %813 = vmatpush1.msra.mxu0 %v384
  %814 = vmatprep.subr.mxu0 %v389
  %815 = vmatpush1.msra.mxu0 %v388
  %816 = vmatprep.subr.mxu0 %v393
  %817 = vmatpush1.msra.mxu0 %v392
  %818 = vmatprep.subr.mxu0 %v397
  %819 = vmatpush1.msra.mxu0 %v396
  %820 = vmatprep.subr.mxu0 %v401
  %821 = vmatpush1.msra.mxu0 %v400
  %822 = vmatprep.subr.mxu0 %v405
  %823 = vmatpush1.msra.mxu0 %v404
  %824 = vmatprep.subr.mxu0 %v409
  %825 = vmatpush1.msra.mxu0 %v408
  %826 = vmatprep.subr.mxu0 %v413
  %827 = vmatpush1.msra.mxu0 %v412
  %828 = vmatprep.subr.mxu0 %v417
  %829 = vmatpush1.msra.mxu0 %v416
  %830 = vmatprep.subr.mxu0 %v421
  %831 = vmatpush1.msra.mxu0 %v420
  %832 = vmatprep.subr.mxu0 %v425
  %833 = vmatpush1.msra.mxu0 %v424
  %834 = vmatprep.subr.mxu0 %v429
  %835 = vmatpush1.msra.mxu0 %v428
  %836 = vmatprep.subr.mxu0 %v433
  %837 = vmatpush1.msra.mxu0 %v432
  %838 = vmatprep.subr.mxu0 %v437
  %839 = vmatpush1.msra.mxu0 %v436
  %840 = vmatprep.subr.mxu0 %v441
  %841 = vmatpush1.msra.mxu0 %v440
  %842 = vmatprep.subr.mxu0 %v445
  %843 = vmatpush1.msra.mxu0 %v444
  %844 = vmatprep.subr.mxu0 0.0
  %845 = vmatpush1.msra.mxu0 0.0
  %846 = vmatprep.subr.mxu0 0.0
  %847 = vmatpush1.msra.mxu0 0.0
  %848 = vmatprep.subr.mxu0 0.0
  %849 = vmatpush1.msra.mxu0 0.0
  %850 = vmatprep.subr.mxu0 0.0
  %851 = vmatpush1.msra.mxu0 0.0
  %852 = vmatprep.subr.mxu0 0.0
  %853 = vmatpush1.msra.mxu0 0.0
  %854 = vmatprep.subr.mxu0 0.0
  %855 = vmatpush1.msra.mxu0 0.0
  %856 = vmatprep.subr.mxu0 0.0
  %857 = vmatpush1.msra.mxu0 0.0
  %858 = vmatprep.subr.mxu0 0.0
  %859 = vmatpush1.msra.mxu0 0.0
  %860 = vmatprep.subr.mxu0 0.0
  %861 = vmatpush1.msra.mxu0 0.0
  %862 = vmatprep.subr.mxu0 0.0
  %863 = vmatpush1.msra.mxu0 0.0
  %864 = vmatprep.subr.mxu0 0.0
  %865 = vmatpush1.msra.mxu0 0.0
  %866 = vmatprep.subr.mxu0 0.0
  %867 = vmatpush1.msra.mxu0 0.0
  %868 = vmatprep.subr.mxu0 0.0
  %869 = vmatpush1.msra.mxu0 0.0
  %870 = vmatprep.subr.mxu0 0.0
  %871 = vmatpush1.msra.mxu0 0.0
  %872 = vmatprep.subr.mxu0 0.0
  %873 = vmatpush1.msra.mxu0 0.0
  %874 = vmatprep.subr.mxu0 0.0
  %875 = vmatpush1.msra.mxu0 0.0
  %876 = vmatprep.mubr.f32.mxu0 0.0
  %877 = vmatmul.mubr.f32.gmra.mrb[0].mxu0 %v802
  %v878 = vpop.f32.mrb[0].mxu0
  %v879 = vadd.f32 0.0, %v878
  %v880 = vpop.f32.mrb[0].mxu0
  %v881 = vadd.f32 0.0, %v880
  %882 = vdwg.mxu0
  %883 = vmatprep.subr.mxu0 %v387
  %884 = vmatpush1.msra.mxu0 %v386
  %885 = vmatprep.subr.mxu0 %v391
  %886 = vmatpush1.msra.mxu0 %v390
  %887 = vmatprep.subr.mxu0 %v395
  %888 = vmatpush1.msra.mxu0 %v394
  %889 = vmatprep.subr.mxu0 %v399
  %890 = vmatpush1.msra.mxu0 %v398
  %891 = vmatprep.subr.mxu0 %v403
  %892 = vmatpush1.msra.mxu0 %v402
  %893 = vmatprep.subr.mxu0 %v407
  %894 = vmatpush1.msra.mxu0 %v406
  %895 = vmatprep.subr.mxu0 %v411
  %896 = vmatpush1.msra.mxu0 %v410
  %897 = vmatprep.subr.mxu0 %v415
  %898 = vmatpush1.msra.mxu0 %v414
  %899 = vmatprep.subr.mxu0 %v419
  %900 = vmatpush1.msra.mxu0 %v418
  %901 = vmatprep.subr.mxu0 %v423
  %902 = vmatpush1.msra.mxu0 %v422
  %903 = vmatprep.subr.mxu0 %v427
  %904 = vmatpush1.msra.mxu0 %v426
  %905 = vmatprep.subr.mxu0 %v431
  %906 = vmatpush1.msra.mxu0 %v430
  %907 = vmatprep.subr.mxu0 %v435
  %908 = vmatpush1.msra.mxu0 %v434
  %909 = vmatprep.subr.mxu0 %v439
  %910 = vmatpush1.msra.mxu0 %v438
  %911 = vmatprep.subr.mxu0 %v443
  %912 = vmatpush1.msra.mxu0 %v442
  %913 = vmatprep.subr.mxu0 %v447
  %914 = vmatpush1.msra.mxu0 %v446
  %915 = vmatprep.subr.mxu0 0.0
  %916 = vmatpush1.msra.mxu0 0.0
  %917 = vmatprep.subr.mxu0 0.0
  %918 = vmatpush1.msra.mxu0 0.0
  %919 = vmatprep.subr.mxu0 0.0
  %920 = vmatpush1.msra.mxu0 0.0
  %921 = vmatprep.subr.mxu0 0.0
  %922 = vmatpush1.msra.mxu0 0.0
  %923 = vmatprep.subr.mxu0 0.0
  %924 = vmatpush1.msra.mxu0 0.0
  %925 = vmatprep.subr.mxu0 0.0
  %926 = vmatpush1.msra.mxu0 0.0
  %927 = vmatprep.subr.mxu0 0.0
  %928 = vmatpush1.msra.mxu0 0.0
  %929 = vmatprep.subr.mxu0 0.0
  %930 = vmatpush1.msra.mxu0 0.0
  %931 = vmatprep.subr.mxu0 0.0
  %932 = vmatpush1.msra.mxu0 0.0
  %933 = vmatprep.subr.mxu0 0.0
  %934 = vmatpush1.msra.mxu0 0.0
  %935 = vmatprep.subr.mxu0 0.0
  %936 = vmatpush1.msra.mxu0 0.0
  %937 = vmatprep.subr.mxu0 0.0
  %938 = vmatpush1.msra.mxu0 0.0
  %939 = vmatprep.subr.mxu0 0.0
  %940 = vmatpush1.msra.mxu0 0.0
  %941 = vmatprep.subr.mxu0 0.0
  %942 = vmatpush1.msra.mxu0 0.0
  %943 = vmatprep.subr.mxu0 0.0
  %944 = vmatpush1.msra.mxu0 0.0
  %945 = vmatprep.subr.mxu0 0.0
  %946 = vmatpush1.msra.mxu0 0.0
  %947 = vmatprep.mubr.f32.mxu0 0.0
  %948 = vmatmul.mubr.f32.gmra.mrb[0].mxu0 %v802
  %v949 = vpop.f32.mrb[0].mxu0
  %v950 = vadd.f32 0.0, %v949
  %v951 = vpop.f32.mrb[0].mxu0
  %v952 = vadd.f32 0.0, %v951
  %953 = vdwg.mxu0
  %v954 = vadd.f32 %v808, %v879
  %v955 = vadd.f32 %v809, %v881
  %v956 = vadd.f32 %v810, %v950
  %v957 = vadd.f32 %v811, %v952
  %v958 = vxor.u32 %v954, 2147483648
  %v959 = vmul.f32 %v958, 1.442695
  %v960 = vpow.pop %v959
  %v961 = vadd.f32 %v960, 1.0
  %v962 = vrcp.pop %v961
  %v963 = vmul.f32 1.0, %v962
  %v964 = vxor.u32 %v955, 2147483648
  %v965 = vmul.f32 %v964, 1.442695
  %v966 = vpow.pop %v965
  %v967 = vadd.f32 %v966, 1.0
  %v968 = vrcp.pop %v967
  %v969 = vmul.f32 1.0, %v968
  %v970 = vtanh.pop %v956
  %v971 = vxor.u32 %v957, 2147483648
  %v972 = vmul.f32 %v971, 1.442695
  %v973 = vpow.pop %v972
  %v974 = vadd.f32 %v973, 1.0
  %v975 = vrcp.pop %v974
  %v976 = vmul.f32 1.0, %v975
  %v977 = vmul.f32 %v969, %v800
  %v978 = vmul.f32 %v963, %v970
  %v979 = vadd.f32 %v977, %v978
  %v980 = vtanh.pop %v979
  %v981 = vmul.f32 %v976, %v980
  %s982 = scalar_lea.vmem [#allocation3], 16
  %983 = vst [vmem:[%s982] sm:$0xff] %v981
  %s984 = smul.u32 3, 4
  %s985 = smul.addr %s984, 8
  %s986 = scalar_lea.vmem [#allocation2], %s985
  %v987 = vld [vmem:[%s986] sm:$0xff]
  %v988 = vld [vmem:[%s986 + $0x8] sm:$0xff]
  %v989 = vld [vmem:[%s986 + $0x10] sm:$0xff]
  %v990 = vld [vmem:[%s986 + $0x18] sm:$0xff]
  %991 = vmatprep.subr.mxu0 %v385
  %992 = vmatpush1.msra.mxu0 %v384
  %993 = vmatprep.subr.mxu0 %v389
  %994 = vmatpush1.msra.mxu0 %v388
  %995 = vmatprep.subr.mxu0 %v393
  %996 = vmatpush1.msra.mxu0 %v392
  %997 = vmatprep.subr.mxu0 %v397
  %998 = vmatpush1.msra.mxu0 %v396
  %999 = vmatprep.subr.mxu0 %v401
  %1000 = vmatpush1.msra.mxu0 %v400
  %1001 = vmatprep.subr.mxu0 %v405
  %1002 = vmatpush1.msra.mxu0 %v404
  %1003 = vmatprep.subr.mxu0 %v409
  %1004 = vmatpush1.msra.mxu0 %v408
  %1005 = vmatprep.subr.mxu0 %v413
  %1006 = vmatpush1.msra.mxu0 %v412
  %1007 = vmatprep.subr.mxu0 %v417
  %1008 = vmatpush1.msra.mxu0 %v416
  %1009 = vmatprep.subr.mxu0 %v421
  %1010 = vmatpush1.msra.mxu0 %v420
  %1011 = vmatprep.subr.mxu0 %v425
  %1012 = vmatpush1.msra.mxu0 %v424
  %1013 = vmatprep.subr.mxu0 %v429
  %1014 = vmatpush1.msra.mxu0 %v428
  %1015 = vmatprep.subr.mxu0 %v433
  %1016 = vmatpush1.msra.mxu0 %v432
  %1017 = vmatprep.subr.mxu0 %v437
  %1018 = vmatpush1.msra.mxu0 %v436
  %1019 = vmatprep.subr.mxu0 %v441
  %1020 = vmatpush1.msra.mxu0 %v440
  %1021 = vmatprep.subr.mxu0 %v445
  %1022 = vmatpush1.msra.mxu0 %v444
  %1023 = vmatprep.subr.mxu0 0.0
  %1024 = vmatpush1.msra.mxu0 0.0
  %1025 = vmatprep.subr.mxu0 0.0
  %1026 = vmatpush1.msra.mxu0 0.0
  %1027 = vmatprep.subr.mxu0 0.0
  %1028 = vmatpush1.msra.mxu0 0.0
  %1029 = vmatprep.subr.mxu0 0.0
  %1030 = vmatpush1.msra.mxu0 0.0
  %1031 = vmatprep.subr.mxu0 0.0
  %1032 = vmatpush1.msra.mxu0 0.0
  %1033 = vmatprep.subr.mxu0 0.0
  %1034 = vmatpush1.msra.mxu0 0.0
  %1035 = vmatprep.subr.mxu0 0.0
  %1036 = vmatpush1.msra.mxu0 0.0
  %1037 = vmatprep.subr.mxu0 0.0
  %1038 = vmatpush1.msra.mxu0 0.0
  %1039 = vmatprep.subr.mxu0 0.0
  %1040 = vmatpush1.msra.mxu0 0.0
  %1041 = vmatprep.subr.mxu0 0.0
  %1042 = vmatpush1.msra.mxu0 0.0
  %1043 = vmatprep.subr.mxu0 0.0
  %1044 = vmatpush1.msra.mxu0 0.0
  %1045 = vmatprep.subr.mxu0 0.0
  %1046 = vmatpush1.msra.mxu0 0.0
  %1047 = vmatprep.subr.mxu0 0.0
  %1048 = vmatpush1.msra.mxu0 0.0
  %1049 = vmatprep.subr.mxu0 0.0
  %1050 = vmatpush1.msra.mxu0 0.0
  %1051 = vmatprep.subr.mxu0 0.0
  %1052 = vmatpush1.msra.mxu0 0.0
  %1053 = vmatprep.subr.mxu0 0.0
  %1054 = vmatpush1.msra.mxu0 0.0
  %1055 = vmatprep.mubr.f32.mxu0 0.0
  %1056 = vmatmul.mubr.f32.gmra.mrb[0].mxu0 %v981
  %v1057 = vpop.f32.mrb[0].mxu0
  %v1058 = vadd.f32 0.0, %v1057
  %v1059 = vpop.f32.mrb[0].mxu0
  %v1060 = vadd.f32 0.0, %v1059
  %1061 = vdwg.mxu0
  %1062 = vmatprep.subr.mxu0 %v387
  %1063 = vmatpush1.msra.mxu0 %v386
  %1064 = vmatprep.subr.mxu0 %v391
  %1065 = vmatpush1.msra.mxu0 %v390
  %1066 = vmatprep.subr.mxu0 %v395
  %1067 = vmatpush1.msra.mxu0 %v394
  %1068 = vmatprep.subr.mxu0 %v399
  %1069 = vmatpush1.msra.mxu0 %v398
  %1070 = vmatprep.subr.mxu0 %v403
  %1071 = vmatpush1.msra.mxu0 %v402
  %1072 = vmatprep.subr.mxu0 %v407
  %1073 = vmatpush1.msra.mxu0 %v406
  %1074 = vmatprep.subr.mxu0 %v411
  %1075 = vmatpush1.msra.mxu0 %v410
  %1076 = vmatprep.subr.mxu0 %v415
  %1077 = vmatpush1.msra.mxu0 %v414
  %1078 = vmatprep.subr.mxu0 %v419
  %1079 = vmatpush1.msra.mxu0 %v418
  %1080 = vmatprep.subr.mxu0 %v423
  %1081 = vmatpush1.msra.mxu0 %v422
  %1082 = vmatprep.subr.mxu0 %v427
  %1083 = vmatpush1.msra.mxu0 %v426
  %1084 = vmatprep.subr.mxu0 %v431
  %1085 = vmatpush1.msra.mxu0 %v430
  %1086 = vmatprep.subr.mxu0 %v435
  %1087 = vmatpush1.msra.mxu0 %v434
  %1088 = vmatprep.subr.mxu0 %v439
  %1089 = vmatpush1.msra.mxu0 %v438
  %1090 = vmatprep.subr.mxu0 %v443
  %1091 = vmatpush1.msra.mxu0 %v442
  %1092 = vmatprep.subr.mxu0 %v447
  %1093 = vmatpush1.msra.mxu0 %v446
  %1094 = vmatprep.subr.mxu0 0.0
  %1095 = vmatpush1.msra.mxu0 0.0
  %1096 = vmatprep.subr.mxu0 0.0
  %1097 = vmatpush1.msra.mxu0 0.0
  %1098 = vmatprep.subr.mxu0 0.0
  %1099 = vmatpush1.msra.mxu0 0.0
  %1100 = vmatprep.subr.mxu0 0.0
  %1101 = vmatpush1.msra.mxu0 0.0
  %1102 = vmatprep.subr.mxu0 0.0
  %1103 = vmatpush1.msra.mxu0 0.0
  %1104 = vmatprep.subr.mxu0 0.0
  %1105 = vmatpush1.msra.mxu0 0.0
  %1106 = vmatprep.subr.mxu0 0.0
  %1107 = vmatpush1.msra.mxu0 0.0
  %1108 = vmatprep.subr.mxu0 0.0
  %1109 = vmatpush1.msra.mxu0 0.0
  %1110 = vmatprep.subr.mxu0 0.0
  %1111 = vmatpush1.msra.mxu0 0.0
  %1112 = vmatprep.subr.mxu0 0.0
  %1113 = vmatpush1.msra.mxu0 0.0
  %1114 = vmatprep.subr.mxu0 0.0
  %1115 = vmatpush1.msra.mxu0 0.0
  %1116 = vmatprep.subr.mxu0 0.0
  %1117 = vmatpush1.msra.mxu0 0.0
  %1118 = vmatprep.subr.mxu0 0.0
  %1119 = vmatpush1.msra.mxu0 0.0
  %1120 = vmatprep.subr.mxu0 0.0
  %1121 = vmatpush1.msra.mxu0 0.0
  %1122 = vmatprep.subr.mxu0 0.0
  %1123 = vmatpush1.msra.mxu0 0.0
  %1124 = vmatprep.subr.mxu0 0.0
  %1125 = vmatpush1.msra.mxu0 0.0
  %1126 = vmatprep.mubr.f32.mxu0 0.0
  %1127 = vmatmul.mubr.f32.gmra.mrb[0].mxu0 %v981
  %v1128 = vpop.f32.mrb[0].mxu0
  %v1129 = vadd.f32 0.0, %v1128
  %v1130 = vpop.f32.mrb[0].mxu0
  %v1131 = vadd.f32 0.0, %v1130
  %1132 = vdwg.mxu0
  %v1133 = vadd.f32 %v987, %v1058
  %v1134 = vadd.f32 %v988, %v1060
  %v1135 = vadd.f32 %v989, %v1129
  %v1136 = vadd.f32 %v990, %v1131
  %v1137 = vxor.u32 %v1133, 2147483648
  %v1138 = vmul.f32 %v1137, 1.442695
  %v1139 = vpow.pop %v1138
  %v1140 = vadd.f32 %v1139, 1.0
  %v1141 = vrcp.pop %v1140
  %v1142 = vmul.f32 1.0, %v1141
  %v1143 = vxor.u32 %v1134, 2147483648
  %v1144 = vmul.f32 %v1143, 1.442695
  %v1145 = vpow.pop %v1144
  %v1146 = vadd.f32 %v1145, 1.0
  %v1147 = vrcp.pop %v1146
  %v1148 = vmul.f32 1.0, %v1147
  %v1149 = vtanh.pop %v1135
  %v1150 = vxor.u32 %v1136, 2147483648
  %v1151 = vmul.f32 %v1150, 1.442695
  %v1152 = vpow.pop %v1151
  %v1153 = vadd.f32 %v1152, 1.0
  %v1154 = vrcp.pop %v1153
  %v1155 = vmul.f32 1.0, %v1154
  %v1156 = vmul.f32 %v1148, %v979
  %v1157 = vmul.f32 %v1142, %v1149
  %v1158 = vadd.f32 %v1156, %v1157
  %v1159 = vtanh.pop %v1158
  %v1160 = vmul.f32 %v1155, %v1159
  %s1161 = scalar_lea.vmem [#allocation3], 24
  %1162 = vst [vmem:[%s1161] sm:$0xff] %v1160
  %s1163 = smul.u32 4, 4
  %s1164 = smul.addr %s1163, 8
  %s1165 = scalar_lea.vmem [#allocation2], %s1164
  %v1166 = vld [vmem:[%s1165] sm:$0xff]
  %v1167 = vld [vmem:[%s1165 + $0x8] sm:$0xff]
  %v1168 = vld [vmem:[%s1165 + $0x10] sm:$0xff]
  %v1169 = vld [vmem:[%s1165 + $0x18] sm:$0xff]
  %1170 = vmatprep.subr.mxu0 %v385
  %1171 = vmatpush1.msra.mxu0 %v384
  %1172 = vmatprep.subr.mxu0 %v389
  %1173 = vmatpush1.msra.mxu0 %v388
  %1174 = vmatprep.subr.mxu0 %v393
  %1175 = vmatpush1.msra.mxu0 %v392
  %1176 = vmatprep.subr.mxu0 %v397
  %1177 = vmatpush1.msra.mxu0 %v396
  %1178 = vmatprep.subr.mxu0 %v401
  %1179 = vmatpush1.msra.mxu0 %v400
  %1180 = vmatprep.subr.mxu0 %v405
  %1181 = vmatpush1.msra.mxu0 %v404
  %1182 = vmatprep.subr.mxu0 %v409
  %1183 = vmatpush1.msra.mxu0 %v408
  %1184 = vmatprep.subr.mxu0 %v413
  %1185 = vmatpush1.msra.mxu0 %v412
  %1186 = vmatprep.subr.mxu0 %v417
  %1187 = vmatpush1.msra.mxu0 %v416
  %1188 = vmatprep.subr.mxu0 %v421
  %1189 = vmatpush1.msra.mxu0 %v420
  %1190 = vmatprep.subr.mxu0 %v425
  %1191 = vmatpush1.msra.mxu0 %v424
  %1192 = vmatprep.subr.mxu0 %v429
  %1193 = vmatpush1.msra.mxu0 %v428
  %1194 = vmatprep.subr.mxu0 %v433
  %1195 = vmatpush1.msra.mxu0 %v432
  %1196 = vmatprep.subr.mxu0 %v437
  %1197 = vmatpush1.msra.mxu0 %v436
  %1198 = vmatprep.subr.mxu0 %v441
  %1199 = vmatpush1.msra.mxu0 %v440
  %1200 = vmatprep.subr.mxu0 %v445
  %1201 = vmatpush1.msra.mxu0 %v444
  %1202 = vmatprep.subr.mxu0 0.0
  %1203 = vmatpush1.msra.mxu0 0.0
  %1204 = vmatprep.subr.mxu0 0.0
  %1205 = vmatpush1.msra.mxu0 0.0
  %1206 = vmatprep.subr.mxu0 0.0
  %1207 = vmatpush1.msra.mxu0 0.0
  %1208 = vmatprep.subr.mxu0 0.0
  %1209 = vmatpush1.msra.mxu0 0.0
  %1210 = vmatprep.subr.mxu0 0.0
  %1211 = vmatpush1.msra.mxu0 0.0
  %1212 = vmatprep.subr.mxu0 0.0
  %1213 = vmatpush1.msra.mxu0 0.0
  %1214 = vmatprep.subr.mxu0 0.0
  %1215 = vmatpush1.msra.mxu0 0.0
  %1216 = vmatprep.subr.mxu0 0.0
  %1217 = vmatpush1.msra.mxu0 0.0
  %1218 = vmatprep.subr.mxu0 0.0
  %1219 = vmatpush1.msra.mxu0 0.0
  %1220 = vmatprep.subr.mxu0 0.0
  %1221 = vmatpush1.msra.mxu0 0.0
  %1222 = vmatprep.subr.mxu0 0.0
  %1223 = vmatpush1.msra.mxu0 0.0
  %1224 = vmatprep.subr.mxu0 0.0
  %1225 = vmatpush1.msra.mxu0 0.0
  %1226 = vmatprep.subr.mxu0 0.0
  %1227 = vmatpush1.msra.mxu0 0.0
  %1228 = vmatprep.subr.mxu0 0.0
  %1229 = vmatpush1.msra.mxu0 0.0
  %1230 = vmatprep.subr.mxu0 0.0
  %1231 = vmatpush1.msra.mxu0 0.0
  %1232 = vmatprep.subr.mxu0 0.0
  %1233 = vmatpush1.msra.mxu0 0.0
  %1234 = vmatprep.mubr.f32.mxu0 0.0
  %1235 = vmatmul.mubr.f32.gmra.mrb[0].mxu0 %v1160
  %v1236 = vpop.f32.mrb[0].mxu0
  %v1237 = vadd.f32 0.0, %v1236
  %v1238 = vpop.f32.mrb[0].mxu0
  %v1239 = vadd.f32 0.0, %v1238
  %1240 = vdwg.mxu0
  %1241 = vmatprep.subr.mxu0 %v387
  %1242 = vmatpush1.msra.mxu0 %v386
  %1243 = vmatprep.subr.mxu0 %v391
  %1244 = vmatpush1.msra.mxu0 %v390
  %1245 = vmatprep.subr.mxu0 %v395
  %1246 = vmatpush1.msra.mxu0 %v394
  %1247 = vmatprep.subr.mxu0 %v399
  %1248 = vmatpush1.msra.mxu0 %v398
  %1249 = vmatprep.subr.mxu0 %v403
  %1250 = vmatpush1.msra.mxu0 %v402
  %1251 = vmatprep.subr.mxu0 %v407
  %1252 = vmatpush1.msra.mxu0 %v406
  %1253 = vmatprep.subr.mxu0 %v411
  %1254 = vmatpush1.msra.mxu0 %v410
  %1255 = vmatprep.subr.mxu0 %v415
  %1256 = vmatpush1.msra.mxu0 %v414
  %1257 = vmatprep.subr.mxu0 %v419
  %1258 = vmatpush1.msra.mxu0 %v418
  %1259 = vmatprep.subr.mxu0 %v423
  %1260 = vmatpush1.msra.mxu0 %v422
  %1261 = vmatprep.subr.mxu0 %v427
  %1262 = vmatpush1.msra.mxu0 %v426
  %1263 = vmatprep.subr.mxu0 %v431
  %1264 = vmatpush1.msra.mxu0 %v430
  %1265 = vmatprep.subr.mxu0 %v435
  %1266 = vmatpush1.msra.mxu0 %v434
  %1267 = vmatprep.subr.mxu0 %v439
  %1268 = vmatpush1.msra.mxu0 %v438
  %1269 = vmatprep.subr.mxu0 %v443
  %1270 = vmatpush1.msra.mxu0 %v442
  %1271 = vmatprep.subr.mxu0 %v447
  %1272 = vmatpush1.msra.mxu0 %v446
  %1273 = vmatprep.subr.mxu0 0.0
  %1274 = vmatpush1.msra.mxu0 0.0
  %1275 = vmatprep.subr.mxu0 0.0
  %1276 = vmatpush1.msra.mxu0 0.0
  %1277 = vmatprep.subr.mxu0 0.0
  %1278 = vmatpush1.msra.mxu0 0.0
  %1279 = vmatprep.subr.mxu0 0.0
  %1280 = vmatpush1.msra.mxu0 0.0
  %1281 = vmatprep.subr.mxu0 0.0
  %1282 = vmatpush1.msra.mxu0 0.0
  %1283 = vmatprep.subr.mxu0 0.0
  %1284 = vmatpush1.msra.mxu0 0.0
  %1285 = vmatprep.subr.mxu0 0.0
  %1286 = vmatpush1.msra.mxu0 0.0
  %1287 = vmatprep.subr.mxu0 0.0
  %1288 = vmatpush1.msra.mxu0 0.0
  %1289 = vmatprep.subr.mxu0 0.0
  %1290 = vmatpush1.msra.mxu0 0.0
  %1291 = vmatprep.subr.mxu0 0.0
  %1292 = vmatpush1.msra.mxu0 0.0
  %1293 = vmatprep.subr.mxu0 0.0
  %1294 = vmatpush1.msra.mxu0 0.0
  %1295 = vmatprep.subr.mxu0 0.0
  %1296 = vmatpush1.msra.mxu0 0.0
  %1297 = vmatprep.subr.mxu0 0.0
  %1298 = vmatpush1.msra.mxu0 0.0
  %1299 = vmatprep.subr.mxu0 0.0
  %1300 = vmatpush1.msra.mxu0 0.0
  %1301 = vmatprep.subr.mxu0 0.0
  %1302 = vmatpush1.msra.mxu0 0.0
  %1303 = vmatprep.subr.mxu0 0.0
  %1304 = vmatpush1.msra.mxu0 0.0
  %1305 = vmatprep.mubr.f32.mxu0 0.0
  %1306 = vmatmul.mubr.f32.gmra.mrb[0].mxu0 %v1160
  %v1307 = vpop.f32.mrb[0].mxu0
  %v1308 = vadd.f32 0.0, %v1307
  %v1309 = vpop.f32.mrb[0].mxu0
  %v1310 = vadd.f32 0.0, %v1309
  %1311 = vdwg.mxu0
  %v1312 = vadd.f32 %v1166, %v1237
  %v1313 = vadd.f32 %v1167, %v1239
  %v1314 = vadd.f32 %v1168, %v1308
  %v1315 = vadd.f32 %v1169, %v1310
  %v1316 = vxor.u32 %v1312, 2147483648
  %v1317 = vmul.f32 %v1316, 1.442695
  %v1318 = vpow.pop %v1317
  %v1319 = vadd.f32 %v1318, 1.0
  %v1320 = vrcp.pop %v1319
  %v1321 = vmul.f32 1.0, %v1320
  %v1322 = vxor.u32 %v1313, 2147483648
  %v1323 = vmul.f32 %v1322, 1.442695
  %v1324 = vpow.pop %v1323
  %v1325 = vadd.f32 %v1324, 1.0
  %v1326 = vrcp.pop %v1325
  %v1327 = vmul.f32 1.0, %v1326
  %v1328 = vtanh.pop %v1314
  %v1329 = vxor.u32 %v1315, 2147483648
  %v1330 = vmul.f32 %v1329, 1.442695
  %v1331 = vpow.pop %v1330
  %v1332 = vadd.f32 %v1331, 1.0
  %v1333 = vrcp.pop %v1332
  %v1334 = vmul.f32 1.0, %v1333
  %v1335 = vmul.f32 %v1327, %v1158
  %v1336 = vmul.f32 %v1321, %v1328
  %v1337 = vadd.f32 %v1335, %v1336
  %v1338 = vtanh.pop %v1337
  %v1339 = vmul.f32 %v1334, %v1338
  %s1340 = scalar_lea.vmem [#allocation3], 32
  %1341 = vst [vmem:[%s1340] sm:$0xff] %v1339
  %s1342 = smul.u32 5, 4
  %s1343 = smul.addr %s1342, 8
  %s1344 = scalar_lea.vmem [#allocation2], %s1343
  %v1345 = vld [vmem:[%s1344] sm:$0xff]
  %v1346 = vld [vmem:[%s1344 + $0x8] sm:$0xff]
  %v1347 = vld [vmem:[%s1344 + $0x10] sm:$0xff]
  %v1348 = vld [vmem:[%s1344 + $0x18] sm:$0xff]
  %1349 = vmatprep.subr.mxu0 %v385
  %1350 = vmatpush1.msra.mxu0 %v384
  %1351 = vmatprep.subr.mxu0 %v389
  %1352 = vmatpush1.msra.mxu0 %v388
  %1353 = vmatprep.subr.mxu0 %v393
  %1354 = vmatpush1.msra.mxu0 %v392
  %1355 = vmatprep.subr.mxu0 %v397
  %1356 = vmatpush1.msra.mxu0 %v396
  %1357 = vmatprep.subr.mxu0 %v401
  %1358 = vmatpush1.msra.mxu0 %v400
  %1359 = vmatprep.subr.mxu0 %v405
  %1360 = vmatpush1.msra.mxu0 %v404
  %1361 = vmatprep.subr.mxu0 %v409
  %1362 = vmatpush1.msra.mxu0 %v408
  %1363 = vmatprep.subr.mxu0 %v413
  %1364 = vmatpush1.msra.mxu0 %v412
  %1365 = vmatprep.subr.mxu0 %v417
  %1366 = vmatpush1.msra.mxu0 %v416
  %1367 = vmatprep.subr.mxu0 %v421
  %1368 = vmatpush1.msra.mxu0 %v420
  %1369 = vmatprep.subr.mxu0 %v425
  %1370 = vmatpush1.msra.mxu0 %v424
  %1371 = vmatprep.subr.mxu0 %v429
  %1372 = vmatpush1.msra.mxu0 %v428
  %1373 = vmatprep.subr.mxu0 %v433
  %1374 = vmatpush1.msra.mxu0 %v432
  %1375 = vmatprep.subr.mxu0 %v437
  %1376 = vmatpush1.msra.mxu0 %v436
  %1377 = vmatprep.subr.mxu0 %v441
  %1378 = vmatpush1.msra.mxu0 %v440
  %1379 = vmatprep.subr.mxu0 %v445
  %1380 = vmatpush1.msra.mxu0 %v444
  %1381 = vmatprep.subr.mxu0 0.0
  %1382 = vmatpush1.msra.mxu0 0.0
  %1383 = vmatprep.subr.mxu0 0.0
  %1384 = vmatpush1.msra.mxu0 0.0
  %1385 = vmatprep.subr.mxu0 0.0
  %1386 = vmatpush1.msra.mxu0 0.0
  %1387 = vmatprep.subr.mxu0 0.0
  %1388 = vmatpush1.msra.mxu0 0.0
  %1389 = vmatprep.subr.mxu0 0.0
  %1390 = vmatpush1.msra.mxu0 0.0
  %1391 = vmatprep.subr.mxu0 0.0
  %1392 = vmatpush1.msra.mxu0 0.0
  %1393 = vmatprep.subr.mxu0 0.0
  %1394 = vmatpush1.msra.mxu0 0.0
  %1395 = vmatprep.subr.mxu0 0.0
  %1396 = vmatpush1.msra.mxu0 0.0
  %1397 = vmatprep.subr.mxu0 0.0
  %1398 = vmatpush1.msra.mxu0 0.0
  %1399 = vmatprep.subr.mxu0 0.0
  %1400 = vmatpush1.msra.mxu0 0.0
  %1401 = vmatprep.subr.mxu0 0.0
  %1402 = vmatpush1.msra.mxu0 0.0
  %1403 = vmatprep.subr.mxu0 0.0
  %1404 = vmatpush1.msra.mxu0 0.0
  %1405 = vmatprep.subr.mxu0 0.0
  %1406 = vmatpush1.msra.mxu0 0.0
  %1407 = vmatprep.subr.mxu0 0.0
  %1408 = vmatpush1.msra.mxu0 0.0
  %1409 = vmatprep.subr.mxu0 0.0
  %1410 = vmatpush1.msra.mxu0 0.0
  %1411 = vmatprep.subr.mxu0 0.0
  %1412 = vmatpush1.msra.mxu0 0.0
  %1413 = vmatprep.mubr.f32.mxu0 0.0
  %1414 = vmatmul.mubr.f32.gmra.mrb[0].mxu0 %v1339
  %v1415 = vpop.f32.mrb[0].mxu0
  %v1416 = vadd.f32 0.0, %v1415
  %v1417 = vpop.f32.mrb[0].mxu0
  %v1418 = vadd.f32 0.0, %v1417
  %1419 = vdwg.mxu0
  %1420 = vmatprep.subr.mxu0 %v387
  %1421 = vmatpush1.msra.mxu0 %v386
  %1422 = vmatprep.subr.mxu0 %v391
  %1423 = vmatpush1.msra.mxu0 %v390
  %1424 = vmatprep.subr.mxu0 %v395
  %1425 = vmatpush1.msra.mxu0 %v394
  %1426 = vmatprep.subr.mxu0 %v399
  %1427 = vmatpush1.msra.mxu0 %v398
  %1428 = vmatprep.subr.mxu0 %v403
  %1429 = vmatpush1.msra.mxu0 %v402
  %1430 = vmatprep.subr.mxu0 %v407
  %1431 = vmatpush1.msra.mxu0 %v406
  %1432 = vmatprep.subr.mxu0 %v411
  %1433 = vmatpush1.msra.mxu0 %v410
  %1434 = vmatprep.subr.mxu0 %v415
  %1435 = vmatpush1.msra.mxu0 %v414
  %1436 = vmatprep.subr.mxu0 %v419
  %1437 = vmatpush1.msra.mxu0 %v418
  %1438 = vmatprep.subr.mxu0 %v423
  %1439 = vmatpush1.msra.mxu0 %v422
  %1440 = vmatprep.subr.mxu0 %v427
  %1441 = vmatpush1.msra.mxu0 %v426
  %1442 = vmatprep.subr.mxu0 %v431
  %1443 = vmatpush1.msra.mxu0 %v430
  %1444 = vmatprep.subr.mxu0 %v435
  %1445 = vmatpush1.msra.mxu0 %v434
  %1446 = vmatprep.subr.mxu0 %v439
  %1447 = vmatpush1.msra.mxu0 %v438
  %1448 = vmatprep.subr.mxu0 %v443
  %1449 = vmatpush1.msra.mxu0 %v442
  %1450 = vmatprep.subr.mxu0 %v447
  %1451 = vmatpush1.msra.mxu0 %v446
  %1452 = vmatprep.subr.mxu0 0.0
  %1453 = vmatpush1.msra.mxu0 0.0
  %1454 = vmatprep.subr.mxu0 0.0
  %1455 = vmatpush1.msra.mxu0 0.0
  %1456 = vmatprep.subr.mxu0 0.0
  %1457 = vmatpush1.msra.mxu0 0.0
  %1458 = vmatprep.subr.mxu0 0.0
  %1459 = vmatpush1.msra.mxu0 0.0
  %1460 = vmatprep.subr.mxu0 0.0
  %1461 = vmatpush1.msra.mxu0 0.0
  %1462 = vmatprep.subr.mxu0 0.0
  %1463 = vmatpush1.msra.mxu0 0.0
  %1464 = vmatprep.subr.mxu0 0.0
  %1465 = vmatpush1.msra.mxu0 0.0
  %1466 = vmatprep.subr.mxu0 0.0
  %1467 = vmatpush1.msra.mxu0 0.0
  %1468 = vmatprep.subr.mxu0 0.0
  %1469 = vmatpush1.msra.mxu0 0.0
  %1470 = vmatprep.subr.mxu0 0.0
  %1471 = vmatpush1.msra.mxu0 0.0
  %1472 = vmatprep.subr.mxu0 0.0
  %1473 = vmatpush1.msra.mxu0 0.0
  %1474 = vmatprep.subr.mxu0 0.0
  %1475 = vmatpush1.msra.mxu0 0.0
  %1476 = vmatprep.subr.mxu0 0.0
  %1477 = vmatpush1.msra.mxu0 0.0
  %1478 = vmatprep.subr.mxu0 0.0
  %1479 = vmatpush1.msra.mxu0 0.0
  %1480 = vmatprep.subr.mxu0 0.0
  %1481 = vmatpush1.msra.mxu0 0.0
  %1482 = vmatprep.subr.mxu0 0.0
  %1483 = vmatpush1.msra.mxu0 0.0
  %1484 = vmatprep.mubr.f32.mxu0 0.0
  %1485 = vmatmul.mubr.f32.gmra.mrb[0].mxu0 %v1339
  %v1486 = vpop.f32.mrb[0].mxu0
  %v1487 = vadd.f32 0.0, %v1486
  %v1488 = vpop.f32.mrb[0].mxu0
  %v1489 = vadd.f32 0.0, %v1488
  %1490 = vdwg.mxu0
  %v1491 = vadd.f32 %v1345, %v1416
  %v1492 = vadd.f32 %v1346, %v1418
  %v1493 = vadd.f32 %v1347, %v1487
  %v1494 = vadd.f32 %v1348, %v1489
  %v1495 = vxor.u32 %v1491, 2147483648
  %v1496 = vmul.f32 %v1495, 1.442695
  %v1497 = vpow.pop %v1496
  %v1498 = vadd.f32 %v1497, 1.0
  %v1499 = vrcp.pop %v1498
  %v1500 = vmul.f32 1.0, %v1499
  %v1501 = vxor.u32 %v1492, 2147483648
  %v1502 = vmul.f32 %v1501, 1.442695
  %v1503 = vpow.pop %v1502
  %v1504 = vadd.f32 %v1503, 1.0
  %v1505 = vrcp.pop %v1504
  %v1506 = vmul.f32 1.0, %v1505
  %v1507 = vtanh.pop %v1493
  %v1508 = vxor.u32 %v1494, 2147483648
  %v1509 = vmul.f32 %v1508, 1.442695
  %v1510 = vpow.pop %v1509
  %v1511 = vadd.f32 %v1510, 1.0
  %v1512 = vrcp.pop %v1511
  %v1513 = vmul.f32 1.0, %v1512
  %v1514 = vmul.f32 %v1506, %v1337
  %v1515 = vmul.f32 %v1500, %v1507
  %v1516 = vadd.f32 %v1514, %v1515
  %v1517 = vtanh.pop %v1516
  %v1518 = vmul.f32 %v1513, %v1517
  %s1519 = scalar_lea.vmem [#allocation3], 40
  %1520 = vst [vmem:[%s1519] sm:$0xff] %v1518
  %s1521 = smul.u32 6, 4
  %s1522 = smul.addr %s1521, 8
  %s1523 = scalar_lea.vmem [#allocation2], %s1522
  %v1524 = vld [vmem:[%s1523] sm:$0xff]
  %v1525 = vld [vmem:[%s1523 + $0x8] sm:$0xff]
  %v1526 = vld [vmem:[%s1523 + $0x10] sm:$0xff]
  %v1527 = vld [vmem:[%s1523 + $0x18] sm:$0xff]
  %1528 = vmatprep.subr.mxu0 %v385
  %1529 = vmatpush1.msra.mxu0 %v384
  %1530 = vmatprep.subr.mxu0 %v389
  %1531 = vmatpush1.msra.mxu0 %v388
  %1532 = vmatprep.subr.mxu0 %v393
  %1533 = vmatpush1.msra.mxu0 %v392
  %1534 = vmatprep.subr.mxu0 %v397
  %1535 = vmatpush1.msra.mxu0 %v396
  %1536 = vmatprep.subr.mxu0 %v401
  %1537 = vmatpush1.msra.mxu0 %v400
  %1538 = vmatprep.subr.mxu0 %v405
  %1539 = vmatpush1.msra.mxu0 %v404
  %1540 = vmatprep.subr.mxu0 %v409
  %1541 = vmatpush1.msra.mxu0 %v408
  %1542 = vmatprep.subr.mxu0 %v413
  %1543 = vmatpush1.msra.mxu0 %v412
  %1544 = vmatprep.subr.mxu0 %v417
  %1545 = vmatpush1.msra.mxu0 %v416
  %1546 = vmatprep.subr.mxu0 %v421
  %1547 = vmatpush1.msra.mxu0 %v420
  %1548 = vmatprep.subr.mxu0 %v425
  %1549 = vmatpush1.msra.mxu0 %v424
  %1550 = vmatprep.subr.mxu0 %v429
  %1551 = vmatpush1.msra.mxu0 %v428
  %1552 = vmatprep.subr.mxu0 %v433
  %1553 = vmatpush1.msra.mxu0 %v432
  %1554 = vmatprep.subr.mxu0 %v437
  %1555 = vmatpush1.msra.mxu0 %v436
  %1556 = vmatprep.subr.mxu0 %v441
  %1557 = vmatpush1.msra.mxu0 %v440
  %1558 = vmatprep.subr.mxu0 %v445
  %1559 = vmatpush1.msra.mxu0 %v444
  %1560 = vmatprep.subr.mxu0 0.0
  %1561 = vmatpush1.msra.mxu0 0.0
  %1562 = vmatprep.subr.mxu0 0.0
  %1563 = vmatpush1.msra.mxu0 0.0
  %1564 = vmatprep.subr.mxu0 0.0
  %1565 = vmatpush1.msra.mxu0 0.0
  %1566 = vmatprep.subr.mxu0 0.0
  %1567 = vmatpush1.msra.mxu0 0.0
  %1568 = vmatprep.subr.mxu0 0.0
  %1569 = vmatpush1.msra.mxu0 0.0
  %1570 = vmatprep.subr.mxu0 0.0
  %1571 = vmatpush1.msra.mxu0 0.0
  %1572 = vmatprep.subr.mxu0 0.0
  %1573 = vmatpush1.msra.mxu0 0.0
  %1574 = vmatprep.subr.mxu0 0.0
  %1575 = vmatpush1.msra.mxu0 0.0
  %1576 = vmatprep.subr.mxu0 0.0
  %1577 = vmatpush1.msra.mxu0 0.0
  %1578 = vmatprep.subr.mxu0 0.0
  %1579 = vmatpush1.msra.mxu0 0.0
  %1580 = vmatprep.subr.mxu0 0.0
  %1581 = vmatpush1.msra.mxu0 0.0
  %1582 = vmatprep.subr.mxu0 0.0
  %1583 = vmatpush1.msra.mxu0 0.0
  %1584 = vmatprep.subr.mxu0 0.0
  %1585 = vmatpush1.msra.mxu0 0.0
  %1586 = vmatprep.subr.mxu0 0.0
  %1587 = vmatpush1.msra.mxu0 0.0
  %1588 = vmatprep.subr.mxu0 0.0
  %1589 = vmatpush1.msra.mxu0 0.0
  %1590 = vmatprep.subr.mxu0 0.0
  %1591 = vmatpush1.msra.mxu0 0.0
  %1592 = vmatprep.mubr.f32.mxu0 0.0
  %1593 = vmatmul.mubr.f32.gmra.mrb[0].mxu0 %v1518
  %v1594 = vpop.f32.mrb[0].mxu0
  %v1595 = vadd.f32 0.0, %v1594
  %v1596 = vpop.f32.mrb[0].mxu0
  %v1597 = vadd.f32 0.0, %v1596
  %1598 = vdwg.mxu0
  %1599 = vmatprep.subr.mxu0 %v387
  %1600 = vmatpush1.msra.mxu0 %v386
  %1601 = vmatprep.subr.mxu0 %v391
  %1602 = vmatpush1.msra.mxu0 %v390
  %1603 = vmatprep.subr.mxu0 %v395
  %1604 = vmatpush1.msra.mxu0 %v394
  %1605 = vmatprep.subr.mxu0 %v399
  %1606 = vmatpush1.msra.mxu0 %v398
  %1607 = vmatprep.subr.mxu0 %v403
  %1608 = vmatpush1.msra.mxu0 %v402
  %1609 = vmatprep.subr.mxu0 %v407
  %1610 = vmatpush1.msra.mxu0 %v406
  %1611 = vmatprep.subr.mxu0 %v411
  %1612 = vmatpush1.msra.mxu0 %v410
  %1613 = vmatprep.subr.mxu0 %v415
  %1614 = vmatpush1.msra.mxu0 %v414
  %1615 = vmatprep.subr.mxu0 %v419
  %1616 = vmatpush1.msra.mxu0 %v418
  %1617 = vmatprep.subr.mxu0 %v423
  %1618 = vmatpush1.msra.mxu0 %v422
  %1619 = vmatprep.subr.mxu0 %v427
  %1620 = vmatpush1.msra.mxu0 %v426
  %1621 = vmatprep.subr.mxu0 %v431
  %1622 = vmatpush1.msra.mxu0 %v430
  %1623 = vmatprep.subr.mxu0 %v435
  %1624 = vmatpush1.msra.mxu0 %v434
  %1625 = vmatprep.subr.mxu0 %v439
  %1626 = vmatpush1.msra.mxu0 %v438
  %1627 = vmatprep.subr.mxu0 %v443
  %1628 = vmatpush1.msra.mxu0 %v442
  %1629 = vmatprep.subr.mxu0 %v447
  %1630 = vmatpush1.msra.mxu0 %v446
  %1631 = vmatprep.subr.mxu0 0.0
  %1632 = vmatpush1.msra.mxu0 0.0
  %1633 = vmatprep.subr.mxu0 0.0
  %1634 = vmatpush1.msra.mxu0 0.0
  %1635 = vmatprep.subr.mxu0 0.0
  %1636 = vmatpush1.msra.mxu0 0.0
  %1637 = vmatprep.subr.mxu0 0.0
  %1638 = vmatpush1.msra.mxu0 0.0
  %1639 = vmatprep.subr.mxu0 0.0
  %1640 = vmatpush1.msra.mxu0 0.0
  %1641 = vmatprep.subr.mxu0 0.0
  %1642 = vmatpush1.msra.mxu0 0.0
  %1643 = vmatprep.subr.mxu0 0.0
  %1644 = vmatpush1.msra.mxu0 0.0
  %1645 = vmatprep.subr.mxu0 0.0
  %1646 = vmatpush1.msra.mxu0 0.0
  %1647 = vmatprep.subr.mxu0 0.0
  %1648 = vmatpush1.msra.mxu0 0.0
  %1649 = vmatprep.subr.mxu0 0.0
  %1650 = vmatpush1.msra.mxu0 0.0
  %1651 = vmatprep.subr.mxu0 0.0
  %1652 = vmatpush1.msra.mxu0 0.0
  %1653 = vmatprep.subr.mxu0 0.0
  %1654 = vmatpush1.msra.mxu0 0.0
  %1655 = vmatprep.subr.mxu0 0.0
  %1656 = vmatpush1.msra.mxu0 0.0
  %1657 = vmatprep.subr.mxu0 0.0
  %1658 = vmatpush1.msra.mxu0 0.0
  %1659 = vmatprep.subr.mxu0 0.0
  %1660 = vmatpush1.msra.mxu0 0.0
  %1661 = vmatprep.subr.mxu0 0.0
  %1662 = vmatpush1.msra.mxu0 0.0
  %1663 = vmatprep.mubr.f32.mxu0 0.0
  %1664 = vmatmul.mubr.f32.gmra.mrb[0].mxu0 %v1518
  %v1665 = vpop.f32.mrb[0].mxu0
  %v1666 = vadd.f32 0.0, %v1665
  %v1667 = vpop.f32.mrb[0].mxu0
  %v1668 = vadd.f32 0.0, %v1667
  %1669 = vdwg.mxu0
  %v1670 = vadd.f32 %v1524, %v1595
  %v1671 = vadd.f32 %v1525, %v1597
  %v1672 = vadd.f32 %v1526, %v1666
  %v1673 = vadd.f32 %v1527, %v1668
  %v1674 = vxor.u32 %v1670, 2147483648
  %v1675 = vmul.f32 %v1674, 1.442695
  %v1676 = vpow.pop %v1675
  %v1677 = vadd.f32 %v1676, 1.0
  %v1678 = vrcp.pop %v1677
  %v1679 = vmul.f32 1.0, %v1678
  %v1680 = vxor.u32 %v1671, 2147483648
  %v1681 = vmul.f32 %v1680, 1.442695
  %v1682 = vpow.pop %v1681
  %v1683 = vadd.f32 %v1682, 1.0
  %v1684 = vrcp.pop %v1683
  %v1685 = vmul.f32 1.0, %v1684
  %v1686 = vtanh.pop %v1672
  %v1687 = vxor.u32 %v1673, 2147483648
  %v1688 = vmul.f32 %v1687, 1.442695
  %v1689 = vpow.pop %v1688
  %v1690 = vadd.f32 %v1689, 1.0
  %v1691 = vrcp.pop %v1690
  %v1692 = vmul.f32 1.0, %v1691
  %v1693 = vmul.f32 %v1685, %v1516
  %v1694 = vmul.f32 %v1679, %v1686
  %v1695 = vadd.f32 %v1693, %v1694
  %v1696 = vtanh.pop %v1695
  %v1697 = vmul.f32 %v1692, %v1696
  %s1698 = scalar_lea.vmem [#allocation3], 48
  %1699 = vst [vmem:[%s1698] sm:$0xff] %v1697
  %s1700 = smul.u32 7, 4
  %s1701 = smul.addr %s1700, 8
  %s1702 = scalar_lea.vmem [#allocation2], %s1701
  %v1703 = vld [vmem:[%s1702] sm:$0xff]
  %v1704 = vld [vmem:[%s1702 + $0x8] sm:$0xff]
  %v1705 = vld [vmem:[%s1702 + $0x10] sm:$0xff]
  %v1706 = vld [vmem:[%s1702 + $0x18] sm:$0xff]
  %1707 = vmatprep.subr.mxu0 %v385
  %1708 = vmatpush1.msra.mxu0 %v384
  %1709 = vmatprep.subr.mxu0 %v389
  %1710 = vmatpush1.msra.mxu0 %v388
  %1711 = vmatprep.subr.mxu0 %v393
  %1712 = vmatpush1.msra.mxu0 %v392
  %1713 = vmatprep.subr.mxu0 %v397
  %1714 = vmatpush1.msra.mxu0 %v396
  %1715 = vmatprep.subr.mxu0 %v401
  %1716 = vmatpush1.msra.mxu0 %v400
  %1717 = vmatprep.subr.mxu0 %v405
  %1718 = vmatpush1.msra.mxu0 %v404
  %1719 = vmatprep.subr.mxu0 %v409
  %1720 = vmatpush1.msra.mxu0 %v408
  %1721 = vmatprep.subr.mxu0 %v413
  %1722 = vmatpush1.msra.mxu0 %v412
  %1723 = vmatprep.subr.mxu0 %v417
  %1724 = vmatpush1.msra.mxu0 %v416
  %1725 = vmatprep.subr.mxu0 %v421
  %1726 = vmatpush1.msra.mxu0 %v420
  %1727 = vmatprep.subr.mxu0 %v425
  %1728 = vmatpush1.msra.mxu0 %v424
  %1729 = vmatprep.subr.mxu0 %v429
  %1730 = vmatpush1.msra.mxu0 %v428
  %1731 = vmatprep.subr.mxu0 %v433
  %1732 = vmatpush1.msra.mxu0 %v432
  %1733 = vmatprep.subr.mxu0 %v437
  %1734 = vmatpush1.msra.mxu0 %v436
  %1735 = vmatprep.subr.mxu0 %v441
  %1736 = vmatpush1.msra.mxu0 %v440
  %1737 = vmatprep.subr.mxu0 %v445
  %1738 = vmatpush1.msra.mxu0 %v444
  %1739 = vmatprep.subr.mxu0 0.0
  %1740 = vmatpush1.msra.mxu0 0.0
  %1741 = vmatprep.subr.mxu0 0.0
  %1742 = vmatpush1.msra.mxu0 0.0
  %1743 = vmatprep.subr.mxu0 0.0
  %1744 = vmatpush1.msra.mxu0 0.0
  %1745 = vmatprep.subr.mxu0 0.0
  %1746 = vmatpush1.msra.mxu0 0.0
  %1747 = vmatprep.subr.mxu0 0.0
  %1748 = vmatpush1.msra.mxu0 0.0
  %1749 = vmatprep.subr.mxu0 0.0
  %1750 = vmatpush1.msra.mxu0 0.0
  %1751 = vmatprep.subr.mxu0 0.0
  %1752 = vmatpush1.msra.mxu0 0.0
  %1753 = vmatprep.subr.mxu0 0.0
  %1754 = vmatpush1.msra.mxu0 0.0
  %1755 = vmatprep.subr.mxu0 0.0
  %1756 = vmatpush1.msra.mxu0 0.0
  %1757 = vmatprep.subr.mxu0 0.0
  %1758 = vmatpush1.msra.mxu0 0.0
  %1759 = vmatprep.subr.mxu0 0.0
  %1760 = vmatpush1.msra.mxu0 0.0
  %1761 = vmatprep.subr.mxu0 0.0
  %1762 = vmatpush1.msra.mxu0 0.0
  %1763 = vmatprep.subr.mxu0 0.0
  %1764 = vmatpush1.msra.mxu0 0.0
  %1765 = vmatprep.subr.mxu0 0.0
  %1766 = vmatpush1.msra.mxu0 0.0
  %1767 = vmatprep.subr.mxu0 0.0
  %1768 = vmatpush1.msra.mxu0 0.0
  %1769 = vmatprep.subr.mxu0 0.0
  %1770 = vmatpush1.msra.mxu0 0.0
  %1771 = vmatprep.mubr.f32.mxu0 0.0
  %1772 = vmatmul.mubr.f32.gmra.mrb[0].mxu0 %v1697
  %v1773 = vpop.f32.mrb[0].mxu0
  %v1774 = vadd.f32 0.0, %v1773
  %v1775 = vpop.f32.mrb[0].mxu0
  %v1776 = vadd.f32 0.0, %v1775
  %1777 = vdwg.mxu0
  %1778 = vmatprep.subr.mxu0 %v387
  %1779 = vmatpush1.msra.mxu0 %v386
  %1780 = vmatprep.subr.mxu0 %v391
  %1781 = vmatpush1.msra.mxu0 %v390
  %1782 = vmatprep.subr.mxu0 %v395
  %1783 = vmatpush1.msra.mxu0 %v394
  %1784 = vmatprep.subr.mxu0 %v399
  %1785 = vmatpush1.msra.mxu0 %v398
  %1786 = vmatprep.subr.mxu0 %v403
  %1787 = vmatpush1.msra.mxu0 %v402
  %1788 = vmatprep.subr.mxu0 %v407
  %1789 = vmatpush1.msra.mxu0 %v406
  %1790 = vmatprep.subr.mxu0 %v411
  %1791 = vmatpush1.msra.mxu0 %v410
  %1792 = vmatprep.subr.mxu0 %v415
  %1793 = vmatpush1.msra.mxu0 %v414
  %1794 = vmatprep.subr.mxu0 %v419
  %1795 = vmatpush1.msra.mxu0 %v418
  %1796 = vmatprep.subr.mxu0 %v423
  %1797 = vmatpush1.msra.mxu0 %v422
  %1798 = vmatprep.subr.mxu0 %v427
  %1799 = vmatpush1.msra.mxu0 %v426
  %1800 = vmatprep.subr.mxu0 %v431
  %1801 = vmatpush1.msra.mxu0 %v430
  %1802 = vmatprep.subr.mxu0 %v435
  %1803 = vmatpush1.msra.mxu0 %v434
  %1804 = vmatprep.subr.mxu0 %v439
  %1805 = vmatpush1.msra.mxu0 %v438
  %1806 = vmatprep.subr.mxu0 %v443
  %1807 = vmatpush1.msra.mxu0 %v442
  %1808 = vmatprep.subr.mxu0 %v447
  %1809 = vmatpush1.msra.mxu0 %v446
  %1810 = vmatprep.subr.mxu0 0.0
  %1811 = vmatpush1.msra.mxu0 0.0
  %1812 = vmatprep.subr.mxu0 0.0
  %1813 = vmatpush1.msra.mxu0 0.0
  %1814 = vmatprep.subr.mxu0 0.0
  %1815 = vmatpush1.msra.mxu0 0.0
  %1816 = vmatprep.subr.mxu0 0.0
  %1817 = vmatpush1.msra.mxu0 0.0
  %1818 = vmatprep.subr.mxu0 0.0
  %1819 = vmatpush1.msra.mxu0 0.0
  %1820 = vmatprep.subr.mxu0 0.0
  %1821 = vmatpush1.msra.mxu0 0.0
  %1822 = vmatprep.subr.mxu0 0.0
  %1823 = vmatpush1.msra.mxu0 0.0
  %1824 = vmatprep.subr.mxu0 0.0
  %1825 = vmatpush1.msra.mxu0 0.0
  %1826 = vmatprep.subr.mxu0 0.0
  %1827 = vmatpush1.msra.mxu0 0.0
  %1828 = vmatprep.subr.mxu0 0.0
  %1829 = vmatpush1.msra.mxu0 0.0
  %1830 = vmatprep.subr.mxu0 0.0
  %1831 = vmatpush1.msra.mxu0 0.0
  %1832 = vmatprep.subr.mxu0 0.0
  %1833 = vmatpush1.msra.mxu0 0.0
  %1834 = vmatprep.subr.mxu0 0.0
  %1835 = vmatpush1.msra.mxu0 0.0
  %1836 = vmatprep.subr.mxu0 0.0
  %1837 = vmatpush1.msra.mxu0 0.0
  %1838 = vmatprep.subr.mxu0 0.0
  %1839 = vmatpush1.msra.mxu0 0.0
  %1840 = vmatprep.subr.mxu0 0.0
  %1841 = vmatpush1.msra.mxu0 0.0
  %1842 = vmatprep.mubr.f32.mxu0 0.0
  %1843 = vmatmul.mubr.f32.gmra.mrb[0].mxu0 %v1697
  %v1844 = vpop.f32.mrb[0].mxu0
  %v1845 = vadd.f32 0.0, %v1844
  %v1846 = vpop.f32.mrb[0].mxu0
  %v1847 = vadd.f32 0.0, %v1846
  %1848 = vdwg.mxu0
  %v1849 = vadd.f32 %v1703, %v1774
  %v1850 = vadd.f32 %v1704, %v1776
  %v1851 = vadd.f32 %v1705, %v1845
  %v1852 = vadd.f32 %v1706, %v1847
  %v1853 = vxor.u32 %v1849, 2147483648
  %v1854 = vmul.f32 %v1853, 1.442695
  %v1855 = vpow.pop %v1854
  %v1856 = vadd.f32 %v1855, 1.0
  %v1857 = vrcp.pop %v1856
  %v1858 = vmul.f32 1.0, %v1857
  %v1859 = vxor.u32 %v1850, 2147483648
  %v1860 = vmul.f32 %v1859, 1.442695
  %v1861 = vpow.pop %v1860
  %v1862 = vadd.f32 %v1861, 1.0
  %v1863 = vrcp.pop %v1862
  %v1864 = vmul.f32 1.0, %v1863
  %v1865 = vtanh.pop %v1851
  %v1866 = vxor.u32 %v1852, 2147483648
  %v1867 = vmul.f32 %v1866, 1.442695
  %v1868 = vpow.pop %v1867
  %v1869 = vadd.f32 %v1868, 1.0
  %v1870 = vrcp.pop %v1869
  %v1871 = vmul.f32 1.0, %v1870
  %v1872 = vmul.f32 %v1864, %v1695
  %v1873 = vmul.f32 %v1858, %v1865
  %v1874 = vadd.f32 %v1872, %v1873
  %v1875 = vtanh.pop %v1874
  %v1876 = vmul.f32 %v1871, %v1875
  %s1877 = scalar_lea.vmem [#allocation3], 56
  %1878 = vst [vmem:[%s1877] sm:$0xff] %v1876
  %v1879 = vld [vmem:[#allocation3] sm:$0xff]
  %v1880 = vld [vmem:[#allocation3 + $0x8] sm:$0xff]
  %v1881 = vld [vmem:[#allocation3 + $0x10] sm:$0xff]
  %v1882 = vld [vmem:[#allocation3 + $0x18] sm:$0xff]
  %v1883 = vld [vmem:[#allocation3 + $0x20] sm:$0xff]
  %v1884 = vld [vmem:[#allocation3 + $0x28] sm:$0xff]
  %v1885 = vld [vmem:[#allocation3 + $0x30] sm:$0xff]
  %v1886 = vld [vmem:[#allocation3 + $0x38] sm:$0xff]
  %v1887 = vld [vmem:[%s4] sm:$0xff]
  %v1888 = vld [vmem:[%s4 + $0x8] sm:$0xff]
  %v1889 = vld [vmem:[%s4 + $0x10] sm:$0xff]
  %v1890 = vld [vmem:[%s4 + $0x18] sm:$0xff]
  %v1891 = vld [vmem:[%s4 + $0x20] sm:$0xff]
  %v1892 = vld [vmem:[%s4 + $0x28] sm:$0xff]
  %v1893 = vld [vmem:[%s4 + $0x30] sm:$0xff]
  %v1894 = vld [vmem:[%s4 + $0x38] sm:$0xff]
  %v1895 = vld [vmem:[%s4 + $0x40] sm:$0xff]
  %v1896 = vld [vmem:[%s4 + $0x48] sm:$0xff]
  %v1897 = vld [vmem:[%s4 + $0x50] sm:$0xff]
  %v1898 = vld [vmem:[%s4 + $0x58] sm:$0xff]
  %v1899 = vld [vmem:[%s4 + $0x60] sm:$0xff]
  %v1900 = vld [vmem:[%s4 + $0x68] sm:$0xff]
  %v1901 = vld [vmem:[%s4 + $0x70] sm:$0xff]
  %v1902 = vld [vmem:[%s4 + $0x78] sm:$0xff]
  %v1903 = vld [vmem:[%s4 + $0x80] sm:$0xff]
  %v1904 = vld [vmem:[%s4 + $0x88] sm:$0xff]
  %v1905 = vld [vmem:[%s4 + $0x90] sm:$0xff]
  %v1906 = vld [vmem:[%s4 + $0x98] sm:$0xff]
  %v1907 = vld [vmem:[%s4 + $0xa0] sm:$0xff]
  %v1908 = vld [vmem:[%s4 + $0xa8] sm:$0xff]
  %v1909 = vld [vmem:[%s4 + $0xb0] sm:$0xff]
  %v1910 = vld [vmem:[%s4 + $0xb8] sm:$0xff]
  %v1911 = vld [vmem:[%s4 + $0xc0] sm:$0xff]
  %v1912 = vld [vmem:[%s4 + $0xc8] sm:$0xff]
  %v1913 = vld [vmem:[%s4 + $0xd0] sm:$0xff]
  %v1914 = vld [vmem:[%s4 + $0xd8] sm:$0xff]
  %v1915 = vld [vmem:[%s4 + $0xe0] sm:$0xff]
  %v1916 = vld [vmem:[%s4 + $0xe8] sm:$0xff]
  %v1917 = vld [vmem:[%s4 + $0xf0] sm:$0xff]
  %v1918 = vld [vmem:[%s4 + $0xf8] sm:$0xff]
  %v1919 = vld [vmem:[%s4 + $0x100] sm:$0xff]
  %v1920 = vld [vmem:[%s4 + $0x108] sm:$0xff]
  %v1921 = vld [vmem:[%s4 + $0x110] sm:$0xff]
  %v1922 = vld [vmem:[%s4 + $0x118] sm:$0xff]
  %v1923 = vld [vmem:[%s4 + $0x120] sm:$0xff]
  %v1924 = vld [vmem:[%s4 + $0x128] sm:$0xff]
  %v1925 = vld [vmem:[%s4 + $0x130] sm:$0xff]
  %v1926 = vld [vmem:[%s4 + $0x138] sm:$0xff]
  %v1927 = vld [vmem:[%s4 + $0x140] sm:$0xff]
  %v1928 = vld [vmem:[%s4 + $0x148] sm:$0xff]
  %v1929 = vld [vmem:[%s4 + $0x150] sm:$0xff]
  %v1930 = vld [vmem:[%s4 + $0x158] sm:$0xff]
  %v1931 = vld [vmem:[%s4 + $0x160] sm:$0xff]
  %v1932 = vld [vmem:[%s4 + $0x168] sm:$0xff]
  %v1933 = vld [vmem:[%s4 + $0x170] sm:$0xff]
  %v1934 = vld [vmem:[%s4 + $0x178] sm:$0xff]
  %v1935 = vld [vmem:[%s4 + $0x180] sm:$0xff]
  %v1936 = vld [vmem:[%s4 + $0x188] sm:$0xff]
  %v1937 = vld [vmem:[%s4 + $0x190] sm:$0xff]
  %v1938 = vld [vmem:[%s4 + $0x198] sm:$0xff]
  %v1939 = vld [vmem:[%s4 + $0x1a0] sm:$0xff]
  %v1940 = vld [vmem:[%s4 + $0x1a8] sm:$0xff]
  %v1941 = vld [vmem:[%s4 + $0x1b0] sm:$0xff]
  %v1942 = vld [vmem:[%s4 + $0x1b8] sm:$0xff]
  %v1943 = vld [vmem:[%s4 + $0x1c0] sm:$0xff]
  %v1944 = vld [vmem:[%s4 + $0x1c8] sm:$0xff]
  %v1945 = vld [vmem:[%s4 + $0x1d0] sm:$0xff]
  %v1946 = vld [vmem:[%s4 + $0x1d8] sm:$0xff]
  %v1947 = vld [vmem:[%s4 + $0x1e0] sm:$0xff]
  %v1948 = vld [vmem:[%s4 + $0x1e8] sm:$0xff]
  %v1949 = vld [vmem:[%s4 + $0x1f0] sm:$0xff]
  %v1950 = vld [vmem:[%s4 + $0x1f8] sm:$0xff]
  %v1951 = vld [vmem:[%s6] sm:$0xf]
  %v1953 = vlaneseq
  %v1954 = vshrl.u32 %v1953, 7
  %v1955 = vsub.s32 0, %v1954
  %v1956 = vrot.slane %v1951, %v1955
  %v1957 = vlaneseq
  %v1958 = vshrl.u32 %v1957, 7
  %v1959 = vsub.s32 1, %v1958
  %v1960 = vrot.slane %v1951, %v1959
  %v1961 = vlaneseq
  %v1962 = vshrl.u32 %v1961, 7
  %v1963 = vsub.s32 2, %v1962
  %v1964 = vrot.slane %v1951, %v1963
  %v1965 = vlaneseq
  %v1966 = vshrl.u32 %v1965, 7
  %v1967 = vsub.s32 3, %v1966
  %v1968 = vrot.slane %v1951, %v1967
  %1973 = vmatprep.subr.mxu0 %v1888
  %1974 = vmatpush1.msra.mxu0 %v1887
  %1975 = vmatprep.subr.mxu0 %v1892
  %1976 = vmatpush1.msra.mxu0 %v1891
  %1977 = vmatprep.subr.mxu0 %v1896
  %1978 = vmatpush1.msra.mxu0 %v1895
  %1979 = vmatprep.subr.mxu0 %v1900
  %1980 = vmatpush1.msra.mxu0 %v1899
  %1981 = vmatprep.subr.mxu0 %v1904
  %1982 = vmatpush1.msra.mxu0 %v1903
  %1983 = vmatprep.subr.mxu0 %v1908
  %1984 = vmatpush1.msra.mxu0 %v1907
  %1985 = vmatprep.subr.mxu0 %v1912
  %1986 = vmatpush1.msra.mxu0 %v1911
  %1987 = vmatprep.subr.mxu0 %v1916
  %1988 = vmatpush1.msra.mxu0 %v1915
  %1989 = vmatprep.subr.mxu0 %v1920
  %1990 = vmatpush1.msra.mxu0 %v1919
  %1991 = vmatprep.subr.mxu0 %v1924
  %1992 = vmatpush1.msra.mxu0 %v1923
  %1993 = vmatprep.subr.mxu0 %v1928
  %1994 = vmatpush1.msra.mxu0 %v1927
  %1995 = vmatprep.subr.mxu0 %v1932
  %1996 = vmatpush1.msra.mxu0 %v1931
  %1997 = vmatprep.subr.mxu0 %v1936
  %1998 = vmatpush1.msra.mxu0 %v1935
  %1999 = vmatprep.subr.mxu0 %v1940
  %2000 = vmatpush1.msra.mxu0 %v1939
  %2001 = vmatprep.subr.mxu0 %v1944
  %2002 = vmatpush1.msra.mxu0 %v1943
  %2003 = vmatprep.subr.mxu0 %v1948
  %2004 = vmatpush1.msra.mxu0 %v1947
  %2005 = vmatprep.subr.mxu0 0.0
  %2006 = vmatpush1.msra.mxu0 0.0
  %2007 = vmatprep.subr.mxu0 0.0
  %2008 = vmatpush1.msra.mxu0 0.0
  %2009 = vmatprep.subr.mxu0 0.0
  %2010 = vmatpush1.msra.mxu0 0.0
  %2011 = vmatprep.subr.mxu0 0.0
  %2012 = vmatpush1.msra.mxu0 0.0
  %2013 = vmatprep.subr.mxu0 0.0
  %2014 = vmatpush1.msra.mxu0 0.0
  %2015 = vmatprep.subr.mxu0 0.0
  %2016 = vmatpush1.msra.mxu0 0.0
  %2017 = vmatprep.subr.mxu0 0.0
  %2018 = vmatpush1.msra.mxu0 0.0
  %2019 = vmatprep.subr.mxu0 0.0
  %2020 = vmatpush1.msra.mxu0 0.0
  %2021 = vmatprep.subr.mxu0 0.0
  %2022 = vmatpush1.msra.mxu0 0.0
  %2023 = vmatprep.subr.mxu0 0.0
  %2024 = vmatpush1.msra.mxu0 0.0
  %2025 = vmatprep.subr.mxu0 0.0
  %2026 = vmatpush1.msra.mxu0 0.0
  %2027 = vmatprep.subr.mxu0 0.0
  %2028 = vmatpush1.msra.mxu0 0.0
  %2029 = vmatprep.subr.mxu0 0.0
  %2030 = vmatpush1.msra.mxu0 0.0
  %2031 = vmatprep.subr.mxu0 0.0
  %2032 = vmatpush1.msra.mxu0 0.0
  %2033 = vmatprep.subr.mxu0 0.0
  %2034 = vmatpush1.msra.mxu0 0.0
  %2035 = vmatprep.subr.mxu0 0.0
  %2036 = vmatpush1.msra.mxu0 0.0
  %2037 = vmatprep.mubr.f32.mxu0 0.0
  %2038 = vmatmul.mubr.f32.gmra.mrb[0].mxu0 %v1879
  %v2039 = vpop.f32.mrb[0].mxu0
  %v2040 = vadd.f32 %v1956, %v2039
  %v2041 = vpop.f32.mrb[0].mxu0
  %v2042 = vadd.f32 %v1960, %v2041
  %2043 = vmatprep.mubr.f32.mxu0 0.0
  %2044 = vmatmul.mubr.f32.gmra.mrb[0].mxu0 %v1880
  %v2045 = vpop.f32.mrb[0].mxu0
  %v2046 = vadd.f32 %v1956, %v2045
  %v2047 = vpop.f32.mrb[0].mxu0
  %v2048 = vadd.f32 %v1960, %v2047
  %2049 = vmatprep.mubr.f32.mxu0 0.0
  %2050 = vmatmul.mubr.f32.gmra.mrb[0].mxu0 %v1881
  %v2051 = vpop.f32.mrb[0].mxu0
  %v2052 = vadd.f32 %v1956, %v2051
  %v2053 = vpop.f32.mrb[0].mxu0
  %v2054 = vadd.f32 %v1960, %v2053
  %2055 = vmatprep.mubr.f32.mxu0 0.0
  %2056 = vmatmul.mubr.f32.gmra.mrb[0].mxu0 %v1882
  %v2057 = vpop.f32.mrb[0].mxu0
  %v2058 = vadd.f32 %v1956, %v2057
  %v2059 = vpop.f32.mrb[0].mxu0
  %v2060 = vadd.f32 %v1960, %v2059
  %2061 = vmatprep.mubr.f32.mxu0 0.0
  %2062 = vmatmul.mubr.f32.gmra.mrb[0].mxu0 %v1883
  %v2063 = vpop.f32.mrb[0].mxu0
  %v2064 = vadd.f32 %v1956, %v2063
  %v2065 = vpop.f32.mrb[0].mxu0
  %v2066 = vadd.f32 %v1960, %v2065
  %2067 = vmatprep.mubr.f32.mxu0 0.0
  %2068 = vmatmul.mubr.f32.gmra.mrb[0].mxu0 %v1884
  %v2069 = vpop.f32.mrb[0].mxu0
  %v2070 = vadd.f32 %v1956, %v2069
  %v2071 = vpop.f32.mrb[0].mxu0
  %v2072 = vadd.f32 %v1960, %v2071
  %2073 = vmatprep.mubr.f32.mxu0 0.0
  %2074 = vmatmul.mubr.f32.gmra.mrb[0].mxu0 %v1885
  %v2075 = vpop.f32.mrb[0].mxu0
  %v2076 = vadd.f32 %v1956, %v2075
  %v2077 = vpop.f32.mrb[0].mxu0
  %v2078 = vadd.f32 %v1960, %v2077
  %2079 = vmatprep.mubr.f32.mxu0 0.0
  %2080 = vmatmul.mubr.f32.gmra.mrb[0].mxu0 %v1886
  %v2081 = vpop.f32.mrb[0].mxu0
  %v2082 = vadd.f32 %v1956, %v2081
  %v2083 = vpop.f32.mrb[0].mxu0
  %v2084 = vadd.f32 %v1960, %v2083
  %2085 = vdwg.mxu0
  %2086 = vmatprep.subr.mxu0 %v1890
  %2087 = vmatpush1.msra.mxu0 %v1889
  %2088 = vmatprep.subr.mxu0 %v1894
  %2089 = vmatpush1.msra.mxu0 %v1893
  %2090 = vmatprep.subr.mxu0 %v1898
  %2091 = vmatpush1.msra.mxu0 %v1897
  %2092 = vmatprep.subr.mxu0 %v1902
  %2093 = vmatpush1.msra.mxu0 %v1901
  %2094 = vmatprep.subr.mxu0 %v1906
  %2095 = vmatpush1.msra.mxu0 %v1905
  %2096 = vmatprep.subr.mxu0 %v1910
  %2097 = vmatpush1.msra.mxu0 %v1909
  %2098 = vmatprep.subr.mxu0 %v1914
  %2099 = vmatpush1.msra.mxu0 %v1913
  %2100 = vmatprep.subr.mxu0 %v1918
  %2101 = vmatpush1.msra.mxu0 %v1917
  %2102 = vmatprep.subr.mxu0 %v1922
  %2103 = vmatpush1.msra.mxu0 %v1921
  %2104 = vmatprep.subr.mxu0 %v1926
  %2105 = vmatpush1.msra.mxu0 %v1925
  %2106 = vmatprep.subr.mxu0 %v1930
  %2107 = vmatpush1.msra.mxu0 %v1929
  %2108 = vmatprep.subr.mxu0 %v1934
  %2109 = vmatpush1.msra.mxu0 %v1933
  %2110 = vmatprep.subr.mxu0 %v1938
  %2111 = vmatpush1.msra.mxu0 %v1937
  %2112 = vmatprep.subr.mxu0 %v1942
  %2113 = vmatpush1.msra.mxu0 %v1941
  %2114 = vmatprep.subr.mxu0 %v1946
  %2115 = vmatpush1.msra.mxu0 %v1945
  %2116 = vmatprep.subr.mxu0 %v1950
  %2117 = vmatpush1.msra.mxu0 %v1949
  %2118 = vmatprep.subr.mxu0 0.0
  %2119 = vmatpush1.msra.mxu0 0.0
  %2120 = vmatprep.subr.mxu0 0.0
  %2121 = vmatpush1.msra.mxu0 0.0
  %2122 = vmatprep.subr.mxu0 0.0
  %2123 = vmatpush1.msra.mxu0 0.0
  %2124 = vmatprep.subr.mxu0 0.0
  %2125 = vmatpush1.msra.mxu0 0.0
  %2126 = vmatprep.subr.mxu0 0.0
  %2127 = vmatpush1.msra.mxu0 0.0
  %2128 = vmatprep.subr.mxu0 0.0
  %2129 = vmatpush1.msra.mxu0 0.0
  %2130 = vmatprep.subr.mxu0 0.0
  %2131 = vmatpush1.msra.mxu0 0.0
  %2132 = vmatprep.subr.mxu0 0.0
  %2133 = vmatpush1.msra.mxu0 0.0
  %2134 = vmatprep.subr.mxu0 0.0
  %2135 = vmatpush1.msra.mxu0 0.0
  %2136 = vmatprep.subr.mxu0 0.0
  %2137 = vmatpush1.msra.mxu0 0.0
  %2138 = vmatprep.subr.mxu0 0.0
  %2139 = vmatpush1.msra.mxu0 0.0
  %2140 = vmatprep.subr.mxu0 0.0
  %2141 = vmatpush1.msra.mxu0 0.0
  %2142 = vmatprep.subr.mxu0 0.0
  %2143 = vmatpush1.msra.mxu0 0.0
  %2144 = vmatprep.subr.mxu0 0.0
  %2145 = vmatpush1.msra.mxu0 0.0
  %2146 = vmatprep.subr.mxu0 0.0
  %2147 = vmatpush1.msra.mxu0 0.0
  %2148 = vmatprep.subr.mxu0 0.0
  %2149 = vmatpush1.msra.mxu0 0.0
  %2150 = vmatprep.mubr.f32.mxu0 0.0
  %2151 = vmatmul.mubr.f32.gmra.mrb[0].mxu0 %v1879
  %v2152 = vpop.f32.mrb[0].mxu0
  %v2153 = vadd.f32 %v1964, %v2152
  %v2154 = vpop.f32.mrb[0].mxu0
  %v2155 = vadd.f32 %v1968, %v2154
  %2156 = vmatprep.mubr.f32.mxu0 0.0
  %2157 = vmatmul.mubr.f32.gmra.mrb[0].mxu0 %v1880
  %v2158 = vpop.f32.mrb[0].mxu0
  %v2159 = vadd.f32 %v1964, %v2158
  %v2160 = vpop.f32.mrb[0].mxu0
  %v2161 = vadd.f32 %v1968, %v2160
  %2162 = vmatprep.mubr.f32.mxu0 0.0
  %2163 = vmatmul.mubr.f32.gmra.mrb[0].mxu0 %v1881
  %v2164 = vpop.f32.mrb[0].mxu0
  %v2165 = vadd.f32 %v1964, %v2164
  %v2166 = vpop.f32.mrb[0].mxu0
  %v2167 = vadd.f32 %v1968, %v2166
  %2168 = vmatprep.mubr.f32.mxu0 0.0
  %2169 = vmatmul.mubr.f32.gmra.mrb[0].mxu0 %v1882
  %v2170 = vpop.f32.mrb[0].mxu0
  %v2171 = vadd.f32 %v1964, %v2170
  %v2172 = vpop.f32.mrb[0].mxu0
  %v2173 = vadd.f32 %v1968, %v2172
  %2174 = vmatprep.mubr.f32.mxu0 0.0
  %2175 = vmatmul.mubr.f32.gmra.mrb[0].mxu0 %v1883
  %v2176 = vpop.f32.mrb[0].mxu0
  %v2177 = vadd.f32 %v1964, %v2176
  %v2178 = vpop.f32.mrb[0].mxu0
  %v2179 = vadd.f32 %v1968, %v2178
  %2180 = vmatprep.mubr.f32.mxu0 0.0
  %2181 = vmatmul.mubr.f32.gmra.mrb[0].mxu0 %v1884
  %v2182 = vpop.f32.mrb[0].mxu0
  %v2183 = vadd.f32 %v1964, %v2182
  %v2184 = vpop.f32.mrb[0].mxu0
  %v2185 = vadd.f32 %v1968, %v2184
  %2186 = vmatprep.mubr.f32.mxu0 0.0
  %2187 = vmatmul.mubr.f32.gmra.mrb[0].mxu0 %v1885
  %v2188 = vpop.f32.mrb[0].mxu0
  %v2189 = vadd.f32 %v1964, %v2188
  %v2190 = vpop.f32.mrb[0].mxu0
  %v2191 = vadd.f32 %v1968, %v2190
  %2192 = vmatprep.mubr.f32.mxu0 0.0
  %2193 = vmatmul.mubr.f32.gmra.mrb[0].mxu0 %v1886
  %v2194 = vpop.f32.mrb[0].mxu0
  %v2195 = vadd.f32 %v1964, %v2194
  %v2196 = vpop.f32.mrb[0].mxu0
  %v2197 = vadd.f32 %v1968, %v2196
  %2198 = vdwg.mxu0
  %2199 = vst [vmem:[#allocation2] sm:$0xff] %v2040
  %2200 = vst [vmem:[#allocation2 + $0x8] sm:$0xff] %v2042
  %2201 = vst [vmem:[#allocation2 + $0x10] sm:$0xff] %v2153
  %2202 = vst [vmem:[#allocation2 + $0x18] sm:$0xff] %v2155
  %2203 = vst [vmem:[#allocation2 + $0x20] sm:$0xff] %v2046
  %2204 = vst [vmem:[#allocation2 + $0x28] sm:$0xff] %v2048
  %2205 = vst [vmem:[#allocation2 + $0x30] sm:$0xff] %v2159
  %2206 = vst [vmem:[#allocation2 + $0x38] sm:$0xff] %v2161
  %2207 = vst [vmem:[#allocation2 + $0x40] sm:$0xff] %v2052
  %2208 = vst [vmem:[#allocation2 + $0x48] sm:$0xff] %v2054
  %2209 = vst [vmem:[#allocation2 + $0x50] sm:$0xff] %v2165
  %2210 = vst [vmem:[#allocation2 + $0x58] sm:$0xff] %v2167
  %2211 = vst [vmem:[#allocation2 + $0x60] sm:$0xff] %v2058
  %2212 = vst [vmem:[#allocation2 + $0x68] sm:$0xff] %v2060
  %2213 = vst [vmem:[#allocation2 + $0x70] sm:$0xff] %v2171
  %2214 = vst [vmem:[#allocation2 + $0x78] sm:$0xff] %v2173
  %2215 = vst [vmem:[#allocation2 + $0x80] sm:$0xff] %v2064
  %2216 = vst [vmem:[#allocation2 + $0x88] sm:$0xff] %v2066
  %2217 = vst [vmem:[#allocation2 + $0x90] sm:$0xff] %v2177
  %2218 = vst [vmem:[#allocation2 + $0x98] sm:$0xff] %v2179
  %2219 = vst [vmem:[#allocation2 + $0xa0] sm:$0xff] %v2070
  %2220 = vst [vmem:[#allocation2 + $0xa8] sm:$0xff] %v2072
  %2221 = vst [vmem:[#allocation2 + $0xb0] sm:$0xff] %v2183
  %2222 = vst [vmem:[#allocation2 + $0xb8] sm:$0xff] %v2185
  %2223 = vst [vmem:[#allocation2 + $0xc0] sm:$0xff] %v2076
  %2224 = vst [vmem:[#allocation2 + $0xc8] sm:$0xff] %v2078
  %2225 = vst [vmem:[#allocation2 + $0xd0] sm:$0xff] %v2189
  %2226 = vst [vmem:[#allocation2 + $0xd8] sm:$0xff] %v2191
  %2227 = vst [vmem:[#allocation2 + $0xe0] sm:$0xff] %v2082
  %2228 = vst [vmem:[#allocation2 + $0xe8] sm:$0xff] %v2084
  %2229 = vst [vmem:[#allocation2 + $0xf0] sm:$0xff] %v2195
  %2230 = vst [vmem:[#allocation2 + $0xf8] sm:$0xff] %v2197
  %v2231 = vld [vmem:[%s5] sm:$0xff]
  %v2232 = vld [vmem:[%s5 + $0x8] sm:$0xff]
  %v2233 = vld [vmem:[%s5 + $0x10] sm:$0xff]
  %v2234 = vld [vmem:[%s5 + $0x18] sm:$0xff]
  %v2235 = vld [vmem:[%s5 + $0x20] sm:$0xff]
  %v2236 = vld [vmem:[%s5 + $0x28] sm:$0xff]
  %v2237 = vld [vmem:[%s5 + $0x30] sm:$0xff]
  %v2238 = vld [vmem:[%s5 + $0x38] sm:$0xff]
  %v2239 = vld [vmem:[%s5 + $0x40] sm:$0xff]
  %v2240 = vld [vmem:[%s5 + $0x48] sm:$0xff]
  %v2241 = vld [vmem:[%s5 + $0x50] sm:$0xff]
  %v2242 = vld [vmem:[%s5 + $0x58] sm:$0xff]
  %v2243 = vld [vmem:[%s5 + $0x60] sm:$0xff]
  %v2244 = vld [vmem:[%s5 + $0x68] sm:$0xff]
  %v2245 = vld [vmem:[%s5 + $0x70] sm:$0xff]
  %v2246 = vld [vmem:[%s5 + $0x78] sm:$0xff]
  %v2247 = vld [vmem:[%s5 + $0x80] sm:$0xff]
  %v2248 = vld [vmem:[%s5 + $0x88] sm:$0xff]
  %v2249 = vld [vmem:[%s5 + $0x90] sm:$0xff]
  %v2250 = vld [vmem:[%s5 + $0x98] sm:$0xff]
  %v2251 = vld [vmem:[%s5 + $0xa0] sm:$0xff]
  %v2252 = vld [vmem:[%s5 + $0xa8] sm:$0xff]
  %v2253 = vld [vmem:[%s5 + $0xb0] sm:$0xff]
  %v2254 = vld [vmem:[%s5 + $0xb8] sm:$0xff]
  %v2255 = vld [vmem:[%s5 + $0xc0] sm:$0xff]
  %v2256 = vld [vmem:[%s5 + $0xc8] sm:$0xff]
  %v2257 = vld [vmem:[%s5 + $0xd0] sm:$0xff]
  %v2258 = vld [vmem:[%s5 + $0xd8] sm:$0xff]
  %v2259 = vld [vmem:[%s5 + $0xe0] sm:$0xff]
  %v2260 = vld [vmem:[%s5 + $0xe8] sm:$0xff]
  %v2261 = vld [vmem:[%s5 + $0xf0] sm:$0xff]
  %v2262 = vld [vmem:[%s5 + $0xf8] sm:$0xff]
  %v2263 = vld [vmem:[%s5 + $0x100] sm:$0xff]
  %v2264 = vld [vmem:[%s5 + $0x108] sm:$0xff]
  %v2265 = vld [vmem:[%s5 + $0x110] sm:$0xff]
  %v2266 = vld [vmem:[%s5 + $0x118] sm:$0xff]
  %v2267 = vld [vmem:[%s5 + $0x120] sm:$0xff]
  %v2268 = vld [vmem:[%s5 + $0x128] sm:$0xff]
  %v2269 = vld [vmem:[%s5 + $0x130] sm:$0xff]
  %v2270 = vld [vmem:[%s5 + $0x138] sm:$0xff]
  %v2271 = vld [vmem:[%s5 + $0x140] sm:$0xff]
  %v2272 = vld [vmem:[%s5 + $0x148] sm:$0xff]
  %v2273 = vld [vmem:[%s5 + $0x150] sm:$0xff]
  %v2274 = vld [vmem:[%s5 + $0x158] sm:$0xff]
  %v2275 = vld [vmem:[%s5 + $0x160] sm:$0xff]
  %v2276 = vld [vmem:[%s5 + $0x168] sm:$0xff]
  %v2277 = vld [vmem:[%s5 + $0x170] sm:$0xff]
  %v2278 = vld [vmem:[%s5 + $0x178] sm:$0xff]
  %v2279 = vld [vmem:[%s5 + $0x180] sm:$0xff]
  %v2280 = vld [vmem:[%s5 + $0x188] sm:$0xff]
  %v2281 = vld [vmem:[%s5 + $0x190] sm:$0xff]
  %v2282 = vld [vmem:[%s5 + $0x198] sm:$0xff]
  %v2283 = vld [vmem:[%s5 + $0x1a0] sm:$0xff]
  %v2284 = vld [vmem:[%s5 + $0x1a8] sm:$0xff]
  %v2285 = vld [vmem:[%s5 + $0x1b0] sm:$0xff]
  %v2286 = vld [vmem:[%s5 + $0x1b8] sm:$0xff]
  %v2287 = vld [vmem:[%s5 + $0x1c0] sm:$0xff]
  %v2288 = vld [vmem:[%s5 + $0x1c8] sm:$0xff]
  %v2289 = vld [vmem:[%s5 + $0x1d0] sm:$0xff]
  %v2290 = vld [vmem:[%s5 + $0x1d8] sm:$0xff]
  %v2291 = vld [vmem:[%s5 + $0x1e0] sm:$0xff]
  %v2292 = vld [vmem:[%s5 + $0x1e8] sm:$0xff]
  %v2293 = vld [vmem:[%s5 + $0x1f0] sm:$0xff]
  %v2294 = vld [vmem:[%s5 + $0x1f8] sm:$0xff]
  %v2295 = vld [vmem:[%s450] sm:$0xff]
  %v2296 = vld [vmem:[%s450 + $0x8] sm:$0xff]
  %v2297 = vld [vmem:[%s450 + $0x10] sm:$0xff]
  %v2298 = vld [vmem:[%s450 + $0x18] sm:$0xff]
  %2299 = vmatprep.subr.mxu0 %v2232
  %2300 = vmatpush1.msra.mxu0 %v2231
  %2301 = vmatprep.subr.mxu0 %v2236
  %2302 = vmatpush1.msra.mxu0 %v2235
  %2303 = vmatprep.subr.mxu0 %v2240
  %2304 = vmatpush1.msra.mxu0 %v2239
  %2305 = vmatprep.subr.mxu0 %v2244
  %2306 = vmatpush1.msra.mxu0 %v2243
  %2307 = vmatprep.subr.mxu0 %v2248
  %2308 = vmatpush1.msra.mxu0 %v2247
  %2309 = vmatprep.subr.mxu0 %v2252
  %2310 = vmatpush1.msra.mxu0 %v2251
  %2311 = vmatprep.subr.mxu0 %v2256
  %2312 = vmatpush1.msra.mxu0 %v2255
  %2313 = vmatprep.subr.mxu0 %v2260
  %2314 = vmatpush1.msra.mxu0 %v2259
  %2315 = vmatprep.subr.mxu0 %v2264
  %2316 = vmatpush1.msra.mxu0 %v2263
  %2317 = vmatprep.subr.mxu0 %v2268
  %2318 = vmatpush1.msra.mxu0 %v2267
  %2319 = vmatprep.subr.mxu0 %v2272
  %2320 = vmatpush1.msra.mxu0 %v2271
  %2321 = vmatprep.subr.mxu0 %v2276
  %2322 = vmatpush1.msra.mxu0 %v2275
  %2323 = vmatprep.subr.mxu0 %v2280
  %2324 = vmatpush1.msra.mxu0 %v2279
  %2325 = vmatprep.subr.mxu0 %v2284
  %2326 = vmatpush1.msra.mxu0 %v2283
  %2327 = vmatprep.subr.mxu0 %v2288
  %2328 = vmatpush1.msra.mxu0 %v2287
  %2329 = vmatprep.subr.mxu0 %v2292
  %2330 = vmatpush1.msra.mxu0 %v2291
  %2331 = vmatprep.subr.mxu0 0.0
  %2332 = vmatpush1.msra.mxu0 0.0
  %2333 = vmatprep.subr.mxu0 0.0
  %2334 = vmatpush1.msra.mxu0 0.0
  %2335 = vmatprep.subr.mxu0 0.0
  %2336 = vmatpush1.msra.mxu0 0.0
  %2337 = vmatprep.subr.mxu0 0.0
  %2338 = vmatpush1.msra.mxu0 0.0
  %2339 = vmatprep.subr.mxu0 0.0
  %2340 = vmatpush1.msra.mxu0 0.0
  %2341 = vmatprep.subr.mxu0 0.0
  %2342 = vmatpush1.msra.mxu0 0.0
  %2343 = vmatprep.subr.mxu0 0.0
  %2344 = vmatpush1.msra.mxu0 0.0
  %2345 = vmatprep.subr.mxu0 0.0
  %2346 = vmatpush1.msra.mxu0 0.0
  %2347 = vmatprep.subr.mxu0 0.0
  %2348 = vmatpush1.msra.mxu0 0.0
  %2349 = vmatprep.subr.mxu0 0.0
  %2350 = vmatpush1.msra.mxu0 0.0
  %2351 = vmatprep.subr.mxu0 0.0
  %2352 = vmatpush1.msra.mxu0 0.0
  %2353 = vmatprep.subr.mxu0 0.0
  %2354 = vmatpush1.msra.mxu0 0.0
  %2355 = vmatprep.subr.mxu0 0.0
  %2356 = vmatpush1.msra.mxu0 0.0
  %2357 = vmatprep.subr.mxu0 0.0
  %2358 = vmatpush1.msra.mxu0 0.0
  %2359 = vmatprep.subr.mxu0 0.0
  %2360 = vmatpush1.msra.mxu0 0.0
  %2361 = vmatprep.subr.mxu0 0.0
  %2362 = vmatpush1.msra.mxu0 0.0
  %2363 = vmatprep.mubr.f32.mxu0 0.0
  %2364 = vmatmul.mubr.f32.gmra.mrb[0].mxu0 0.0
  %v2365 = vpop.f32.mrb[0].mxu0
  %v2366 = vadd.f32 0.0, %v2365
  %v2367 = vpop.f32.mrb[0].mxu0
  %v2368 = vadd.f32 0.0, %v2367
  %2369 = vdwg.mxu0
  %2370 = vmatprep.subr.mxu0 %v2234
  %2371 = vmatpush1.msra.mxu0 %v2233
  %2372 = vmatprep.subr.mxu0 %v2238
  %2373 = vmatpush1.msra.mxu0 %v2237
  %2374 = vmatprep.subr.mxu0 %v2242
  %2375 = vmatpush1.msra.mxu0 %v2241
  %2376 = vmatprep.subr.mxu0 %v2246
  %2377 = vmatpush1.msra.mxu0 %v2245
  %2378 = vmatprep.subr.mxu0 %v2250
  %2379 = vmatpush1.msra.mxu0 %v2249
  %2380 = vmatprep.subr.mxu0 %v2254
  %2381 = vmatpush1.msra.mxu0 %v2253
  %2382 = vmatprep.subr.mxu0 %v2258
  %2383 = vmatpush1.msra.mxu0 %v2257
  %2384 = vmatprep.subr.mxu0 %v2262
  %2385 = vmatpush1.msra.mxu0 %v2261
  %2386 = vmatprep.subr.mxu0 %v2266
  %2387 = vmatpush1.msra.mxu0 %v2265
  %2388 = vmatprep.subr.mxu0 %v2270
  %2389 = vmatpush1.msra.mxu0 %v2269
  %2390 = vmatprep.subr.mxu0 %v2274
  %2391 = vmatpush1.msra.mxu0 %v2273
  %2392 = vmatprep.subr.mxu0 %v2278
  %2393 = vmatpush1.msra.mxu0 %v2277
  %2394 = vmatprep.subr.mxu0 %v2282
  %2395 = vmatpush1.msra.mxu0 %v2281
  %2396 = vmatprep.subr.mxu0 %v2286
  %2397 = vmatpush1.msra.mxu0 %v2285
  %2398 = vmatprep.subr.mxu0 %v2290
  %2399 = vmatpush1.msra.mxu0 %v2289
  %2400 = vmatprep.subr.mxu0 %v2294
  %2401 = vmatpush1.msra.mxu0 %v2293
  %2402 = vmatprep.subr.mxu0 0.0
  %2403 = vmatpush1.msra.mxu0 0.0
  %2404 = vmatprep.subr.mxu0 0.0
  %2405 = vmatpush1.msra.mxu0 0.0
  %2406 = vmatprep.subr.mxu0 0.0
  %2407 = vmatpush1.msra.mxu0 0.0
  %2408 = vmatprep.subr.mxu0 0.0
  %2409 = vmatpush1.msra.mxu0 0.0
  %2410 = vmatprep.subr.mxu0 0.0
  %2411 = vmatpush1.msra.mxu0 0.0
  %2412 = vmatprep.subr.mxu0 0.0
  %2413 = vmatpush1.msra.mxu0 0.0
  %2414 = vmatprep.subr.mxu0 0.0
  %2415 = vmatpush1.msra.mxu0 0.0
  %2416 = vmatprep.subr.mxu0 0.0
  %2417 = vmatpush1.msra.mxu0 0.0
  %2418 = vmatprep.subr.mxu0 0.0
  %2419 = vmatpush1.msra.mxu0 0.0
  %2420 = vmatprep.subr.mxu0 0.0
  %2421 = vmatpush1.msra.mxu0 0.0
  %2422 = vmatprep.subr.mxu0 0.0
  %2423 = vmatpush1.msra.mxu0 0.0
  %2424 = vmatprep.subr.mxu0 0.0
  %2425 = vmatpush1.msra.mxu0 0.0
  %2426 = vmatprep.subr.mxu0 0.0
  %2427 = vmatpush1.msra.mxu0 0.0
  %2428 = vmatprep.subr.mxu0 0.0
  %2429 = vmatpush1.msra.mxu0 0.0
  %2430 = vmatprep.subr.mxu0 0.0
  %2431 = vmatpush1.msra.mxu0 0.0
  %2432 = vmatprep.subr.mxu0 0.0
  %2433 = vmatpush1.msra.mxu0 0.0
  %2434 = vmatprep.mubr.f32.mxu0 0.0
  %2435 = vmatmul.mubr.f32.gmra.mrb[0].mxu0 0.0
  %v2436 = vpop.f32.mrb[0].mxu0
  %v2437 = vadd.f32 0.0, %v2436
  %v2438 = vpop.f32.mrb[0].mxu0
  %v2439 = vadd.f32 0.0, %v2438
  %2440 = vdwg.mxu0
  %v2441 = vadd.f32 %v2295, %v2366
  %v2442 = vadd.f32 %v2296, %v2368
  %v2443 = vadd.f32 %v2297, %v2437
  %v2444 = vadd.f32 %v2298, %v2439
  %v2445 = vxor.u32 %v2441, 2147483648
  %v2446 = vmul.f32 %v2445, 1.442695
  %v2447 = vpow.pop %v2446
  %v2448 = vadd.f32 %v2447, 1.0
  %v2449 = vrcp.pop %v2448
  %v2450 = vmul.f32 1.0, %v2449
  %v2451 = vxor.u32 %v2442, 2147483648
  %v2452 = vmul.f32 %v2451, 1.442695
  %v2453 = vpow.pop %v2452
  %v2454 = vadd.f32 %v2453, 1.0
  %v2455 = vrcp.pop %v2454
  %v2456 = vmul.f32 1.0, %v2455
  %v2457 = vtanh.pop %v2443
  %v2458 = vxor.u32 %v2444, 2147483648
  %v2459 = vmul.f32 %v2458, 1.442695
  %v2460 = vpow.pop %v2459
  %v2461 = vadd.f32 %v2460, 1.0
  %v2462 = vrcp.pop %v2461
  %v2463 = vmul.f32 1.0, %v2462
  %v2464 = vmul.f32 %v2456, 0.0
  %v2465 = vmul.f32 %v2450, %v2457
  %v2466 = vadd.f32 %v2464, %v2465
  %v2467 = vtanh.pop %v2466
  %v2468 = vmul.f32 %v2463, %v2467
  %2469 = vst [vmem:[#allocation3] sm:$0xff] %v2468
  %v2470 = vld [vmem:[%s628] sm:$0xff]
  %v2471 = vld [vmem:[%s628 + $0x8] sm:$0xff]
  %v2472 = vld [vmem:[%s628 + $0x10] sm:$0xff]
  %v2473 = vld [vmem:[%s628 + $0x18] sm:$0xff]
  %2474 = vmatprep.subr.mxu0 %v2232
  %2475 = vmatpush1.msra.mxu0 %v2231
  %2476 = vmatprep.subr.mxu0 %v2236
  %2477 = vmatpush1.msra.mxu0 %v2235
  %2478 = vmatprep.subr.mxu0 %v2240
  %2479 = vmatpush1.msra.mxu0 %v2239
  %2480 = vmatprep.subr.mxu0 %v2244
  %2481 = vmatpush1.msra.mxu0 %v2243
  %2482 = vmatprep.subr.mxu0 %v2248
  %2483 = vmatpush1.msra.mxu0 %v2247
  %2484 = vmatprep.subr.mxu0 %v2252
  %2485 = vmatpush1.msra.mxu0 %v2251
  %2486 = vmatprep.subr.mxu0 %v2256
  %2487 = vmatpush1.msra.mxu0 %v2255
  %2488 = vmatprep.subr.mxu0 %v2260
  %2489 = vmatpush1.msra.mxu0 %v2259
  %2490 = vmatprep.subr.mxu0 %v2264
  %2491 = vmatpush1.msra.mxu0 %v2263
  %2492 = vmatprep.subr.mxu0 %v2268
  %2493 = vmatpush1.msra.mxu0 %v2267
  %2494 = vmatprep.subr.mxu0 %v2272
  %2495 = vmatpush1.msra.mxu0 %v2271
  %2496 = vmatprep.subr.mxu0 %v2276
  %2497 = vmatpush1.msra.mxu0 %v2275
  %2498 = vmatprep.subr.mxu0 %v2280
  %2499 = vmatpush1.msra.mxu0 %v2279
  %2500 = vmatprep.subr.mxu0 %v2284
  %2501 = vmatpush1.msra.mxu0 %v2283
  %2502 = vmatprep.subr.mxu0 %v2288
  %2503 = vmatpush1.msra.mxu0 %v2287
  %2504 = vmatprep.subr.mxu0 %v2292
  %2505 = vmatpush1.msra.mxu0 %v2291
  %2506 = vmatprep.subr.mxu0 0.0
  %2507 = vmatpush1.msra.mxu0 0.0
  %2508 = vmatprep.subr.mxu0 0.0
  %2509 = vmatpush1.msra.mxu0 0.0
  %2510 = vmatprep.subr.mxu0 0.0
  %2511 = vmatpush1.msra.mxu0 0.0
  %2512 = vmatprep.subr.mxu0 0.0
  %2513 = vmatpush1.msra.mxu0 0.0
  %2514 = vmatprep.subr.mxu0 0.0
  %2515 = vmatpush1.msra.mxu0 0.0
  %2516 = vmatprep.subr.mxu0 0.0
  %2517 = vmatpush1.msra.mxu0 0.0
  %2518 = vmatprep.subr.mxu0 0.0
  %2519 = vmatpush1.msra.mxu0 0.0
  %2520 = vmatprep.subr.mxu0 0.0
  %2521 = vmatpush1.msra.mxu0 0.0
  %2522 = vmatprep.subr.mxu0 0.0
  %2523 = vmatpush1.msra.mxu0 0.0
  %2524 = vmatprep.subr.mxu0 0.0
  %2525 = vmatpush1.msra.mxu0 0.0
  %2526 = vmatprep.subr.mxu0 0.0
  %2527 = vmatpush1.msra.mxu0 0.0
  %2528 = vmatprep.subr.mxu0 0.0
  %2529 = vmatpush1.msra.mxu0 0.0
  %2530 = vmatprep.subr.mxu0 0.0
  %2531 = vmatpush1.msra.mxu0 0.0
  %2532 = vmatprep.subr.mxu0 0.0
  %2533 = vmatpush1.msra.mxu0 0.0
  %2534 = vmatprep.subr.mxu0 0.0
  %2535 = vmatpush1.msra.mxu0 0.0
  %2536 = vmatprep.subr.mxu0 0.0
  %2537 = vmatpush1.msra.mxu0 0.0
  %2538 = vmatprep.mubr.f32.mxu0 0.0
  %2539 = vmatmul.mubr.f32.gmra.mrb[0].mxu0 %v2468
  %v2540 = vpop.f32.mrb[0].mxu0
  %v2541 = vadd.f32 0.0, %v2540
  %v2542 = vpop.f32.mrb[0].mxu0
  %v2543 = vadd.f32 0.0, %v2542
  %2544 = vdwg.mxu0
  %2545 = vmatprep.subr.mxu0 %v2234
  %2546 = vmatpush1.msra.mxu0 %v2233
  %2547 = vmatprep.subr.mxu0 %v2238
  %2548 = vmatpush1.msra.mxu0 %v2237
  %2549 = vmatprep.subr.mxu0 %v2242
  %2550 = vmatpush1.msra.mxu0 %v2241
  %2551 = vmatprep.subr.mxu0 %v2246
  %2552 = vmatpush1.msra.mxu0 %v2245
  %2553 = vmatprep.subr.mxu0 %v2250
  %2554 = vmatpush1.msra.mxu0 %v2249
  %2555 = vmatprep.subr.mxu0 %v2254
  %2556 = vmatpush1.msra.mxu0 %v2253
  %2557 = vmatprep.subr.mxu0 %v2258
  %2558 = vmatpush1.msra.mxu0 %v2257
  %2559 = vmatprep.subr.mxu0 %v2262
  %2560 = vmatpush1.msra.mxu0 %v2261
  %2561 = vmatprep.subr.mxu0 %v2266
  %2562 = vmatpush1.msra.mxu0 %v2265
  %2563 = vmatprep.subr.mxu0 %v2270
  %2564 = vmatpush1.msra.mxu0 %v2269
  %2565 = vmatprep.subr.mxu0 %v2274
  %2566 = vmatpush1.msra.mxu0 %v2273
  %2567 = vmatprep.subr.mxu0 %v2278
  %2568 = vmatpush1.msra.mxu0 %v2277
  %2569 = vmatprep.subr.mxu0 %v2282
  %2570 = vmatpush1.msra.mxu0 %v2281
  %2571 = vmatprep.subr.mxu0 %v2286
  %2572 = vmatpush1.msra.mxu0 %v2285
  %2573 = vmatprep.subr.mxu0 %v2290
  %2574 = vmatpush1.msra.mxu0 %v2289
  %2575 = vmatprep.subr.mxu0 %v2294
  %2576 = vmatpush1.msra.mxu0 %v2293
  %2577 = vmatprep.subr.mxu0 0.0
  %2578 = vmatpush1.msra.mxu0 0.0
  %2579 = vmatprep.subr.mxu0 0.0
  %2580 = vmatpush1.msra.mxu0 0.0
  %2581 = vmatprep.subr.mxu0 0.0
  %2582 = vmatpush1.msra.mxu0 0.0
  %2583 = vmatprep.subr.mxu0 0.0
  %2584 = vmatpush1.msra.mxu0 0.0
  %2585 = vmatprep.subr.mxu0 0.0
  %2586 = vmatpush1.msra.mxu0 0.0
  %2587 = vmatprep.subr.mxu0 0.0
  %2588 = vmatpush1.msra.mxu0 0.0
  %2589 = vmatprep.subr.mxu0 0.0
  %2590 = vmatpush1.msra.mxu0 0.0
  %2591 = vmatprep.subr.mxu0 0.0
  %2592 = vmatpush1.msra.mxu0 0.0
  %2593 = vmatprep.subr.mxu0 0.0
  %2594 = vmatpush1.msra.mxu0 0.0
  %2595 = vmatprep.subr.mxu0 0.0
  %2596 = vmatpush1.msra.mxu0 0.0
  %2597 = vmatprep.subr.mxu0 0.0
  %2598 = vmatpush1.msra.mxu0 0.0
  %2599 = vmatprep.subr.mxu0 0.0
  %2600 = vmatpush1.msra.mxu0 0.0
  %2601 = vmatprep.subr.mxu0 0.0
  %2602 = vmatpush1.msra.mxu0 0.0
  %2603 = vmatprep.subr.mxu0 0.0
  %2604 = vmatpush1.msra.mxu0 0.0
  %2605 = vmatprep.subr.mxu0 0.0
  %2606 = vmatpush1.msra.mxu0 0.0
  %2607 = vmatprep.subr.mxu0 0.0
  %2608 = vmatpush1.msra.mxu0 0.0
  %2609 = vmatprep.mubr.f32.mxu0 0.0
  %2610 = vmatmul.mubr.f32.gmra.mrb[0].mxu0 %v2468
  %v2611 = vpop.f32.mrb[0].mxu0
  %v2612 = vadd.f32 0.0, %v2611
  %v2613 = vpop.f32.mrb[0].mxu0
  %v2614 = vadd.f32 0.0, %v2613
  %2615 = vdwg.mxu0
  %v2616 = vadd.f32 %v2470, %v2541
  %v2617 = vadd.f32 %v2471, %v2543
  %v2618 = vadd.f32 %v2472, %v2612
  %v2619 = vadd.f32 %v2473, %v2614
  %v2620 = vxor.u32 %v2616, 2147483648
  %v2621 = vmul.f32 %v2620, 1.442695
  %v2622 = vpow.pop %v2621
  %v2623 = vadd.f32 %v2622, 1.0
  %v2624 = vrcp.pop %v2623
  %v2625 = vmul.f32 1.0, %v2624
  %v2626 = vxor.u32 %v2617, 2147483648
  %v2627 = vmul.f32 %v2626, 1.442695
  %v2628 = vpow.pop %v2627
  %v2629 = vadd.f32 %v2628, 1.0
  %v2630 = vrcp.pop %v2629
  %v2631 = vmul.f32 1.0, %v2630
  %v2632 = vtanh.pop %v2618
  %v2633 = vxor.u32 %v2619, 2147483648
  %v2634 = vmul.f32 %v2633, 1.442695
  %v2635 = vpow.pop %v2634
  %v2636 = vadd.f32 %v2635, 1.0
  %v2637 = vrcp.pop %v2636
  %v2638 = vmul.f32 1.0, %v2637
  %v2639 = vmul.f32 %v2631, %v2466
  %v2640 = vmul.f32 %v2625, %v2632
  %v2641 = vadd.f32 %v2639, %v2640
  %v2642 = vtanh.pop %v2641
  %v2643 = vmul.f32 %v2638, %v2642
  %2644 = vst [vmem:[%s803] sm:$0xff] %v2643
  %v2645 = vld [vmem:[%s807] sm:$0xff]
  %v2646 = vld [vmem:[%s807 + $0x8] sm:$0xff]
  %v2647 = vld [vmem:[%s807 + $0x10] sm:$0xff]
  %v2648 = vld [vmem:[%s807 + $0x18] sm:$0xff]
  %2649 = vmatprep.subr.mxu0 %v2232
  %2650 = vmatpush1.msra.mxu0 %v2231
  %2651 = vmatprep.subr.mxu0 %v2236
  %2652 = vmatpush1.msra.mxu0 %v2235
  %2653 = vmatprep.subr.mxu0 %v2240
  %2654 = vmatpush1.msra.mxu0 %v2239
  %2655 = vmatprep.subr.mxu0 %v2244
  %2656 = vmatpush1.msra.mxu0 %v2243
  %2657 = vmatprep.subr.mxu0 %v2248
  %2658 = vmatpush1.msra.mxu0 %v2247
  %2659 = vmatprep.subr.mxu0 %v2252
  %2660 = vmatpush1.msra.mxu0 %v2251
  %2661 = vmatprep.subr.mxu0 %v2256
  %2662 = vmatpush1.msra.mxu0 %v2255
  %2663 = vmatprep.subr.mxu0 %v2260
  %2664 = vmatpush1.msra.mxu0 %v2259
  %2665 = vmatprep.subr.mxu0 %v2264
  %2666 = vmatpush1.msra.mxu0 %v2263
  %2667 = vmatprep.subr.mxu0 %v2268
  %2668 = vmatpush1.msra.mxu0 %v2267
  %2669 = vmatprep.subr.mxu0 %v2272
  %2670 = vmatpush1.msra.mxu0 %v2271
  %2671 = vmatprep.subr.mxu0 %v2276
  %2672 = vmatpush1.msra.mxu0 %v2275
  %2673 = vmatprep.subr.mxu0 %v2280
  %2674 = vmatpush1.msra.mxu0 %v2279
  %2675 = vmatprep.subr.mxu0 %v2284
  %2676 = vmatpush1.msra.mxu0 %v2283
  %2677 = vmatprep.subr.mxu0 %v2288
  %2678 = vmatpush1.msra.mxu0 %v2287
  %2679 = vmatprep.subr.mxu0 %v2292
  %2680 = vmatpush1.msra.mxu0 %v2291
  %2681 = vmatprep.subr.mxu0 0.0
  %2682 = vmatpush1.msra.mxu0 0.0
  %2683 = vmatprep.subr.mxu0 0.0
  %2684 = vmatpush1.msra.mxu0 0.0
  %2685 = vmatprep.subr.mxu0 0.0
  %2686 = vmatpush1.msra.mxu0 0.0
  %2687 = vmatprep.subr.mxu0 0.0
  %2688 = vmatpush1.msra.mxu0 0.0
  %2689 = vmatprep.subr.mxu0 0.0
  %2690 = vmatpush1.msra.mxu0 0.0
  %2691 = vmatprep.subr.mxu0 0.0
  %2692 = vmatpush1.msra.mxu0 0.0
  %2693 = vmatprep.subr.mxu0 0.0
  %2694 = vmatpush1.msra.mxu0 0.0
  %2695 = vmatprep.subr.mxu0 0.0
  %2696 = vmatpush1.msra.mxu0 0.0
  %2697 = vmatprep.subr.mxu0 0.0
  %2698 = vmatpush1.msra.mxu0 0.0
  %2699 = vmatprep.subr.mxu0 0.0
  %2700 = vmatpush1.msra.mxu0 0.0
  %2701 = vmatprep.subr.mxu0 0.0
  %2702 = vmatpush1.msra.mxu0 0.0
  %2703 = vmatprep.subr.mxu0 0.0
  %2704 = vmatpush1.msra.mxu0 0.0
  %2705 = vmatprep.subr.mxu0 0.0
  %2706 = vmatpush1.msra.mxu0 0.0
  %2707 = vmatprep.subr.mxu0 0.0
  %2708 = vmatpush1.msra.mxu0 0.0
  %2709 = vmatprep.subr.mxu0 0.0
  %2710 = vmatpush1.msra.mxu0 0.0
  %2711 = vmatprep.subr.mxu0 0.0
  %2712 = vmatpush1.msra.mxu0 0.0
  %2713 = vmatprep.mubr.f32.mxu0 0.0
  %2714 = vmatmul.mubr.f32.gmra.mrb[0].mxu0 %v2643
  %v2715 = vpop.f32.mrb[0].mxu0
  %v2716 = vadd.f32 0.0, %v2715
  %v2717 = vpop.f32.mrb[0].mxu0
  %v2718 = vadd.f32 0.0, %v2717
  %2719 = vdwg.mxu0
  %2720 = vmatprep.subr.mxu0 %v2234
  %2721 = vmatpush1.msra.mxu0 %v2233
  %2722 = vmatprep.subr.mxu0 %v2238
  %2723 = vmatpush1.msra.mxu0 %v2237
  %2724 = vmatprep.subr.mxu0 %v2242
  %2725 = vmatpush1.msra.mxu0 %v2241
  %2726 = vmatprep.subr.mxu0 %v2246
  %2727 = vmatpush1.msra.mxu0 %v2245
  %2728 = vmatprep.subr.mxu0 %v2250
  %2729 = vmatpush1.msra.mxu0 %v2249
  %2730 = vmatprep.subr.mxu0 %v2254
  %2731 = vmatpush1.msra.mxu0 %v2253
  %2732 = vmatprep.subr.mxu0 %v2258
  %2733 = vmatpush1.msra.mxu0 %v2257
  %2734 = vmatprep.subr.mxu0 %v2262
  %2735 = vmatpush1.msra.mxu0 %v2261
  %2736 = vmatprep.subr.mxu0 %v2266
  %2737 = vmatpush1.msra.mxu0 %v2265
  %2738 = vmatprep.subr.mxu0 %v2270
  %2739 = vmatpush1.msra.mxu0 %v2269
  %2740 = vmatprep.subr.mxu0 %v2274
  %2741 = vmatpush1.msra.mxu0 %v2273
  %2742 = vmatprep.subr.mxu0 %v2278
  %2743 = vmatpush1.msra.mxu0 %v2277
  %2744 = vmatprep.subr.mxu0 %v2282
  %2745 = vmatpush1.msra.mxu0 %v2281
  %2746 = vmatprep.subr.mxu0 %v2286
  %2747 = vmatpush1.msra.mxu0 %v2285
  %2748 = vmatprep.subr.mxu0 %v2290
  %2749 = vmatpush1.msra.mxu0 %v2289
  %2750 = vmatprep.subr.mxu0 %v2294
  %2751 = vmatpush1.msra.mxu0 %v2293
  %2752 = vmatprep.subr.mxu0 0.0
  %2753 = vmatpush1.msra.mxu0 0.0
  %2754 = vmatprep.subr.mxu0 0.0
  %2755 = vmatpush1.msra.mxu0 0.0
  %2756 = vmatprep.subr.mxu0 0.0
  %2757 = vmatpush1.msra.mxu0 0.0
  %2758 = vmatprep.subr.mxu0 0.0
  %2759 = vmatpush1.msra.mxu0 0.0
  %2760 = vmatprep.subr.mxu0 0.0
  %2761 = vmatpush1.msra.mxu0 0.0
  %2762 = vmatprep.subr.mxu0 0.0
  %2763 = vmatpush1.msra.mxu0 0.0
  %2764 = vmatprep.subr.mxu0 0.0
  %2765 = vmatpush1.msra.mxu0 0.0
  %2766 = vmatprep.subr.mxu0 0.0
  %2767 = vmatpush1.msra.mxu0 0.0
  %2768 = vmatprep.subr.mxu0 0.0
  %2769 = vmatpush1.msra.mxu0 0.0
  %2770 = vmatprep.subr.mxu0 0.0
  %2771 = vmatpush1.msra.mxu0 0.0
  %2772 = vmatprep.subr.mxu0 0.0
  %2773 = vmatpush1.msra.mxu0 0.0
  %2774 = vmatprep.subr.mxu0 0.0
  %2775 = vmatpush1.msra.mxu0 0.0
  %2776 = vmatprep.subr.mxu0 0.0
  %2777 = vmatpush1.msra.mxu0 0.0
  %2778 = vmatprep.subr.mxu0 0.0
  %2779 = vmatpush1.msra.mxu0 0.0
  %2780 = vmatprep.subr.mxu0 0.0
  %2781 = vmatpush1.msra.mxu0 0.0
  %2782 = vmatprep.subr.mxu0 0.0
  %2783 = vmatpush1.msra.mxu0 0.0
  %2784 = vmatprep.mubr.f32.mxu0 0.0
  %2785 = vmatmul.mubr.f32.gmra.mrb[0].mxu0 %v2643
  %v2786 = vpop.f32.mrb[0].mxu0
  %v2787 = vadd.f32 0.0, %v2786
  %v2788 = vpop.f32.mrb[0].mxu0
  %v2789 = vadd.f32 0.0, %v2788
  %2790 = vdwg.mxu0
  %v2791 = vadd.f32 %v2645, %v2716
  %v2792 = vadd.f32 %v2646, %v2718
  %v2793 = vadd.f32 %v2647, %v2787
  %v2794 = vadd.f32 %v2648, %v2789
  %v2795 = vxor.u32 %v2791, 2147483648
  %v2796 = vmul.f32 %v2795, 1.442695
  %v2797 = vpow.pop %v2796
  %v2798 = vadd.f32 %v2797, 1.0
  %v2799 = vrcp.pop %v2798
  %v2800 = vmul.f32 1.0, %v2799
  %v2801 = vxor.u32 %v2792, 2147483648
  %v2802 = vmul.f32 %v2801, 1.442695
  %v2803 = vpow.pop %v2802
  %v2804 = vadd.f32 %v2803, 1.0
  %v2805 = vrcp.pop %v2804
  %v2806 = vmul.f32 1.0, %v2805
  %v2807 = vtanh.pop %v2793
  %v2808 = vxor.u32 %v2794, 2147483648
  %v2809 = vmul.f32 %v2808, 1.442695
  %v2810 = vpow.pop %v2809
  %v2811 = vadd.f32 %v2810, 1.0
  %v2812 = vrcp.pop %v2811
  %v2813 = vmul.f32 1.0, %v2812
  %v2814 = vmul.f32 %v2806, %v2641
  %v2815 = vmul.f32 %v2800, %v2807
  %v2816 = vadd.f32 %v2814, %v2815
  %v2817 = vtanh.pop %v2816
  %v2818 = vmul.f32 %v2813, %v2817
  %2819 = vst [vmem:[%s982] sm:$0xff] %v2818
  %v2820 = vld [vmem:[%s986] sm:$0xff]
  %v2821 = vld [vmem:[%s986 + $0x8] sm:$0xff]
  %v2822 = vld [vmem:[%s986 + $0x10] sm:$0xff]
  %v2823 = vld [vmem:[%s986 + $0x18] sm:$0xff]
  %2824 = vmatprep.subr.mxu0 %v2232
  %2825 = vmatpush1.msra.mxu0 %v2231
  %2826 = vmatprep.subr.mxu0 %v2236
  %2827 = vmatpush1.msra.mxu0 %v2235
  %2828 = vmatprep.subr.mxu0 %v2240
  %2829 = vmatpush1.msra.mxu0 %v2239
  %2830 = vmatprep.subr.mxu0 %v2244
  %2831 = vmatpush1.msra.mxu0 %v2243
  %2832 = vmatprep.subr.mxu0 %v2248
  %2833 = vmatpush1.msra.mxu0 %v2247
  %2834 = vmatprep.subr.mxu0 %v2252
  %2835 = vmatpush1.msra.mxu0 %v2251
  %2836 = vmatprep.subr.mxu0 %v2256
  %2837 = vmatpush1.msra.mxu0 %v2255
  %2838 = vmatprep.subr.mxu0 %v2260
  %2839 = vmatpush1.msra.mxu0 %v2259
  %2840 = vmatprep.subr.mxu0 %v2264
  %2841 = vmatpush1.msra.mxu0 %v2263
  %2842 = vmatprep.subr.mxu0 %v2268
  %2843 = vmatpush1.msra.mxu0 %v2267
  %2844 = vmatprep.subr.mxu0 %v2272
  %2845 = vmatpush1.msra.mxu0 %v2271
  %2846 = vmatprep.subr.mxu0 %v2276
  %2847 = vmatpush1.msra.mxu0 %v2275
  %2848 = vmatprep.subr.mxu0 %v2280
  %2849 = vmatpush1.msra.mxu0 %v2279
  %2850 = vmatprep.subr.mxu0 %v2284
  %2851 = vmatpush1.msra.mxu0 %v2283
  %2852 = vmatprep.subr.mxu0 %v2288
  %2853 = vmatpush1.msra.mxu0 %v2287
  %2854 = vmatprep.subr.mxu0 %v2292
  %2855 = vmatpush1.msra.mxu0 %v2291
  %2856 = vmatprep.subr.mxu0 0.0
  %2857 = vmatpush1.msra.mxu0 0.0
  %2858 = vmatprep.subr.mxu0 0.0
  %2859 = vmatpush1.msra.mxu0 0.0
  %2860 = vmatprep.subr.mxu0 0.0
  %2861 = vmatpush1.msra.mxu0 0.0
  %2862 = vmatprep.subr.mxu0 0.0
  %2863 = vmatpush1.msra.mxu0 0.0
  %2864 = vmatprep.subr.mxu0 0.0
  %2865 = vmatpush1.msra.mxu0 0.0
  %2866 = vmatprep.subr.mxu0 0.0
  %2867 = vmatpush1.msra.mxu0 0.0
  %2868 = vmatprep.subr.mxu0 0.0
  %2869 = vmatpush1.msra.mxu0 0.0
  %2870 = vmatprep.subr.mxu0 0.0
  %2871 = vmatpush1.msra.mxu0 0.0
  %2872 = vmatprep.subr.mxu0 0.0
  %2873 = vmatpush1.msra.mxu0 0.0
  %2874 = vmatprep.subr.mxu0 0.0
  %2875 = vmatpush1.msra.mxu0 0.0
  %2876 = vmatprep.subr.mxu0 0.0
  %2877 = vmatpush1.msra.mxu0 0.0
  %2878 = vmatprep.subr.mxu0 0.0
  %2879 = vmatpush1.msra.mxu0 0.0
  %2880 = vmatprep.subr.mxu0 0.0
  %2881 = vmatpush1.msra.mxu0 0.0
  %2882 = vmatprep.subr.mxu0 0.0
  %2883 = vmatpush1.msra.mxu0 0.0
  %2884 = vmatprep.subr.mxu0 0.0
  %2885 = vmatpush1.msra.mxu0 0.0
  %2886 = vmatprep.subr.mxu0 0.0
  %2887 = vmatpush1.msra.mxu0 0.0
  %2888 = vmatprep.mubr.f32.mxu0 0.0
  %2889 = vmatmul.mubr.f32.gmra.mrb[0].mxu0 %v2818
  %v2890 = vpop.f32.mrb[0].mxu0
  %v2891 = vadd.f32 0.0, %v2890
  %v2892 = vpop.f32.mrb[0].mxu0
  %v2893 = vadd.f32 0.0, %v2892
  %2894 = vdwg.mxu0
  %2895 = vmatprep.subr.mxu0 %v2234
  %2896 = vmatpush1.msra.mxu0 %v2233
  %2897 = vmatprep.subr.mxu0 %v2238
  %2898 = vmatpush1.msra.mxu0 %v2237
  %2899 = vmatprep.subr.mxu0 %v2242
  %2900 = vmatpush1.msra.mxu0 %v2241
  %2901 = vmatprep.subr.mxu0 %v2246
  %2902 = vmatpush1.msra.mxu0 %v2245
  %2903 = vmatprep.subr.mxu0 %v2250
  %2904 = vmatpush1.msra.mxu0 %v2249
  %2905 = vmatprep.subr.mxu0 %v2254
  %2906 = vmatpush1.msra.mxu0 %v2253
  %2907 = vmatprep.subr.mxu0 %v2258
  %2908 = vmatpush1.msra.mxu0 %v2257
  %2909 = vmatprep.subr.mxu0 %v2262
  %2910 = vmatpush1.msra.mxu0 %v2261
  %2911 = vmatprep.subr.mxu0 %v2266
  %2912 = vmatpush1.msra.mxu0 %v2265
  %2913 = vmatprep.subr.mxu0 %v2270
  %2914 = vmatpush1.msra.mxu0 %v2269
  %2915 = vmatprep.subr.mxu0 %v2274
  %2916 = vmatpush1.msra.mxu0 %v2273
  %2917 = vmatprep.subr.mxu0 %v2278
  %2918 = vmatpush1.msra.mxu0 %v2277
  %2919 = vmatprep.subr.mxu0 %v2282
  %2920 = vmatpush1.msra.mxu0 %v2281
  %2921 = vmatprep.subr.mxu0 %v2286
  %2922 = vmatpush1.msra.mxu0 %v2285
  %2923 = vmatprep.subr.mxu0 %v2290
  %2924 = vmatpush1.msra.mxu0 %v2289
  %2925 = vmatprep.subr.mxu0 %v2294
  %2926 = vmatpush1.msra.mxu0 %v2293
  %2927 = vmatprep.subr.mxu0 0.0
  %2928 = vmatpush1.msra.mxu0 0.0
  %2929 = vmatprep.subr.mxu0 0.0
  %2930 = vmatpush1.msra.mxu0 0.0
  %2931 = vmatprep.subr.mxu0 0.0
  %2932 = vmatpush1.msra.mxu0 0.0
  %2933 = vmatprep.subr.mxu0 0.0
  %2934 = vmatpush1.msra.mxu0 0.0
  %2935 = vmatprep.subr.mxu0 0.0
  %2936 = vmatpush1.msra.mxu0 0.0
  %2937 = vmatprep.subr.mxu0 0.0
  %2938 = vmatpush1.msra.mxu0 0.0
  %2939 = vmatprep.subr.mxu0 0.0
  %2940 = vmatpush1.msra.mxu0 0.0
  %2941 = vmatprep.subr.mxu0 0.0
  %2942 = vmatpush1.msra.mxu0 0.0
  %2943 = vmatprep.subr.mxu0 0.0
  %2944 = vmatpush1.msra.mxu0 0.0
  %2945 = vmatprep.subr.mxu0 0.0
  %2946 = vmatpush1.msra.mxu0 0.0
  %2947 = vmatprep.subr.mxu0 0.0
  %2948 = vmatpush1.msra.mxu0 0.0
  %2949 = vmatprep.subr.mxu0 0.0
  %2950 = vmatpush1.msra.mxu0 0.0
  %2951 = vmatprep.subr.mxu0 0.0
  %2952 = vmatpush1.msra.mxu0 0.0
  %2953 = vmatprep.subr.mxu0 0.0
  %2954 = vmatpush1.msra.mxu0 0.0
  %2955 = vmatprep.subr.mxu0 0.0
  %2956 = vmatpush1.msra.mxu0 0.0
  %2957 = vmatprep.subr.mxu0 0.0
  %2958 = vmatpush1.msra.mxu0 0.0
  %2959 = vmatprep.mubr.f32.mxu0 0.0
  %2960 = vmatmul.mubr.f32.gmra.mrb[0].mxu0 %v2818
  %v2961 = vpop.f32.mrb[0].mxu0
  %v2962 = vadd.f32 0.0, %v2961
  %v2963 = vpop.f32.mrb[0].mxu0
  %v2964 = vadd.f32 0.0, %v2963
  %2965 = vdwg.mxu0
  %v2966 = vadd.f32 %v2820, %v2891
  %v2967 = vadd.f32 %v2821, %v2893
  %v2968 = vadd.f32 %v2822, %v2962
  %v2969 = vadd.f32 %v2823, %v2964
  %v2970 = vxor.u32 %v2966, 2147483648
  %v2971 = vmul.f32 %v2970, 1.442695
  %v2972 = vpow.pop %v2971
  %v2973 = vadd.f32 %v2972, 1.0
  %v2974 = vrcp.pop %v2973
  %v2975 = vmul.f32 1.0, %v2974
  %v2976 = vxor.u32 %v2967, 2147483648
  %v2977 = vmul.f32 %v2976, 1.442695
  %v2978 = vpow.pop %v2977
  %v2979 = vadd.f32 %v2978, 1.0
  %v2980 = vrcp.pop %v2979
  %v2981 = vmul.f32 1.0, %v2980
  %v2982 = vtanh.pop %v2968
  %v2983 = vxor.u32 %v2969, 2147483648
  %v2984 = vmul.f32 %v2983, 1.442695
  %v2985 = vpow.pop %v2984
  %v2986 = vadd.f32 %v2985, 1.0
  %v2987 = vrcp.pop %v2986
  %v2988 = vmul.f32 1.0, %v2987
  %v2989 = vmul.f32 %v2981, %v2816
  %v2990 = vmul.f32 %v2975, %v2982
  %v2991 = vadd.f32 %v2989, %v2990
  %v2992 = vtanh.pop %v2991
  %v2993 = vmul.f32 %v2988, %v2992
  %2994 = vst [vmem:[%s1161] sm:$0xff] %v2993
  %v2995 = vld [vmem:[%s1165] sm:$0xff]
  %v2996 = vld [vmem:[%s1165 + $0x8] sm:$0xff]
  %v2997 = vld [vmem:[%s1165 + $0x10] sm:$0xff]
  %v2998 = vld [vmem:[%s1165 + $0x18] sm:$0xff]
  %2999 = vmatprep.subr.mxu0 %v2232
  %3000 = vmatpush1.msra.mxu0 %v2231
  %3001 = vmatprep.subr.mxu0 %v2236
  %3002 = vmatpush1.msra.mxu0 %v2235
  %3003 = vmatprep.subr.mxu0 %v2240
  %3004 = vmatpush1.msra.mxu0 %v2239
  %3005 = vmatprep.subr.mxu0 %v2244
  %3006 = vmatpush1.msra.mxu0 %v2243
  %3007 = vmatprep.subr.mxu0 %v2248
  %3008 = vmatpush1.msra.mxu0 %v2247
  %3009 = vmatprep.subr.mxu0 %v2252
  %3010 = vmatpush1.msra.mxu0 %v2251
  %3011 = vmatprep.subr.mxu0 %v2256
  %3012 = vmatpush1.msra.mxu0 %v2255
  %3013 = vmatprep.subr.mxu0 %v2260
  %3014 = vmatpush1.msra.mxu0 %v2259
  %3015 = vmatprep.subr.mxu0 %v2264
  %3016 = vmatpush1.msra.mxu0 %v2263
  %3017 = vmatprep.subr.mxu0 %v2268
  %3018 = vmatpush1.msra.mxu0 %v2267
  %3019 = vmatprep.subr.mxu0 %v2272
  %3020 = vmatpush1.msra.mxu0 %v2271
  %3021 = vmatprep.subr.mxu0 %v2276
  %3022 = vmatpush1.msra.mxu0 %v2275
  %3023 = vmatprep.subr.mxu0 %v2280
  %3024 = vmatpush1.msra.mxu0 %v2279
  %3025 = vmatprep.subr.mxu0 %v2284
  %3026 = vmatpush1.msra.mxu0 %v2283
  %3027 = vmatprep.subr.mxu0 %v2288
  %3028 = vmatpush1.msra.mxu0 %v2287
  %3029 = vmatprep.subr.mxu0 %v2292
  %3030 = vmatpush1.msra.mxu0 %v2291
  %3031 = vmatprep.subr.mxu0 0.0
  %3032 = vmatpush1.msra.mxu0 0.0
  %3033 = vmatprep.subr.mxu0 0.0
  %3034 = vmatpush1.msra.mxu0 0.0
  %3035 = vmatprep.subr.mxu0 0.0
  %3036 = vmatpush1.msra.mxu0 0.0
  %3037 = vmatprep.subr.mxu0 0.0
  %3038 = vmatpush1.msra.mxu0 0.0
  %3039 = vmatprep.subr.mxu0 0.0
  %3040 = vmatpush1.msra.mxu0 0.0
  %3041 = vmatprep.subr.mxu0 0.0
  %3042 = vmatpush1.msra.mxu0 0.0
  %3043 = vmatprep.subr.mxu0 0.0
  %3044 = vmatpush1.msra.mxu0 0.0
  %3045 = vmatprep.subr.mxu0 0.0
  %3046 = vmatpush1.msra.mxu0 0.0
  %3047 = vmatprep.subr.mxu0 0.0
  %3048 = vmatpush1.msra.mxu0 0.0
  %3049 = vmatprep.subr.mxu0 0.0
  %3050 = vmatpush1.msra.mxu0 0.0
  %3051 = vmatprep.subr.mxu0 0.0
  %3052 = vmatpush1.msra.mxu0 0.0
  %3053 = vmatprep.subr.mxu0 0.0
  %3054 = vmatpush1.msra.mxu0 0.0
  %3055 = vmatprep.subr.mxu0 0.0
  %3056 = vmatpush1.msra.mxu0 0.0
  %3057 = vmatprep.subr.mxu0 0.0
  %3058 = vmatpush1.msra.mxu0 0.0
  %3059 = vmatprep.subr.mxu0 0.0
  %3060 = vmatpush1.msra.mxu0 0.0
  %3061 = vmatprep.subr.mxu0 0.0
  %3062 = vmatpush1.msra.mxu0 0.0
  %3063 = vmatprep.mubr.f32.mxu0 0.0
  %3064 = vmatmul.mubr.f32.gmra.mrb[0].mxu0 %v2993
  %v3065 = vpop.f32.mrb[0].mxu0
  %v3066 = vadd.f32 0.0, %v3065
  %v3067 = vpop.f32.mrb[0].mxu0
  %v3068 = vadd.f32 0.0, %v3067
  %3069 = vdwg.mxu0
  %3070 = vmatprep.subr.mxu0 %v2234
  %3071 = vmatpush1.msra.mxu0 %v2233
  %3072 = vmatprep.subr.mxu0 %v2238
  %3073 = vmatpush1.msra.mxu0 %v2237
  %3074 = vmatprep.subr.mxu0 %v2242
  %3075 = vmatpush1.msra.mxu0 %v2241
  %3076 = vmatprep.subr.mxu0 %v2246
  %3077 = vmatpush1.msra.mxu0 %v2245
  %3078 = vmatprep.subr.mxu0 %v2250
  %3079 = vmatpush1.msra.mxu0 %v2249
  %3080 = vmatprep.subr.mxu0 %v2254
  %3081 = vmatpush1.msra.mxu0 %v2253
  %3082 = vmatprep.subr.mxu0 %v2258
  %3083 = vmatpush1.msra.mxu0 %v2257
  %3084 = vmatprep.subr.mxu0 %v2262
  %3085 = vmatpush1.msra.mxu0 %v2261
  %3086 = vmatprep.subr.mxu0 %v2266
  %3087 = vmatpush1.msra.mxu0 %v2265
  %3088 = vmatprep.subr.mxu0 %v2270
  %3089 = vmatpush1.msra.mxu0 %v2269
  %3090 = vmatprep.subr.mxu0 %v2274
  %3091 = vmatpush1.msra.mxu0 %v2273
  %3092 = vmatprep.subr.mxu0 %v2278
  %3093 = vmatpush1.msra.mxu0 %v2277
  %3094 = vmatprep.subr.mxu0 %v2282
  %3095 = vmatpush1.msra.mxu0 %v2281
  %3096 = vmatprep.subr.mxu0 %v2286
  %3097 = vmatpush1.msra.mxu0 %v2285
  %3098 = vmatprep.subr.mxu0 %v2290
  %3099 = vmatpush1.msra.mxu0 %v2289
  %3100 = vmatprep.subr.mxu0 %v2294
  %3101 = vmatpush1.msra.mxu0 %v2293
  %3102 = vmatprep.subr.mxu0 0.0
  %3103 = vmatpush1.msra.mxu0 0.0
  %3104 = vmatprep.subr.mxu0 0.0
  %3105 = vmatpush1.msra.mxu0 0.0
  %3106 = vmatprep.subr.mxu0 0.0
  %3107 = vmatpush1.msra.mxu0 0.0
  %3108 = vmatprep.subr.mxu0 0.0
  %3109 = vmatpush1.msra.mxu0 0.0
  %3110 = vmatprep.subr.mxu0 0.0
  %3111 = vmatpush1.msra.mxu0 0.0
  %3112 = vmatprep.subr.mxu0 0.0
  %3113 = vmatpush1.msra.mxu0 0.0
  %3114 = vmatprep.subr.mxu0 0.0
  %3115 = vmatpush1.msra.mxu0 0.0
  %3116 = vmatprep.subr.mxu0 0.0
  %3117 = vmatpush1.msra.mxu0 0.0
  %3118 = vmatprep.subr.mxu0 0.0
  %3119 = vmatpush1.msra.mxu0 0.0
  %3120 = vmatprep.subr.mxu0 0.0
  %3121 = vmatpush1.msra.mxu0 0.0
  %3122 = vmatprep.subr.mxu0 0.0
  %3123 = vmatpush1.msra.mxu0 0.0
  %3124 = vmatprep.subr.mxu0 0.0
  %3125 = vmatpush1.msra.mxu0 0.0
  %3126 = vmatprep.subr.mxu0 0.0
  %3127 = vmatpush1.msra.mxu0 0.0
  %3128 = vmatprep.subr.mxu0 0.0
  %3129 = vmatpush1.msra.mxu0 0.0
  %3130 = vmatprep.subr.mxu0 0.0
  %3131 = vmatpush1.msra.mxu0 0.0
  %3132 = vmatprep.subr.mxu0 0.0
  %3133 = vmatpush1.msra.mxu0 0.0
  %3134 = vmatprep.mubr.f32.mxu0 0.0
  %3135 = vmatmul.mubr.f32.gmra.mrb[0].mxu0 %v2993
  %v3136 = vpop.f32.mrb[0].mxu0
  %v3137 = vadd.f32 0.0, %v3136
  %v3138 = vpop.f32.mrb[0].mxu0
  %v3139 = vadd.f32 0.0, %v3138
  %3140 = vdwg.mxu0
  %v3141 = vadd.f32 %v2995, %v3066
  %v3142 = vadd.f32 %v2996, %v3068
  %v3143 = vadd.f32 %v2997, %v3137
  %v3144 = vadd.f32 %v2998, %v3139
  %v3145 = vxor.u32 %v3141, 2147483648
  %v3146 = vmul.f32 %v3145, 1.442695
  %v3147 = vpow.pop %v3146
  %v3148 = vadd.f32 %v3147, 1.0
  %v3149 = vrcp.pop %v3148
  %v3150 = vmul.f32 1.0, %v3149
  %v3151 = vxor.u32 %v3142, 2147483648
  %v3152 = vmul.f32 %v3151, 1.442695
  %v3153 = vpow.pop %v3152
  %v3154 = vadd.f32 %v3153, 1.0
  %v3155 = vrcp.pop %v3154
  %v3156 = vmul.f32 1.0, %v3155
  %v3157 = vtanh.pop %v3143
  %v3158 = vxor.u32 %v3144, 2147483648
  %v3159 = vmul.f32 %v3158, 1.442695
  %v3160 = vpow.pop %v3159
  %v3161 = vadd.f32 %v3160, 1.0
  %v3162 = vrcp.pop %v3161
  %v3163 = vmul.f32 1.0, %v3162
  %v3164 = vmul.f32 %v3156, %v2991
  %v3165 = vmul.f32 %v3150, %v3157
  %v3166 = vadd.f32 %v3164, %v3165
  %v3167 = vtanh.pop %v3166
  %v3168 = vmul.f32 %v3163, %v3167
  %3169 = vst [vmem:[%s1340] sm:$0xff] %v3168
  %v3170 = vld [vmem:[%s1344] sm:$0xff]
  %v3171 = vld [vmem:[%s1344 + $0x8] sm:$0xff]
  %v3172 = vld [vmem:[%s1344 + $0x10] sm:$0xff]
  %v3173 = vld [vmem:[%s1344 + $0x18] sm:$0xff]
  %3174 = vmatprep.subr.mxu0 %v2232
  %3175 = vmatpush1.msra.mxu0 %v2231
  %3176 = vmatprep.subr.mxu0 %v2236
  %3177 = vmatpush1.msra.mxu0 %v2235
  %3178 = vmatprep.subr.mxu0 %v2240
  %3179 = vmatpush1.msra.mxu0 %v2239
  %3180 = vmatprep.subr.mxu0 %v2244
  %3181 = vmatpush1.msra.mxu0 %v2243
  %3182 = vmatprep.subr.mxu0 %v2248
  %3183 = vmatpush1.msra.mxu0 %v2247
  %3184 = vmatprep.subr.mxu0 %v2252
  %3185 = vmatpush1.msra.mxu0 %v2251
  %3186 = vmatprep.subr.mxu0 %v2256
  %3187 = vmatpush1.msra.mxu0 %v2255
  %3188 = vmatprep.subr.mxu0 %v2260
  %3189 = vmatpush1.msra.mxu0 %v2259
  %3190 = vmatprep.subr.mxu0 %v2264
  %3191 = vmatpush1.msra.mxu0 %v2263
  %3192 = vmatprep.subr.mxu0 %v2268
  %3193 = vmatpush1.msra.mxu0 %v2267
  %3194 = vmatprep.subr.mxu0 %v2272
  %3195 = vmatpush1.msra.mxu0 %v2271
  %3196 = vmatprep.subr.mxu0 %v2276
  %3197 = vmatpush1.msra.mxu0 %v2275
  %3198 = vmatprep.subr.mxu0 %v2280
  %3199 = vmatpush1.msra.mxu0 %v2279
  %3200 = vmatprep.subr.mxu0 %v2284
  %3201 = vmatpush1.msra.mxu0 %v2283
  %3202 = vmatprep.subr.mxu0 %v2288
  %3203 = vmatpush1.msra.mxu0 %v2287
  %3204 = vmatprep.subr.mxu0 %v2292
  %3205 = vmatpush1.msra.mxu0 %v2291
  %3206 = vmatprep.subr.mxu0 0.0
  %3207 = vmatpush1.msra.mxu0 0.0
  %3208 = vmatprep.subr.mxu0 0.0
  %3209 = vmatpush1.msra.mxu0 0.0
  %3210 = vmatprep.subr.mxu0 0.0
  %3211 = vmatpush1.msra.mxu0 0.0
  %3212 = vmatprep.subr.mxu0 0.0
  %3213 = vmatpush1.msra.mxu0 0.0
  %3214 = vmatprep.subr.mxu0 0.0
  %3215 = vmatpush1.msra.mxu0 0.0
  %3216 = vmatprep.subr.mxu0 0.0
  %3217 = vmatpush1.msra.mxu0 0.0
  %3218 = vmatprep.subr.mxu0 0.0
  %3219 = vmatpush1.msra.mxu0 0.0
  %3220 = vmatprep.subr.mxu0 0.0
  %3221 = vmatpush1.msra.mxu0 0.0
  %3222 = vmatprep.subr.mxu0 0.0
  %3223 = vmatpush1.msra.mxu0 0.0
  %3224 = vmatprep.subr.mxu0 0.0
  %3225 = vmatpush1.msra.mxu0 0.0
  %3226 = vmatprep.subr.mxu0 0.0
  %3227 = vmatpush1.msra.mxu0 0.0
  %3228 = vmatprep.subr.mxu0 0.0
  %3229 = vmatpush1.msra.mxu0 0.0
  %3230 = vmatprep.subr.mxu0 0.0
  %3231 = vmatpush1.msra.mxu0 0.0
  %3232 = vmatprep.subr.mxu0 0.0
  %3233 = vmatpush1.msra.mxu0 0.0
  %3234 = vmatprep.subr.mxu0 0.0
  %3235 = vmatpush1.msra.mxu0 0.0
  %3236 = vmatprep.subr.mxu0 0.0
  %3237 = vmatpush1.msra.mxu0 0.0
  %3238 = vmatprep.mubr.f32.mxu0 0.0
  %3239 = vmatmul.mubr.f32.gmra.mrb[0].mxu0 %v3168
  %v3240 = vpop.f32.mrb[0].mxu0
  %v3241 = vadd.f32 0.0, %v3240
  %v3242 = vpop.f32.mrb[0].mxu0
  %v3243 = vadd.f32 0.0, %v3242
  %3244 = vdwg.mxu0
  %3245 = vmatprep.subr.mxu0 %v2234
  %3246 = vmatpush1.msra.mxu0 %v2233
  %3247 = vmatprep.subr.mxu0 %v2238
  %3248 = vmatpush1.msra.mxu0 %v2237
  %3249 = vmatprep.subr.mxu0 %v2242
  %3250 = vmatpush1.msra.mxu0 %v2241
  %3251 = vmatprep.subr.mxu0 %v2246
  %3252 = vmatpush1.msra.mxu0 %v2245
  %3253 = vmatprep.subr.mxu0 %v2250
  %3254 = vmatpush1.msra.mxu0 %v2249
  %3255 = vmatprep.subr.mxu0 %v2254
  %3256 = vmatpush1.msra.mxu0 %v2253
  %3257 = vmatprep.subr.mxu0 %v2258
  %3258 = vmatpush1.msra.mxu0 %v2257
  %3259 = vmatprep.subr.mxu0 %v2262
  %3260 = vmatpush1.msra.mxu0 %v2261
  %3261 = vmatprep.subr.mxu0 %v2266
  %3262 = vmatpush1.msra.mxu0 %v2265
  %3263 = vmatprep.subr.mxu0 %v2270
  %3264 = vmatpush1.msra.mxu0 %v2269
  %3265 = vmatprep.subr.mxu0 %v2274
  %3266 = vmatpush1.msra.mxu0 %v2273
  %3267 = vmatprep.subr.mxu0 %v2278
  %3268 = vmatpush1.msra.mxu0 %v2277
  %3269 = vmatprep.subr.mxu0 %v2282
  %3270 = vmatpush1.msra.mxu0 %v2281
  %3271 = vmatprep.subr.mxu0 %v2286
  %3272 = vmatpush1.msra.mxu0 %v2285
  %3273 = vmatprep.subr.mxu0 %v2290
  %3274 = vmatpush1.msra.mxu0 %v2289
  %3275 = vmatprep.subr.mxu0 %v2294
  %3276 = vmatpush1.msra.mxu0 %v2293
  %3277 = vmatprep.subr.mxu0 0.0
  %3278 = vmatpush1.msra.mxu0 0.0
  %3279 = vmatprep.subr.mxu0 0.0
  %3280 = vmatpush1.msra.mxu0 0.0
  %3281 = vmatprep.subr.mxu0 0.0
  %3282 = vmatpush1.msra.mxu0 0.0
  %3283 = vmatprep.subr.mxu0 0.0
  %3284 = vmatpush1.msra.mxu0 0.0
  %3285 = vmatprep.subr.mxu0 0.0
  %3286 = vmatpush1.msra.mxu0 0.0
  %3287 = vmatprep.subr.mxu0 0.0
  %3288 = vmatpush1.msra.mxu0 0.0
  %3289 = vmatprep.subr.mxu0 0.0
  %3290 = vmatpush1.msra.mxu0 0.0
  %3291 = vmatprep.subr.mxu0 0.0
  %3292 = vmatpush1.msra.mxu0 0.0
  %3293 = vmatprep.subr.mxu0 0.0
  %3294 = vmatpush1.msra.mxu0 0.0
  %3295 = vmatprep.subr.mxu0 0.0
  %3296 = vmatpush1.msra.mxu0 0.0
  %3297 = vmatprep.subr.mxu0 0.0
  %3298 = vmatpush1.msra.mxu0 0.0
  %3299 = vmatprep.subr.mxu0 0.0
  %3300 = vmatpush1.msra.mxu0 0.0
  %3301 = vmatprep.subr.mxu0 0.0
  %3302 = vmatpush1.msra.mxu0 0.0
  %3303 = vmatprep.subr.mxu0 0.0
  %3304 = vmatpush1.msra.mxu0 0.0
  %3305 = vmatprep.subr.mxu0 0.0
  %3306 = vmatpush1.msra.mxu0 0.0
  %3307 = vmatprep.subr.mxu0 0.0
  %3308 = vmatpush1.msra.mxu0 0.0
  %3309 = vmatprep.mubr.f32.mxu0 0.0
  %3310 = vmatmul.mubr.f32.gmra.mrb[0].mxu0 %v3168
  %v3311 = vpop.f32.mrb[0].mxu0
  %v3312 = vadd.f32 0.0, %v3311
  %v3313 = vpop.f32.mrb[0].mxu0
  %v3314 = vadd.f32 0.0, %v3313
  %3315 = vdwg.mxu0
  %v3316 = vadd.f32 %v3170, %v3241
  %v3317 = vadd.f32 %v3171, %v3243
  %v3318 = vadd.f32 %v3172, %v3312
  %v3319 = vadd.f32 %v3173, %v3314
  %v3320 = vxor.u32 %v3316, 2147483648
  %v3321 = vmul.f32 %v3320, 1.442695
  %v3322 = vpow.pop %v3321
  %v3323 = vadd.f32 %v3322, 1.0
  %v3324 = vrcp.pop %v3323
  %v3325 = vmul.f32 1.0, %v3324
  %v3326 = vxor.u32 %v3317, 2147483648
  %v3327 = vmul.f32 %v3326, 1.442695
  %v3328 = vpow.pop %v3327
  %v3329 = vadd.f32 %v3328, 1.0
  %v3330 = vrcp.pop %v3329
  %v3331 = vmul.f32 1.0, %v3330
  %v3332 = vtanh.pop %v3318
  %v3333 = vxor.u32 %v3319, 2147483648
  %v3334 = vmul.f32 %v3333, 1.442695
  %v3335 = vpow.pop %v3334
  %v3336 = vadd.f32 %v3335, 1.0
  %v3337 = vrcp.pop %v3336
  %v3338 = vmul.f32 1.0, %v3337
  %v3339 = vmul.f32 %v3331, %v3166
  %v3340 = vmul.f32 %v3325, %v3332
  %v3341 = vadd.f32 %v3339, %v3340
  %v3342 = vtanh.pop %v3341
  %v3343 = vmul.f32 %v3338, %v3342
  %3344 = vst [vmem:[%s1519] sm:$0xff] %v3343
  %v3345 = vld [vmem:[%s1523] sm:$0xff]
  %v3346 = vld [vmem:[%s1523 + $0x8] sm:$0xff]
  %v3347 = vld [vmem:[%s1523 + $0x10] sm:$0xff]
  %v3348 = vld [vmem:[%s1523 + $0x18] sm:$0xff]
  %3349 = vmatprep.subr.mxu0 %v2232
  %3350 = vmatpush1.msra.mxu0 %v2231
  %3351 = vmatprep.subr.mxu0 %v2236
  %3352 = vmatpush1.msra.mxu0 %v2235
  %3353 = vmatprep.subr.mxu0 %v2240
  %3354 = vmatpush1.msra.mxu0 %v2239
  %3355 = vmatprep.subr.mxu0 %v2244
  %3356 = vmatpush1.msra.mxu0 %v2243
  %3357 = vmatprep.subr.mxu0 %v2248
  %3358 = vmatpush1.msra.mxu0 %v2247
  %3359 = vmatprep.subr.mxu0 %v2252
  %3360 = vmatpush1.msra.mxu0 %v2251
  %3361 = vmatprep.subr.mxu0 %v2256
  %3362 = vmatpush1.msra.mxu0 %v2255
  %3363 = vmatprep.subr.mxu0 %v2260
  %3364 = vmatpush1.msra.mxu0 %v2259
  %3365 = vmatprep.subr.mxu0 %v2264
  %3366 = vmatpush1.msra.mxu0 %v2263
  %3367 = vmatprep.subr.mxu0 %v2268
  %3368 = vmatpush1.msra.mxu0 %v2267
  %3369 = vmatprep.subr.mxu0 %v2272
  %3370 = vmatpush1.msra.mxu0 %v2271
  %3371 = vmatprep.subr.mxu0 %v2276
  %3372 = vmatpush1.msra.mxu0 %v2275
  %3373 = vmatprep.subr.mxu0 %v2280
  %3374 = vmatpush1.msra.mxu0 %v2279
  %3375 = vmatprep.subr.mxu0 %v2284
  %3376 = vmatpush1.msra.mxu0 %v2283
  %3377 = vmatprep.subr.mxu0 %v2288
  %3378 = vmatpush1.msra.mxu0 %v2287
  %3379 = vmatprep.subr.mxu0 %v2292
  %3380 = vmatpush1.msra.mxu0 %v2291
  %3381 = vmatprep.subr.mxu0 0.0
  %3382 = vmatpush1.msra.mxu0 0.0
  %3383 = vmatprep.subr.mxu0 0.0
  %3384 = vmatpush1.msra.mxu0 0.0
  %3385 = vmatprep.subr.mxu0 0.0
  %3386 = vmatpush1.msra.mxu0 0.0
  %3387 = vmatprep.subr.mxu0 0.0
  %3388 = vmatpush1.msra.mxu0 0.0
  %3389 = vmatprep.subr.mxu0 0.0
  %3390 = vmatpush1.msra.mxu0 0.0
  %3391 = vmatprep.subr.mxu0 0.0
  %3392 = vmatpush1.msra.mxu0 0.0
  %3393 = vmatprep.subr.mxu0 0.0
  %3394 = vmatpush1.msra.mxu0 0.0
  %3395 = vmatprep.subr.mxu0 0.0
  %3396 = vmatpush1.msra.mxu0 0.0
  %3397 = vmatprep.subr.mxu0 0.0
  %3398 = vmatpush1.msra.mxu0 0.0
  %3399 = vmatprep.subr.mxu0 0.0
  %3400 = vmatpush1.msra.mxu0 0.0
  %3401 = vmatprep.subr.mxu0 0.0
  %3402 = vmatpush1.msra.mxu0 0.0
  %3403 = vmatprep.subr.mxu0 0.0
  %3404 = vmatpush1.msra.mxu0 0.0
  %3405 = vmatprep.subr.mxu0 0.0
  %3406 = vmatpush1.msra.mxu0 0.0
  %3407 = vmatprep.subr.mxu0 0.0
  %3408 = vmatpush1.msra.mxu0 0.0
  %3409 = vmatprep.subr.mxu0 0.0
  %3410 = vmatpush1.msra.mxu0 0.0
  %3411 = vmatprep.subr.mxu0 0.0
  %3412 = vmatpush1.msra.mxu0 0.0
  %3413 = vmatprep.mubr.f32.mxu0 0.0
  %3414 = vmatmul.mubr.f32.gmra.mrb[0].mxu0 %v3343
  %v3415 = vpop.f32.mrb[0].mxu0
  %v3416 = vadd.f32 0.0, %v3415
  %v3417 = vpop.f32.mrb[0].mxu0
  %v3418 = vadd.f32 0.0, %v3417
  %3419 = vdwg.mxu0
  %3420 = vmatprep.subr.mxu0 %v2234
  %3421 = vmatpush1.msra.mxu0 %v2233
  %3422 = vmatprep.subr.mxu0 %v2238
  %3423 = vmatpush1.msra.mxu0 %v2237
  %3424 = vmatprep.subr.mxu0 %v2242
  %3425 = vmatpush1.msra.mxu0 %v2241
  %3426 = vmatprep.subr.mxu0 %v2246
  %3427 = vmatpush1.msra.mxu0 %v2245
  %3428 = vmatprep.subr.mxu0 %v2250
  %3429 = vmatpush1.msra.mxu0 %v2249
  %3430 = vmatprep.subr.mxu0 %v2254
  %3431 = vmatpush1.msra.mxu0 %v2253
  %3432 = vmatprep.subr.mxu0 %v2258
  %3433 = vmatpush1.msra.mxu0 %v2257
  %3434 = vmatprep.subr.mxu0 %v2262
  %3435 = vmatpush1.msra.mxu0 %v2261
  %3436 = vmatprep.subr.mxu0 %v2266
  %3437 = vmatpush1.msra.mxu0 %v2265
  %3438 = vmatprep.subr.mxu0 %v2270
  %3439 = vmatpush1.msra.mxu0 %v2269
  %3440 = vmatprep.subr.mxu0 %v2274
  %3441 = vmatpush1.msra.mxu0 %v2273
  %3442 = vmatprep.subr.mxu0 %v2278
  %3443 = vmatpush1.msra.mxu0 %v2277
  %3444 = vmatprep.subr.mxu0 %v2282
  %3445 = vmatpush1.msra.mxu0 %v2281
  %3446 = vmatprep.subr.mxu0 %v2286
  %3447 = vmatpush1.msra.mxu0 %v2285
  %3448 = vmatprep.subr.mxu0 %v2290
  %3449 = vmatpush1.msra.mxu0 %v2289
  %3450 = vmatprep.subr.mxu0 %v2294
  %3451 = vmatpush1.msra.mxu0 %v2293
  %3452 = vmatprep.subr.mxu0 0.0
  %3453 = vmatpush1.msra.mxu0 0.0
  %3454 = vmatprep.subr.mxu0 0.0
  %3455 = vmatpush1.msra.mxu0 0.0
  %3456 = vmatprep.subr.mxu0 0.0
  %3457 = vmatpush1.msra.mxu0 0.0
  %3458 = vmatprep.subr.mxu0 0.0
  %3459 = vmatpush1.msra.mxu0 0.0
  %3460 = vmatprep.subr.mxu0 0.0
  %3461 = vmatpush1.msra.mxu0 0.0
  %3462 = vmatprep.subr.mxu0 0.0
  %3463 = vmatpush1.msra.mxu0 0.0
  %3464 = vmatprep.subr.mxu0 0.0
  %3465 = vmatpush1.msra.mxu0 0.0
  %3466 = vmatprep.subr.mxu0 0.0
  %3467 = vmatpush1.msra.mxu0 0.0
  %3468 = vmatprep.subr.mxu0 0.0
  %3469 = vmatpush1.msra.mxu0 0.0
  %3470 = vmatprep.subr.mxu0 0.0
  %3471 = vmatpush1.msra.mxu0 0.0
  %3472 = vmatprep.subr.mxu0 0.0
  %3473 = vmatpush1.msra.mxu0 0.0
  %3474 = vmatprep.subr.mxu0 0.0
  %3475 = vmatpush1.msra.mxu0 0.0
  %3476 = vmatprep.subr.mxu0 0.0
  %3477 = vmatpush1.msra.mxu0 0.0
  %3478 = vmatprep.subr.mxu0 0.0
  %3479 = vmatpush1.msra.mxu0 0.0
  %3480 = vmatprep.subr.mxu0 0.0
  %3481 = vmatpush1.msra.mxu0 0.0
  %3482 = vmatprep.subr.mxu0 0.0
  %3483 = vmatpush1.msra.mxu0 0.0
  %3484 = vmatprep.mubr.f32.mxu0 0.0
  %3485 = vmatmul.mubr.f32.gmra.mrb[0].mxu0 %v3343
  %v3486 = vpop.f32.mrb[0].mxu0
  %v3487 = vadd.f32 0.0, %v3486
  %v3488 = vpop.f32.mrb[0].mxu0
  %v3489 = vadd.f32 0.0, %v3488
  %3490 = vdwg.mxu0
  %v3491 = vadd.f32 %v3345, %v3416
  %v3492 = vadd.f32 %v3346, %v3418
  %v3493 = vadd.f32 %v3347, %v3487
  %v3494 = vadd.f32 %v3348, %v3489
  %v3495 = vxor.u32 %v3491, 2147483648
  %v3496 = vmul.f32 %v3495, 1.442695
  %v3497 = vpow.pop %v3496
  %v3498 = vadd.f32 %v3497, 1.0
  %v3499 = vrcp.pop %v3498
  %v3500 = vmul.f32 1.0, %v3499
  %v3501 = vxor.u32 %v3492, 2147483648
  %v3502 = vmul.f32 %v3501, 1.442695
  %v3503 = vpow.pop %v3502
  %v3504 = vadd.f32 %v3503, 1.0
  %v3505 = vrcp.pop %v3504
  %v3506 = vmul.f32 1.0, %v3505
  %v3507 = vtanh.pop %v3493
  %v3508 = vxor.u32 %v3494, 2147483648
  %v3509 = vmul.f32 %v3508, 1.442695
  %v3510 = vpow.pop %v3509
  %v3511 = vadd.f32 %v3510, 1.0
  %v3512 = vrcp.pop %v3511
  %v3513 = vmul.f32 1.0, %v3512
  %v3514 = vmul.f32 %v3506, %v3341
  %v3515 = vmul.f32 %v3500, %v3507
  %v3516 = vadd.f32 %v3514, %v3515
  %v3517 = vtanh.pop %v3516
  %v3518 = vmul.f32 %v3513, %v3517
  %3519 = vst [vmem:[%s1698] sm:$0xff] %v3518
  %v3520 = vld [vmem:[%s1702] sm:$0xff]
  %v3521 = vld [vmem:[%s1702 + $0x8] sm:$0xff]
  %v3522 = vld [vmem:[%s1702 + $0x10] sm:$0xff]
  %v3523 = vld [vmem:[%s1702 + $0x18] sm:$0xff]
  %3524 = vmatprep.subr.mxu0 %v2232
  %3525 = vmatpush1.msra.mxu0 %v2231
  %3526 = vmatprep.subr.mxu0 %v2236
  %3527 = vmatpush1.msra.mxu0 %v2235
  %3528 = vmatprep.subr.mxu0 %v2240
  %3529 = vmatpush1.msra.mxu0 %v2239
  %3530 = vmatprep.subr.mxu0 %v2244
  %3531 = vmatpush1.msra.mxu0 %v2243
  %3532 = vmatprep.subr.mxu0 %v2248
  %3533 = vmatpush1.msra.mxu0 %v2247
  %3534 = vmatprep.subr.mxu0 %v2252
  %3535 = vmatpush1.msra.mxu0 %v2251
  %3536 = vmatprep.subr.mxu0 %v2256
  %3537 = vmatpush1.msra.mxu0 %v2255
  %3538 = vmatprep.subr.mxu0 %v2260
  %3539 = vmatpush1.msra.mxu0 %v2259
  %3540 = vmatprep.subr.mxu0 %v2264
  %3541 = vmatpush1.msra.mxu0 %v2263
  %3542 = vmatprep.subr.mxu0 %v2268
  %3543 = vmatpush1.msra.mxu0 %v2267
  %3544 = vmatprep.subr.mxu0 %v2272
  %3545 = vmatpush1.msra.mxu0 %v2271
  %3546 = vmatprep.subr.mxu0 %v2276
  %3547 = vmatpush1.msra.mxu0 %v2275
  %3548 = vmatprep.subr.mxu0 %v2280
  %3549 = vmatpush1.msra.mxu0 %v2279
  %3550 = vmatprep.subr.mxu0 %v2284
  %3551 = vmatpush1.msra.mxu0 %v2283
  %3552 = vmatprep.subr.mxu0 %v2288
  %3553 = vmatpush1.msra.mxu0 %v2287
  %3554 = vmatprep.subr.mxu0 %v2292
  %3555 = vmatpush1.msra.mxu0 %v2291
  %3556 = vmatprep.subr.mxu0 0.0
  %3557 = vmatpush1.msra.mxu0 0.0
  %3558 = vmatprep.subr.mxu0 0.0
  %3559 = vmatpush1.msra.mxu0 0.0
  %3560 = vmatprep.subr.mxu0 0.0
  %3561 = vmatpush1.msra.mxu0 0.0
  %3562 = vmatprep.subr.mxu0 0.0
  %3563 = vmatpush1.msra.mxu0 0.0
  %3564 = vmatprep.subr.mxu0 0.0
  %3565 = vmatpush1.msra.mxu0 0.0
  %3566 = vmatprep.subr.mxu0 0.0
  %3567 = vmatpush1.msra.mxu0 0.0
  %3568 = vmatprep.subr.mxu0 0.0
  %3569 = vmatpush1.msra.mxu0 0.0
  %3570 = vmatprep.subr.mxu0 0.0
  %3571 = vmatpush1.msra.mxu0 0.0
  %3572 = vmatprep.subr.mxu0 0.0
  %3573 = vmatpush1.msra.mxu0 0.0
  %3574 = vmatprep.subr.mxu0 0.0
  %3575 = vmatpush1.msra.mxu0 0.0
  %3576 = vmatprep.subr.mxu0 0.0
  %3577 = vmatpush1.msra.mxu0 0.0
  %3578 = vmatprep.subr.mxu0 0.0
  %3579 = vmatpush1.msra.mxu0 0.0
  %3580 = vmatprep.subr.mxu0 0.0
  %3581 = vmatpush1.msra.mxu0 0.0
  %3582 = vmatprep.subr.mxu0 0.0
  %3583 = vmatpush1.msra.mxu0 0.0
  %3584 = vmatprep.subr.mxu0 0.0
  %3585 = vmatpush1.msra.mxu0 0.0
  %3586 = vmatprep.subr.mxu0 0.0
  %3587 = vmatpush1.msra.mxu0 0.0
  %3588 = vmatprep.mubr.f32.mxu0 0.0
  %3589 = vmatmul.mubr.f32.gmra.mrb[0].mxu0 %v3518
  %v3590 = vpop.f32.mrb[0].mxu0
  %v3591 = vadd.f32 0.0, %v3590
  %v3592 = vpop.f32.mrb[0].mxu0
  %v3593 = vadd.f32 0.0, %v3592
  %3594 = vdwg.mxu0
  %3595 = vmatprep.subr.mxu0 %v2234
  %3596 = vmatpush1.msra.mxu0 %v2233
  %3597 = vmatprep.subr.mxu0 %v2238
  %3598 = vmatpush1.msra.mxu0 %v2237
  %3599 = vmatprep.subr.mxu0 %v2242
  %3600 = vmatpush1.msra.mxu0 %v2241
  %3601 = vmatprep.subr.mxu0 %v2246
  %3602 = vmatpush1.msra.mxu0 %v2245
  %3603 = vmatprep.subr.mxu0 %v2250
  %3604 = vmatpush1.msra.mxu0 %v2249
  %3605 = vmatprep.subr.mxu0 %v2254
  %3606 = vmatpush1.msra.mxu0 %v2253
  %3607 = vmatprep.subr.mxu0 %v2258
  %3608 = vmatpush1.msra.mxu0 %v2257
  %3609 = vmatprep.subr.mxu0 %v2262
  %3610 = vmatpush1.msra.mxu0 %v2261
  %3611 = vmatprep.subr.mxu0 %v2266
  %3612 = vmatpush1.msra.mxu0 %v2265
  %3613 = vmatprep.subr.mxu0 %v2270
  %3614 = vmatpush1.msra.mxu0 %v2269
  %3615 = vmatprep.subr.mxu0 %v2274
  %3616 = vmatpush1.msra.mxu0 %v2273
  %3617 = vmatprep.subr.mxu0 %v2278
  %3618 = vmatpush1.msra.mxu0 %v2277
  %3619 = vmatprep.subr.mxu0 %v2282
  %3620 = vmatpush1.msra.mxu0 %v2281
  %3621 = vmatprep.subr.mxu0 %v2286
  %3622 = vmatpush1.msra.mxu0 %v2285
  %3623 = vmatprep.subr.mxu0 %v2290
  %3624 = vmatpush1.msra.mxu0 %v2289
  %3625 = vmatprep.subr.mxu0 %v2294
  %3626 = vmatpush1.msra.mxu0 %v2293
  %3627 = vmatprep.subr.mxu0 0.0
  %3628 = vmatpush1.msra.mxu0 0.0
  %3629 = vmatprep.subr.mxu0 0.0
  %3630 = vmatpush1.msra.mxu0 0.0
  %3631 = vmatprep.subr.mxu0 0.0
  %3632 = vmatpush1.msra.mxu0 0.0
  %3633 = vmatprep.subr.mxu0 0.0
  %3634 = vmatpush1.msra.mxu0 0.0
  %3635 = vmatprep.subr.mxu0 0.0
  %3636 = vmatpush1.msra.mxu0 0.0
  %3637 = vmatprep.subr.mxu0 0.0
  %3638 = vmatpush1.msra.mxu0 0.0
  %3639 = vmatprep.subr.mxu0 0.0
  %3640 = vmatpush1.msra.mxu0 0.0
  %3641 = vmatprep.subr.mxu0 0.0
  %3642 = vmatpush1.msra.mxu0 0.0
  %3643 = vmatprep.subr.mxu0 0.0
  %3644 = vmatpush1.msra.mxu0 0.0
  %3645 = vmatprep.subr.mxu0 0.0
  %3646 = vmatpush1.msra.mxu0 0.0
  %3647 = vmatprep.subr.mxu0 0.0
  %3648 = vmatpush1.msra.mxu0 0.0
  %3649 = vmatprep.subr.mxu0 0.0
  %3650 = vmatpush1.msra.mxu0 0.0
  %3651 = vmatprep.subr.mxu0 0.0
  %3652 = vmatpush1.msra.mxu0 0.0
  %3653 = vmatprep.subr.mxu0 0.0
  %3654 = vmatpush1.msra.mxu0 0.0
  %3655 = vmatprep.subr.mxu0 0.0
  %3656 = vmatpush1.msra.mxu0 0.0
  %3657 = vmatprep.subr.mxu0 0.0
  %3658 = vmatpush1.msra.mxu0 0.0
  %3659 = vmatprep.mubr.f32.mxu0 0.0
  %3660 = vmatmul.mubr.f32.gmra.mrb[0].mxu0 %v3518
  %v3661 = vpop.f32.mrb[0].mxu0
  %v3662 = vadd.f32 0.0, %v3661
  %v3663 = vpop.f32.mrb[0].mxu0
  %v3664 = vadd.f32 0.0, %v3663
  %3665 = vdwg.mxu0
  %v3666 = vadd.f32 %v3520, %v3591
  %v3667 = vadd.f32 %v3521, %v3593
  %v3668 = vadd.f32 %v3522, %v3662
  %v3669 = vadd.f32 %v3523, %v3664
  %v3670 = vxor.u32 %v3666, 2147483648
  %v3671 = vmul.f32 %v3670, 1.442695
  %v3672 = vpow.pop %v3671
  %v3673 = vadd.f32 %v3672, 1.0
  %v3674 = vrcp.pop %v3673
  %v3675 = vmul.f32 1.0, %v3674
  %v3676 = vxor.u32 %v3667, 2147483648
  %v3677 = vmul.f32 %v3676, 1.442695
  %v3678 = vpow.pop %v3677
  %v3679 = vadd.f32 %v3678, 1.0
  %v3680 = vrcp.pop %v3679
  %v3681 = vmul.f32 1.0, %v3680
  %v3682 = vtanh.pop %v3668
  %v3683 = vxor.u32 %v3669, 2147483648
  %v3684 = vmul.f32 %v3683, 1.442695
  %v3685 = vpow.pop %v3684
  %v3686 = vadd.f32 %v3685, 1.0
  %v3687 = vrcp.pop %v3686
  %v3688 = vmul.f32 1.0, %v3687
  %v3689 = vmul.f32 %v3681, %v3516
  %v3690 = vmul.f32 %v3675, %v3682
  %v3691 = vadd.f32 %v3689, %v3690
  %v3692 = vtanh.pop %v3691
  %v3693 = vmul.f32 %v3688, %v3692
  %3694 = vst [vmem:[%s1877] sm:$0xff] %v3693
  %v3695 = vld [vmem:[%s7] sm:$0xff]
  %v3696 = vld [vmem:[%s7 + $0x8] sm:$0xff]
  %v3697 = vld [vmem:[%s7 + $0x10] sm:$0xff]
  %v3698 = vld [vmem:[%s7 + $0x18] sm:$0xff]
  %v3699 = vld [vmem:[%s7 + $0x20] sm:$0xff]
  %v3700 = vld [vmem:[%s7 + $0x28] sm:$0xff]
  %v3701 = vld [vmem:[%s7 + $0x30] sm:$0xff]
  %v3702 = vld [vmem:[%s7 + $0x38] sm:$0xff]
  %v3703 = vld [vmem:[%s7 + $0x40] sm:$0xff]
  %v3704 = vld [vmem:[%s7 + $0x48] sm:$0xff]
  %v3705 = vld [vmem:[%s7 + $0x50] sm:$0xff]
  %v3706 = vld [vmem:[%s7 + $0x58] sm:$0xff]
  %v3707 = vld [vmem:[%s7 + $0x60] sm:$0xff]
  %v3708 = vld [vmem:[%s7 + $0x68] sm:$0xff]
  %v3709 = vld [vmem:[%s7 + $0x70] sm:$0xff]
  %v3710 = vld [vmem:[%s7 + $0x78] sm:$0xff]
  %v3711 = vld [vmem:[%s7 + $0x80] sm:$0xff]
  %v3712 = vld [vmem:[%s7 + $0x88] sm:$0xff]
  %v3713 = vld [vmem:[%s7 + $0x90] sm:$0xff]
  %v3714 = vld [vmem:[%s7 + $0x98] sm:$0xff]
  %v3715 = vld [vmem:[%s7 + $0xa0] sm:$0xff]
  %v3716 = vld [vmem:[%s7 + $0xa8] sm:$0xff]
  %v3717 = vld [vmem:[%s7 + $0xb0] sm:$0xff]
  %v3718 = vld [vmem:[%s7 + $0xb8] sm:$0xff]
  %v3719 = vld [vmem:[%s7 + $0xc0] sm:$0xff]
  %v3720 = vld [vmem:[%s7 + $0xc8] sm:$0xff]
  %v3721 = vld [vmem:[%s7 + $0xd0] sm:$0xff]
  %v3722 = vld [vmem:[%s7 + $0xd8] sm:$0xff]
  %v3723 = vld [vmem:[%s7 + $0xe0] sm:$0xff]
  %v3724 = vld [vmem:[%s7 + $0xe8] sm:$0xff]
  %v3725 = vld [vmem:[%s7 + $0xf0] sm:$0xff]
  %v3726 = vld [vmem:[%s7 + $0xf8] sm:$0xff]
  %v3727 = vld [vmem:[%s7 + $0x100] sm:$0xff]
  %v3728 = vld [vmem:[%s7 + $0x108] sm:$0xff]
  %v3729 = vld [vmem:[%s7 + $0x110] sm:$0xff]
  %v3730 = vld [vmem:[%s7 + $0x118] sm:$0xff]
  %v3731 = vld [vmem:[%s7 + $0x120] sm:$0xff]
  %v3732 = vld [vmem:[%s7 + $0x128] sm:$0xff]
  %v3733 = vld [vmem:[%s7 + $0x130] sm:$0xff]
  %v3734 = vld [vmem:[%s7 + $0x138] sm:$0xff]
  %v3735 = vld [vmem:[%s7 + $0x140] sm:$0xff]
  %v3736 = vld [vmem:[%s7 + $0x148] sm:$0xff]
  %v3737 = vld [vmem:[%s7 + $0x150] sm:$0xff]
  %v3738 = vld [vmem:[%s7 + $0x158] sm:$0xff]
  %v3739 = vld [vmem:[%s7 + $0x160] sm:$0xff]
  %v3740 = vld [vmem:[%s7 + $0x168] sm:$0xff]
  %v3741 = vld [vmem:[%s7 + $0x170] sm:$0xff]
  %v3742 = vld [vmem:[%s7 + $0x178] sm:$0xff]
  %v3743 = vld [vmem:[%s7 + $0x180] sm:$0xff]
  %v3744 = vld [vmem:[%s7 + $0x188] sm:$0xff]
  %v3745 = vld [vmem:[%s7 + $0x190] sm:$0xff]
  %v3746 = vld [vmem:[%s7 + $0x198] sm:$0xff]
  %v3747 = vld [vmem:[%s7 + $0x1a0] sm:$0xff]
  %v3748 = vld [vmem:[%s7 + $0x1a8] sm:$0xff]
  %v3749 = vld [vmem:[%s7 + $0x1b0] sm:$0xff]
  %v3750 = vld [vmem:[%s7 + $0x1b8] sm:$0xff]
  %v3751 = vld [vmem:[%s7 + $0x1c0] sm:$0xff]
  %v3752 = vld [vmem:[%s7 + $0x1c8] sm:$0xff]
  %v3753 = vld [vmem:[%s7 + $0x1d0] sm:$0xff]
  %v3754 = vld [vmem:[%s7 + $0x1d8] sm:$0xff]
  %v3755 = vld [vmem:[%s7 + $0x1e0] sm:$0xff]
  %v3756 = vld [vmem:[%s7 + $0x1e8] sm:$0xff]
  %v3757 = vld [vmem:[%s7 + $0x1f0] sm:$0xff]
  %v3758 = vld [vmem:[%s7 + $0x1f8] sm:$0xff]
  %v3759 = vld [vmem:[%s7 + $0x200] sm:$0xff]
  %v3760 = vld [vmem:[%s7 + $0x208] sm:$0xff]
  %v3761 = vld [vmem:[%s7 + $0x210] sm:$0xff]
  %v3762 = vld [vmem:[%s7 + $0x218] sm:$0xff]
  %v3763 = vld [vmem:[%s7 + $0x220] sm:$0xff]
  %v3764 = vld [vmem:[%s7 + $0x228] sm:$0xff]
  %v3765 = vld [vmem:[%s7 + $0x230] sm:$0xff]
  %v3766 = vld [vmem:[%s7 + $0x238] sm:$0xff]
  %v3767 = vld [vmem:[%s7 + $0x240] sm:$0xff]
  %v3768 = vld [vmem:[%s7 + $0x248] sm:$0xff]
  %v3769 = vld [vmem:[%s7 + $0x250] sm:$0xff]
  %v3770 = vld [vmem:[%s7 + $0x258] sm:$0xff]
  %v3771 = vld [vmem:[%s7 + $0x260] sm:$0xff]
  %v3772 = vld [vmem:[%s7 + $0x268] sm:$0xff]
  %v3773 = vld [vmem:[%s7 + $0x270] sm:$0xff]
  %v3774 = vld [vmem:[%s7 + $0x278] sm:$0xff]
  %v3775 = vld [vmem:[%s7 + $0x280] sm:$0xff]
  %v3776 = vld [vmem:[%s7 + $0x288] sm:$0xff]
  %v3777 = vld [vmem:[%s7 + $0x290] sm:$0xff]
  %v3778 = vld [vmem:[%s7 + $0x298] sm:$0xff]
  %v3779 = vld [vmem:[%s7 + $0x2a0] sm:$0xff]
  %v3780 = vld [vmem:[%s7 + $0x2a8] sm:$0xff]
  %v3781 = vld [vmem:[%s7 + $0x2b0] sm:$0xff]
  %v3782 = vld [vmem:[%s7 + $0x2b8] sm:$0xff]
  %v3783 = vld [vmem:[%s7 + $0x2c0] sm:$0xff]
  %v3784 = vld [vmem:[%s7 + $0x2c8] sm:$0xff]
  %v3785 = vld [vmem:[%s7 + $0x2d0] sm:$0xff]
  %v3786 = vld [vmem:[%s7 + $0x2d8] sm:$0xff]
  %v3787 = vld [vmem:[%s7 + $0x2e0] sm:$0xff]
  %v3788 = vld [vmem:[%s7 + $0x2e8] sm:$0xff]
  %v3789 = vld [vmem:[%s7 + $0x2f0] sm:$0xff]
  %v3790 = vld [vmem:[%s7 + $0x2f8] sm:$0xff]
  %v3791 = vld [vmem:[%s7 + $0x300] sm:$0xff]
  %v3792 = vld [vmem:[%s7 + $0x308] sm:$0xff]
  %v3793 = vld [vmem:[%s7 + $0x310] sm:$0xff]
  %v3794 = vld [vmem:[%s7 + $0x318] sm:$0xff]
  %v3795 = vld [vmem:[%s7 + $0x320] sm:$0xff]
  %v3796 = vld [vmem:[%s7 + $0x328] sm:$0xff]
  %v3797 = vld [vmem:[%s7 + $0x330] sm:$0xff]
  %v3798 = vld [vmem:[%s7 + $0x338] sm:$0xff]
  %v3799 = vld [vmem:[%s7 + $0x340] sm:$0xff]
  %v3800 = vld [vmem:[%s7 + $0x348] sm:$0xff]
  %v3801 = vld [vmem:[%s7 + $0x350] sm:$0xff]
  %v3802 = vld [vmem:[%s7 + $0x358] sm:$0xff]
  %v3803 = vld [vmem:[%s7 + $0x360] sm:$0xff]
  %v3804 = vld [vmem:[%s7 + $0x368] sm:$0xff]
  %v3805 = vld [vmem:[%s7 + $0x370] sm:$0xff]
  %v3806 = vld [vmem:[%s7 + $0x378] sm:$0xff]
  %v3807 = vld [vmem:[%s7 + $0x380] sm:$0xff]
  %v3808 = vld [vmem:[%s7 + $0x388] sm:$0xff]
  %v3809 = vld [vmem:[%s7 + $0x390] sm:$0xff]
  %v3810 = vld [vmem:[%s7 + $0x398] sm:$0xff]
  %v3811 = vld [vmem:[%s7 + $0x3a0] sm:$0xff]
  %v3812 = vld [vmem:[%s7 + $0x3a8] sm:$0xff]
  %v3813 = vld [vmem:[%s7 + $0x3b0] sm:$0xff]
  %v3814 = vld [vmem:[%s7 + $0x3b8] sm:$0xff]
  %v3815 = vld [vmem:[%s7 + $0x3c0] sm:$0xff]
  %v3816 = vld [vmem:[%s7 + $0x3c8] sm:$0xff]
  %v3817 = vld [vmem:[%s7 + $0x3d0] sm:$0xff]
  %v3818 = vld [vmem:[%s7 + $0x3d8] sm:$0xff]
  %v3819 = vld [vmem:[%s7 + $0x3e0] sm:$0xff]
  %v3820 = vld [vmem:[%s7 + $0x3e8] sm:$0xff]
  %v3821 = vld [vmem:[%s7 + $0x3f0] sm:$0xff]
  %v3822 = vld [vmem:[%s7 + $0x3f8] sm:$0xff]
  %v3823 = vld [vmem:[#allocation3] sm:$0xff]
  %v3824 = vld [vmem:[#allocation3 + $0x8] sm:$0xff]
  %3825 = vmatprep.subr.mxu0 0.0
  %3826 = vmatpush1.msra.mxu0 %v3711
  %3827 = vmatprep.subr.mxu0 0.0
  %3828 = vmatpush1.msra.mxu0 %v3712
  %3829 = vmatprep.subr.mxu0 0.0
  %3830 = vmatpush1.msra.mxu0 %v3713
  %3831 = vmatprep.subr.mxu0 0.0
  %3832 = vmatpush1.msra.mxu0 %v3714
  %3833 = vmatprep.subr.mxu0 0.0
  %3834 = vmatpush1.msra.mxu0 %v3715
  %3835 = vmatprep.subr.mxu0 0.0
  %3836 = vmatpush1.msra.mxu0 %v3716
  %3837 = vmatprep.subr.mxu0 0.0
  %3838 = vmatpush1.msra.mxu0 %v3717
  %3839 = vmatprep.subr.mxu0 0.0
  %3840 = vmatpush1.msra.mxu0 %v3718
  %3841 = vmatprep.subr.mxu0 0.0
  %3842 = vmatpush1.msra.mxu0 %v3719
  %3843 = vmatprep.subr.mxu0 0.0
  %3844 = vmatpush1.msra.mxu0 %v3720
  %3845 = vmatprep.subr.mxu0 0.0
  %3846 = vmatpush1.msra.mxu0 %v3721
  %3847 = vmatprep.subr.mxu0 0.0
  %3848 = vmatpush1.msra.mxu0 %v3722
  %3849 = vmatprep.subr.mxu0 0.0
  %3850 = vmatpush1.msra.mxu0 %v3723
  %3851 = vmatprep.subr.mxu0 0.0
  %3852 = vmatpush1.msra.mxu0 %v3724
  %3853 = vmatprep.subr.mxu0 0.0
  %3854 = vmatpush1.msra.mxu0 %v3725
  %3855 = vmatprep.subr.mxu0 0.0
  %3856 = vmatpush1.msra.mxu0 %v3726
  %3857 = vmatprep.subr.mxu0 0.0
  %3858 = vmatpush1.msra.mxu0 0.0
  %3859 = vmatprep.subr.mxu0 0.0
  %3860 = vmatpush1.msra.mxu0 0.0
  %3861 = vmatprep.subr.mxu0 0.0
  %3862 = vmatpush1.msra.mxu0 0.0
  %3863 = vmatprep.subr.mxu0 0.0
  %3864 = vmatpush1.msra.mxu0 0.0
  %3865 = vmatprep.subr.mxu0 0.0
  %3866 = vmatpush1.msra.mxu0 0.0
  %3867 = vmatprep.subr.mxu0 0.0
  %3868 = vmatpush1.msra.mxu0 0.0
  %3869 = vmatprep.subr.mxu0 0.0
  %3870 = vmatpush1.msra.mxu0 0.0
  %3871 = vmatprep.subr.mxu0 0.0
  %3872 = vmatpush1.msra.mxu0 0.0
  %3873 = vmatprep.subr.mxu0 0.0
  %3874 = vmatpush1.msra.mxu0 0.0
  %3875 = vmatprep.subr.mxu0 0.0
  %3876 = vmatpush1.msra.mxu0 0.0
  %3877 = vmatprep.subr.mxu0 0.0
  %3878 = vmatpush1.msra.mxu0 0.0
  %3879 = vmatprep.subr.mxu0 0.0
  %3880 = vmatpush1.msra.mxu0 0.0
  %3881 = vmatprep.subr.mxu0 0.0
  %3882 = vmatpush1.msra.mxu0 0.0
  %3883 = vmatprep.subr.mxu0 0.0
  %3884 = vmatpush1.msra.mxu0 0.0
  %3885 = vmatprep.subr.mxu0 0.0
  %3886 = vmatpush1.msra.mxu0 0.0
  %3887 = vmatprep.subr.mxu0 0.0
  %3888 = vmatpush1.msra.mxu0 0.0
  %3889 = vmatprep.mubr.f32.mxu0 0.0
  %3890 = vmatmul.mubr.f32.gmra.mrb[0].mxu0 %v3824
  %v3891 = vpop.f32.mrb[0].mxu0
  %v3892 = vadd.f32 0.0, %v3891
  %v3893 = vpop.f32.mrb[0].mxu0
  %3894 = vdwg.mxu0
  %3895 = vmatprep.subr.mxu0 0.0
  %3896 = vmatpush1.msra.mxu0 %v3695
  %3897 = vmatprep.subr.mxu0 0.0
  %3898 = vmatpush1.msra.mxu0 %v3696
  %3899 = vmatprep.subr.mxu0 0.0
  %3900 = vmatpush1.msra.mxu0 %v3697
  %3901 = vmatprep.subr.mxu0 0.0
  %3902 = vmatpush1.msra.mxu0 %v3698
  %3903 = vmatprep.subr.mxu0 0.0
  %3904 = vmatpush1.msra.mxu0 %v3699
  %3905 = vmatprep.subr.mxu0 0.0
  %3906 = vmatpush1.msra.mxu0 %v3700
  %3907 = vmatprep.subr.mxu0 0.0
  %3908 = vmatpush1.msra.mxu0 %v3701
  %3909 = vmatprep.subr.mxu0 0.0
  %3910 = vmatpush1.msra.mxu0 %v3702
  %3911 = vmatprep.subr.mxu0 0.0
  %3912 = vmatpush1.msra.mxu0 %v3703
  %3913 = vmatprep.subr.mxu0 0.0
  %3914 = vmatpush1.msra.mxu0 %v3704
  %3915 = vmatprep.subr.mxu0 0.0
  %3916 = vmatpush1.msra.mxu0 %v3705
  %3917 = vmatprep.subr.mxu0 0.0
  %3918 = vmatpush1.msra.mxu0 %v3706
  %3919 = vmatprep.subr.mxu0 0.0
  %3920 = vmatpush1.msra.mxu0 %v3707
  %3921 = vmatprep.subr.mxu0 0.0
  %3922 = vmatpush1.msra.mxu0 %v3708
  %3923 = vmatprep.subr.mxu0 0.0
  %3924 = vmatpush1.msra.mxu0 %v3709
  %3925 = vmatprep.subr.mxu0 0.0
  %3926 = vmatpush1.msra.mxu0 %v3710
  %3927 = vmatprep.subr.mxu0 0.0
  %3928 = vmatpush1.msra.mxu0 0.0
  %3929 = vmatprep.subr.mxu0 0.0
  %3930 = vmatpush1.msra.mxu0 0.0
  %3931 = vmatprep.subr.mxu0 0.0
  %3932 = vmatpush1.msra.mxu0 0.0
  %3933 = vmatprep.subr.mxu0 0.0
  %3934 = vmatpush1.msra.mxu0 0.0
  %3935 = vmatprep.subr.mxu0 0.0
  %3936 = vmatpush1.msra.mxu0 0.0
  %3937 = vmatprep.subr.mxu0 0.0
  %3938 = vmatpush1.msra.mxu0 0.0
  %3939 = vmatprep.subr.mxu0 0.0
  %3940 = vmatpush1.msra.mxu0 0.0
  %3941 = vmatprep.subr.mxu0 0.0
  %3942 = vmatpush1.msra.mxu0 0.0
  %3943 = vmatprep.subr.mxu0 0.0
  %3944 = vmatpush1.msra.mxu0 0.0
  %3945 = vmatprep.subr.mxu0 0.0
  %3946 = vmatpush1.msra.mxu0 0.0
  %3947 = vmatprep.subr.mxu0 0.0
  %3948 = vmatpush1.msra.mxu0 0.0
  %3949 = vmatprep.subr.mxu0 0.0
  %3950 = vmatpush1.msra.mxu0 0.0
  %3951 = vmatprep.subr.mxu0 0.0
  %3952 = vmatpush1.msra.mxu0 0.0
  %3953 = vmatprep.subr.mxu0 0.0
  %3954 = vmatpush1.msra.mxu0 0.0
  %3955 = vmatprep.subr.mxu0 0.0
  %3956 = vmatpush1.msra.mxu0 0.0
  %3957 = vmatprep.subr.mxu0 0.0
  %3958 = vmatpush1.msra.mxu0 0.0
  %3959 = vmatprep.mubr.f32.mxu0 0.0
  %3960 = vmatmul.mubr.f32.gmra.mrb[0].mxu0 %v3823
  %v3961 = vpop.f32.mrb[0].mxu0
  %v3962 = vadd.f32 %v3892, %v3961
  %v3963 = vpop.f32.mrb[0].mxu0
  %3964 = vdwg.mxu0
  %v3965 = vld [vmem:[#allocation3 + $0x10] sm:$0xff]
  %3966 = vmatprep.subr.mxu0 0.0
  %3967 = vmatpush1.msra.mxu0 %v3727
  %3968 = vmatprep.subr.mxu0 0.0
  %3969 = vmatpush1.msra.mxu0 %v3728
  %3970 = vmatprep.subr.mxu0 0.0
  %3971 = vmatpush1.msra.mxu0 %v3729
  %3972 = vmatprep.subr.mxu0 0.0
  %3973 = vmatpush1.msra.mxu0 %v3730
  %3974 = vmatprep.subr.mxu0 0.0
  %3975 = vmatpush1.msra.mxu0 %v3731
  %3976 = vmatprep.subr.mxu0 0.0
  %3977 = vmatpush1.msra.mxu0 %v3732
  %3978 = vmatprep.subr.mxu0 0.0
  %3979 = vmatpush1.msra.mxu0 %v3733
  %3980 = vmatprep.subr.mxu0 0.0
  %3981 = vmatpush1.msra.mxu0 %v3734
  %3982 = vmatprep.subr.mxu0 0.0
  %3983 = vmatpush1.msra.mxu0 %v3735
  %3984 = vmatprep.subr.mxu0 0.0
  %3985 = vmatpush1.msra.mxu0 %v3736
  %3986 = vmatprep.subr.mxu0 0.0
  %3987 = vmatpush1.msra.mxu0 %v3737
  %3988 = vmatprep.subr.mxu0 0.0
  %3989 = vmatpush1.msra.mxu0 %v3738
  %3990 = vmatprep.subr.mxu0 0.0
  %3991 = vmatpush1.msra.mxu0 %v3739
  %3992 = vmatprep.subr.mxu0 0.0
  %3993 = vmatpush1.msra.mxu0 %v3740
  %3994 = vmatprep.subr.mxu0 0.0
  %3995 = vmatpush1.msra.mxu0 %v3741
  %3996 = vmatprep.subr.mxu0 0.0
  %3997 = vmatpush1.msra.mxu0 %v3742
  %3998 = vmatprep.subr.mxu0 0.0
  %3999 = vmatpush1.msra.mxu0 0.0
  %4000 = vmatprep.subr.mxu0 0.0
  %4001 = vmatpush1.msra.mxu0 0.0
  %4002 = vmatprep.subr.mxu0 0.0
  %4003 = vmatpush1.msra.mxu0 0.0
  %4004 = vmatprep.subr.mxu0 0.0
  %4005 = vmatpush1.msra.mxu0 0.0
  %4006 = vmatprep.subr.mxu0 0.0
  %4007 = vmatpush1.msra.mxu0 0.0
  %4008 = vmatprep.subr.mxu0 0.0
  %4009 = vmatpush1.msra.mxu0 0.0
  %4010 = vmatprep.subr.mxu0 0.0
  %4011 = vmatpush1.msra.mxu0 0.0
  %4012 = vmatprep.subr.mxu0 0.0
  %4013 = vmatpush1.msra.mxu0 0.0
  %4014 = vmatprep.subr.mxu0 0.0
  %4015 = vmatpush1.msra.mxu0 0.0
  %4016 = vmatprep.subr.mxu0 0.0
  %4017 = vmatpush1.msra.mxu0 0.0
  %4018 = vmatprep.subr.mxu0 0.0
  %4019 = vmatpush1.msra.mxu0 0.0
  %4020 = vmatprep.subr.mxu0 0.0
  %4021 = vmatpush1.msra.mxu0 0.0
  %4022 = vmatprep.subr.mxu0 0.0
  %4023 = vmatpush1.msra.mxu0 0.0
  %4024 = vmatprep.subr.mxu0 0.0
  %4025 = vmatpush1.msra.mxu0 0.0
  %4026 = vmatprep.subr.mxu0 0.0
  %4027 = vmatpush1.msra.mxu0 0.0
  %4028 = vmatprep.subr.mxu0 0.0
  %4029 = vmatpush1.msra.mxu0 0.0
  %4030 = vmatprep.mubr.f32.mxu0 0.0
  %4031 = vmatmul.mubr.f32.gmra.mrb[0].mxu0 %v3965
  %v4032 = vpop.f32.mrb[0].mxu0
  %v4033 = vadd.f32 0.0, %v4032
  %v4034 = vpop.f32.mrb[0].mxu0
  %4035 = vdwg.mxu0
  %v4036 = vadd.f32 %v3962, %v4033
  %v4037 = vld [vmem:[#allocation3 + $0x18] sm:$0xff]
  %4038 = vmatprep.subr.mxu0 0.0
  %4039 = vmatpush1.msra.mxu0 %v3743
  %4040 = vmatprep.subr.mxu0 0.0
  %4041 = vmatpush1.msra.mxu0 %v3744
  %4042 = vmatprep.subr.mxu0 0.0
  %4043 = vmatpush1.msra.mxu0 %v3745
  %4044 = vmatprep.subr.mxu0 0.0
  %4045 = vmatpush1.msra.mxu0 %v3746
  %4046 = vmatprep.subr.mxu0 0.0
  %4047 = vmatpush1.msra.mxu0 %v3747
  %4048 = vmatprep.subr.mxu0 0.0
  %4049 = vmatpush1.msra.mxu0 %v3748
  %4050 = vmatprep.subr.mxu0 0.0
  %4051 = vmatpush1.msra.mxu0 %v3749
  %4052 = vmatprep.subr.mxu0 0.0
  %4053 = vmatpush1.msra.mxu0 %v3750
  %4054 = vmatprep.subr.mxu0 0.0
  %4055 = vmatpush1.msra.mxu0 %v3751
  %4056 = vmatprep.subr.mxu0 0.0
  %4057 = vmatpush1.msra.mxu0 %v3752
  %4058 = vmatprep.subr.mxu0 0.0
  %4059 = vmatpush1.msra.mxu0 %v3753
  %4060 = vmatprep.subr.mxu0 0.0
  %4061 = vmatpush1.msra.mxu0 %v3754
  %4062 = vmatprep.subr.mxu0 0.0
  %4063 = vmatpush1.msra.mxu0 %v3755
  %4064 = vmatprep.subr.mxu0 0.0
  %4065 = vmatpush1.msra.mxu0 %v3756
  %4066 = vmatprep.subr.mxu0 0.0
  %4067 = vmatpush1.msra.mxu0 %v3757
  %4068 = vmatprep.subr.mxu0 0.0
  %4069 = vmatpush1.msra.mxu0 %v3758
  %4070 = vmatprep.subr.mxu0 0.0
  %4071 = vmatpush1.msra.mxu0 0.0
  %4072 = vmatprep.subr.mxu0 0.0
  %4073 = vmatpush1.msra.mxu0 0.0
  %4074 = vmatprep.subr.mxu0 0.0
  %4075 = vmatpush1.msra.mxu0 0.0
  %4076 = vmatprep.subr.mxu0 0.0
  %4077 = vmatpush1.msra.mxu0 0.0
  %4078 = vmatprep.subr.mxu0 0.0
  %4079 = vmatpush1.msra.mxu0 0.0
  %4080 = vmatprep.subr.mxu0 0.0
  %4081 = vmatpush1.msra.mxu0 0.0
  %4082 = vmatprep.subr.mxu0 0.0
  %4083 = vmatpush1.msra.mxu0 0.0
  %4084 = vmatprep.subr.mxu0 0.0
  %4085 = vmatpush1.msra.mxu0 0.0
  %4086 = vmatprep.subr.mxu0 0.0
  %4087 = vmatpush1.msra.mxu0 0.0
  %4088 = vmatprep.subr.mxu0 0.0
  %4089 = vmatpush1.msra.mxu0 0.0
  %4090 = vmatprep.subr.mxu0 0.0
  %4091 = vmatpush1.msra.mxu0 0.0
  %4092 = vmatprep.subr.mxu0 0.0
  %4093 = vmatpush1.msra.mxu0 0.0
  %4094 = vmatprep.subr.mxu0 0.0
  %4095 = vmatpush1.msra.mxu0 0.0
  %4096 = vmatprep.subr.mxu0 0.0
  %4097 = vmatpush1.msra.mxu0 0.0
  %4098 = vmatprep.subr.mxu0 0.0
  %4099 = vmatpush1.msra.mxu0 0.0
  %4100 = vmatprep.subr.mxu0 0.0
  %4101 = vmatpush1.msra.mxu0 0.0
  %4102 = vmatprep.mubr.f32.mxu0 0.0
  %4103 = vmatmul.mubr.f32.gmra.mrb[0].mxu0 %v4037
  %v4104 = vpop.f32.mrb[0].mxu0
  %v4105 = vadd.f32 0.0, %v4104
  %v4106 = vpop.f32.mrb[0].mxu0
  %4107 = vdwg.mxu0
  %v4108 = vadd.f32 %v4036, %v4105
  %v4109 = vld [vmem:[#allocation3 + $0x20] sm:$0xff]
  %4110 = vmatprep.subr.mxu0 0.0
  %4111 = vmatpush1.msra.mxu0 %v3759
  %4112 = vmatprep.subr.mxu0 0.0
  %4113 = vmatpush1.msra.mxu0 %v3760
  %4114 = vmatprep.subr.mxu0 0.0
  %4115 = vmatpush1.msra.mxu0 %v3761
  %4116 = vmatprep.subr.mxu0 0.0
  %4117 = vmatpush1.msra.mxu0 %v3762
  %4118 = vmatprep.subr.mxu0 0.0
  %4119 = vmatpush1.msra.mxu0 %v3763
  %4120 = vmatprep.subr.mxu0 0.0
  %4121 = vmatpush1.msra.mxu0 %v3764
  %4122 = vmatprep.subr.mxu0 0.0
  %4123 = vmatpush1.msra.mxu0 %v3765
  %4124 = vmatprep.subr.mxu0 0.0
  %4125 = vmatpush1.msra.mxu0 %v3766
  %4126 = vmatprep.subr.mxu0 0.0
  %4127 = vmatpush1.msra.mxu0 %v3767
  %4128 = vmatprep.subr.mxu0 0.0
  %4129 = vmatpush1.msra.mxu0 %v3768
  %4130 = vmatprep.subr.mxu0 0.0
  %4131 = vmatpush1.msra.mxu0 %v3769
  %4132 = vmatprep.subr.mxu0 0.0
  %4133 = vmatpush1.msra.mxu0 %v3770
  %4134 = vmatprep.subr.mxu0 0.0
  %4135 = vmatpush1.msra.mxu0 %v3771
  %4136 = vmatprep.subr.mxu0 0.0
  %4137 = vmatpush1.msra.mxu0 %v3772
  %4138 = vmatprep.subr.mxu0 0.0
  %4139 = vmatpush1.msra.mxu0 %v3773
  %4140 = vmatprep.subr.mxu0 0.0
  %4141 = vmatpush1.msra.mxu0 %v3774
  %4142 = vmatprep.subr.mxu0 0.0
  %4143 = vmatpush1.msra.mxu0 0.0
  %4144 = vmatprep.subr.mxu0 0.0
  %4145 = vmatpush1.msra.mxu0 0.0
  %4146 = vmatprep.subr.mxu0 0.0
  %4147 = vmatpush1.msra.mxu0 0.0
  %4148 = vmatprep.subr.mxu0 0.0
  %4149 = vmatpush1.msra.mxu0 0.0
  %4150 = vmatprep.subr.mxu0 0.0
  %4151 = vmatpush1.msra.mxu0 0.0
  %4152 = vmatprep.subr.mxu0 0.0
  %4153 = vmatpush1.msra.mxu0 0.0
  %4154 = vmatprep.subr.mxu0 0.0
  %4155 = vmatpush1.msra.mxu0 0.0
  %4156 = vmatprep.subr.mxu0 0.0
  %4157 = vmatpush1.msra.mxu0 0.0
  %4158 = vmatprep.subr.mxu0 0.0
  %4159 = vmatpush1.msra.mxu0 0.0
  %4160 = vmatprep.subr.mxu0 0.0
  %4161 = vmatpush1.msra.mxu0 0.0
  %4162 = vmatprep.subr.mxu0 0.0
  %4163 = vmatpush1.msra.mxu0 0.0
  %4164 = vmatprep.subr.mxu0 0.0
  %4165 = vmatpush1.msra.mxu0 0.0
  %4166 = vmatprep.subr.mxu0 0.0
  %4167 = vmatpush1.msra.mxu0 0.0
  %4168 = vmatprep.subr.mxu0 0.0
  %4169 = vmatpush1.msra.mxu0 0.0
  %4170 = vmatprep.subr.mxu0 0.0
  %4171 = vmatpush1.msra.mxu0 0.0
  %4172 = vmatprep.subr.mxu0 0.0
  %4173 = vmatpush1.msra.mxu0 0.0
  %4174 = vmatprep.mubr.f32.mxu0 0.0
  %4175 = vmatmul.mubr.f32.gmra.mrb[0].mxu0 %v4109
  %v4176 = vpop.f32.mrb[0].mxu0
  %v4177 = vadd.f32 0.0, %v4176
  %v4178 = vpop.f32.mrb[0].mxu0
  %4179 = vdwg.mxu0
  %v4180 = vadd.f32 %v4108, %v4177
  %v4181 = vld [vmem:[#allocation3 + $0x28] sm:$0xff]
  %4182 = vmatprep.subr.mxu0 0.0
  %4183 = vmatpush1.msra.mxu0 %v3775
  %4184 = vmatprep.subr.mxu0 0.0
  %4185 = vmatpush1.msra.mxu0 %v3776
  %4186 = vmatprep.subr.mxu0 0.0
  %4187 = vmatpush1.msra.mxu0 %v3777
  %4188 = vmatprep.subr.mxu0 0.0
  %4189 = vmatpush1.msra.mxu0 %v3778
  %4190 = vmatprep.subr.mxu0 0.0
  %4191 = vmatpush1.msra.mxu0 %v3779
  %4192 = vmatprep.subr.mxu0 0.0
  %4193 = vmatpush1.msra.mxu0 %v3780
  %4194 = vmatprep.subr.mxu0 0.0
  %4195 = vmatpush1.msra.mxu0 %v3781
  %4196 = vmatprep.subr.mxu0 0.0
  %4197 = vmatpush1.msra.mxu0 %v3782
  %4198 = vmatprep.subr.mxu0 0.0
  %4199 = vmatpush1.msra.mxu0 %v3783
  %4200 = vmatprep.subr.mxu0 0.0
  %4201 = vmatpush1.msra.mxu0 %v3784
  %4202 = vmatprep.subr.mxu0 0.0
  %4203 = vmatpush1.msra.mxu0 %v3785
  %4204 = vmatprep.subr.mxu0 0.0
  %4205 = vmatpush1.msra.mxu0 %v3786
  %4206 = vmatprep.subr.mxu0 0.0
  %4207 = vmatpush1.msra.mxu0 %v3787
  %4208 = vmatprep.subr.mxu0 0.0
  %4209 = vmatpush1.msra.mxu0 %v3788
  %4210 = vmatprep.subr.mxu0 0.0
  %4211 = vmatpush1.msra.mxu0 %v3789
  %4212 = vmatprep.subr.mxu0 0.0
  %4213 = vmatpush1.msra.mxu0 %v3790
  %4214 = vmatprep.subr.mxu0 0.0
  %4215 = vmatpush1.msra.mxu0 0.0
  %4216 = vmatprep.subr.mxu0 0.0
  %4217 = vmatpush1.msra.mxu0 0.0
  %4218 = vmatprep.subr.mxu0 0.0
  %4219 = vmatpush1.msra.mxu0 0.0
  %4220 = vmatprep.subr.mxu0 0.0
  %4221 = vmatpush1.msra.mxu0 0.0
  %4222 = vmatprep.subr.mxu0 0.0
  %4223 = vmatpush1.msra.mxu0 0.0
  %4224 = vmatprep.subr.mxu0 0.0
  %4225 = vmatpush1.msra.mxu0 0.0
  %4226 = vmatprep.subr.mxu0 0.0
  %4227 = vmatpush1.msra.mxu0 0.0
  %4228 = vmatprep.subr.mxu0 0.0
  %4229 = vmatpush1.msra.mxu0 0.0
  %4230 = vmatprep.subr.mxu0 0.0
  %4231 = vmatpush1.msra.mxu0 0.0
  %4232 = vmatprep.subr.mxu0 0.0
  %4233 = vmatpush1.msra.mxu0 0.0
  %4234 = vmatprep.subr.mxu0 0.0
  %4235 = vmatpush1.msra.mxu0 0.0
  %4236 = vmatprep.subr.mxu0 0.0
  %4237 = vmatpush1.msra.mxu0 0.0
  %4238 = vmatprep.subr.mxu0 0.0
  %4239 = vmatpush1.msra.mxu0 0.0
  %4240 = vmatprep.subr.mxu0 0.0
  %4241 = vmatpush1.msra.mxu0 0.0
  %4242 = vmatprep.subr.mxu0 0.0
  %4243 = vmatpush1.msra.mxu0 0.0
  %4244 = vmatprep.subr.mxu0 0.0
  %4245 = vmatpush1.msra.mxu0 0.0
  %4246 = vmatprep.mubr.f32.mxu0 0.0
  %4247 = vmatmul.mubr.f32.gmra.mrb[0].mxu0 %v4181
  %v4248 = vpop.f32.mrb[0].mxu0
  %v4249 = vadd.f32 0.0, %v4248
  %v4250 = vpop.f32.mrb[0].mxu0
  %4251 = vdwg.mxu0
  %v4252 = vadd.f32 %v4180, %v4249
  %v4253 = vld [vmem:[#allocation3 + $0x30] sm:$0xff]
  %4254 = vmatprep.subr.mxu0 0.0
  %4255 = vmatpush1.msra.mxu0 %v3791
  %4256 = vmatprep.subr.mxu0 0.0
  %4257 = vmatpush1.msra.mxu0 %v3792
  %4258 = vmatprep.subr.mxu0 0.0
  %4259 = vmatpush1.msra.mxu0 %v3793
  %4260 = vmatprep.subr.mxu0 0.0
  %4261 = vmatpush1.msra.mxu0 %v3794
  %4262 = vmatprep.subr.mxu0 0.0
  %4263 = vmatpush1.msra.mxu0 %v3795
  %4264 = vmatprep.subr.mxu0 0.0
  %4265 = vmatpush1.msra.mxu0 %v3796
  %4266 = vmatprep.subr.mxu0 0.0
  %4267 = vmatpush1.msra.mxu0 %v3797
  %4268 = vmatprep.subr.mxu0 0.0
  %4269 = vmatpush1.msra.mxu0 %v3798
  %4270 = vmatprep.subr.mxu0 0.0
  %4271 = vmatpush1.msra.mxu0 %v3799
  %4272 = vmatprep.subr.mxu0 0.0
  %4273 = vmatpush1.msra.mxu0 %v3800
  %4274 = vmatprep.subr.mxu0 0.0
  %4275 = vmatpush1.msra.mxu0 %v3801
  %4276 = vmatprep.subr.mxu0 0.0
  %4277 = vmatpush1.msra.mxu0 %v3802
  %4278 = vmatprep.subr.mxu0 0.0
  %4279 = vmatpush1.msra.mxu0 %v3803
  %4280 = vmatprep.subr.mxu0 0.0
  %4281 = vmatpush1.msra.mxu0 %v3804
  %4282 = vmatprep.subr.mxu0 0.0
  %4283 = vmatpush1.msra.mxu0 %v3805
  %4284 = vmatprep.subr.mxu0 0.0
  %4285 = vmatpush1.msra.mxu0 %v3806
  %4286 = vmatprep.subr.mxu0 0.0
  %4287 = vmatpush1.msra.mxu0 0.0
  %4288 = vmatprep.subr.mxu0 0.0
  %4289 = vmatpush1.msra.mxu0 0.0
  %4290 = vmatprep.subr.mxu0 0.0
  %4291 = vmatpush1.msra.mxu0 0.0
  %4292 = vmatprep.subr.mxu0 0.0
  %4293 = vmatpush1.msra.mxu0 0.0
  %4294 = vmatprep.subr.mxu0 0.0
  %4295 = vmatpush1.msra.mxu0 0.0
  %4296 = vmatprep.subr.mxu0 0.0
  %4297 = vmatpush1.msra.mxu0 0.0
  %4298 = vmatprep.subr.mxu0 0.0
  %4299 = vmatpush1.msra.mxu0 0.0
  %4300 = vmatprep.subr.mxu0 0.0
  %4301 = vmatpush1.msra.mxu0 0.0
  %4302 = vmatprep.subr.mxu0 0.0
  %4303 = vmatpush1.msra.mxu0 0.0
  %4304 = vmatprep.subr.mxu0 0.0
  %4305 = vmatpush1.msra.mxu0 0.0
  %4306 = vmatprep.subr.mxu0 0.0
  %4307 = vmatpush1.msra.mxu0 0.0
  %4308 = vmatprep.subr.mxu0 0.0
  %4309 = vmatpush1.msra.mxu0 0.0
  %4310 = vmatprep.subr.mxu0 0.0
  %4311 = vmatpush1.msra.mxu0 0.0
  %4312 = vmatprep.subr.mxu0 0.0
  %4313 = vmatpush1.msra.mxu0 0.0
  %4314 = vmatprep.subr.mxu0 0.0
  %4315 = vmatpush1.msra.mxu0 0.0
  %4316 = vmatprep.subr.mxu0 0.0
  %4317 = vmatpush1.msra.mxu0 0.0
  %4318 = vmatprep.mubr.f32.mxu0 0.0
  %4319 = vmatmul.mubr.f32.gmra.mrb[0].mxu0 %v4253
  %v4320 = vpop.f32.mrb[0].mxu0
  %v4321 = vadd.f32 0.0, %v4320
  %v4322 = vpop.f32.mrb[0].mxu0
  %4323 = vdwg.mxu0
  %v4324 = vadd.f32 %v4252, %v4321
  %v4325 = vld [vmem:[#allocation3 + $0x38] sm:$0xff]
  %4326 = vmatprep.subr.mxu0 0.0
  %4327 = vmatpush1.msra.mxu0 %v3807
  %4328 = vmatprep.subr.mxu0 0.0
  %4329 = vmatpush1.msra.mxu0 %v3808
  %4330 = vmatprep.subr.mxu0 0.0
  %4331 = vmatpush1.msra.mxu0 %v3809
  %4332 = vmatprep.subr.mxu0 0.0
  %4333 = vmatpush1.msra.mxu0 %v3810
  %4334 = vmatprep.subr.mxu0 0.0
  %4335 = vmatpush1.msra.mxu0 %v3811
  %4336 = vmatprep.subr.mxu0 0.0
  %4337 = vmatpush1.msra.mxu0 %v3812
  %4338 = vmatprep.subr.mxu0 0.0
  %4339 = vmatpush1.msra.mxu0 %v3813
  %4340 = vmatprep.subr.mxu0 0.0
  %4341 = vmatpush1.msra.mxu0 %v3814
  %4342 = vmatprep.subr.mxu0 0.0
  %4343 = vmatpush1.msra.mxu0 %v3815
  %4344 = vmatprep.subr.mxu0 0.0
  %4345 = vmatpush1.msra.mxu0 %v3816
  %4346 = vmatprep.subr.mxu0 0.0
  %4347 = vmatpush1.msra.mxu0 %v3817
  %4348 = vmatprep.subr.mxu0 0.0
  %4349 = vmatpush1.msra.mxu0 %v3818
  %4350 = vmatprep.subr.mxu0 0.0
  %4351 = vmatpush1.msra.mxu0 %v3819
  %4352 = vmatprep.subr.mxu0 0.0
  %4353 = vmatpush1.msra.mxu0 %v3820
  %4354 = vmatprep.subr.mxu0 0.0
  %4355 = vmatpush1.msra.mxu0 %v3821
  %4356 = vmatprep.subr.mxu0 0.0
  %4357 = vmatpush1.msra.mxu0 %v3822
  %4358 = vmatprep.subr.mxu0 0.0
  %4359 = vmatpush1.msra.mxu0 0.0
  %4360 = vmatprep.subr.mxu0 0.0
  %4361 = vmatpush1.msra.mxu0 0.0
  %4362 = vmatprep.subr.mxu0 0.0
  %4363 = vmatpush1.msra.mxu0 0.0
  %4364 = vmatprep.subr.mxu0 0.0
  %4365 = vmatpush1.msra.mxu0 0.0
  %4366 = vmatprep.subr.mxu0 0.0
  %4367 = vmatpush1.msra.mxu0 0.0
  %4368 = vmatprep.subr.mxu0 0.0
  %4369 = vmatpush1.msra.mxu0 0.0
  %4370 = vmatprep.subr.mxu0 0.0
  %4371 = vmatpush1.msra.mxu0 0.0
  %4372 = vmatprep.subr.mxu0 0.0
  %4373 = vmatpush1.msra.mxu0 0.0
  %4374 = vmatprep.subr.mxu0 0.0
  %4375 = vmatpush1.msra.mxu0 0.0
  %4376 = vmatprep.subr.mxu0 0.0
  %4377 = vmatpush1.msra.mxu0 0.0
  %4378 = vmatprep.subr.mxu0 0.0
  %4379 = vmatpush1.msra.mxu0 0.0
  %4380 = vmatprep.subr.mxu0 0.0
  %4381 = vmatpush1.msra.mxu0 0.0
  %4382 = vmatprep.subr.mxu0 0.0
  %4383 = vmatpush1.msra.mxu0 0.0
  %4384 = vmatprep.subr.mxu0 0.0
  %4385 = vmatpush1.msra.mxu0 0.0
  %4386 = vmatprep.subr.mxu0 0.0
  %4387 = vmatpush1.msra.mxu0 0.0
  %4388 = vmatprep.subr.mxu0 0.0
  %4389 = vmatpush1.msra.mxu0 0.0
  %4390 = vmatprep.mubr.f32.mxu0 0.0
  %4391 = vmatmul.mubr.f32.gmra.mrb[0].mxu0 %v4325
  %v4392 = vpop.f32.mrb[0].mxu0
  %v4393 = vadd.f32 0.0, %v4392
  %v4394 = vpop.f32.mrb[0].mxu0
  %4395 = vdwg.mxu0
  %v4396 = vadd.f32 %v4324, %v4393
  %v4397 = vld [vmem:[%s8] sm:$0x1]
  %v4399 = vlaneseq
  %v4400 = vshrl.u32 %v4399, 7
  %v4401 = vsub.s32 0, %v4400
  %v4402 = vrot.slane %v4397, %v4401
  %v4404 = vadd.f32 %v4396, %v4402
  %4405 = vst [vmem:[%s9] sm:$0xff] %v4404
  // Predicated region
  $region38: #{rnn_lstm_forward.1} parent=0 // pred_check
    _
  $region39: #{rnn_lstm_forward.1} parent=0 // pred_check_branch
    %4407 = sbr.rel (0) target = $region41
  $region40: #{rnn_lstm_forward.1} parent=0 // pred_region
    _
  $region41: #{rnn_lstm_forward.1} parent=0 // pred_fallthru
    _
  // Predicated region
  $region42: #{rnn_lstm_forward.1} parent=0 // pred_check
    _
  $region43: #{rnn_lstm_forward.1} parent=0 // pred_check_branch
    %4409 = sbr.rel (0) target = $region45
  $region44: #{rnn_lstm_forward.1} parent=0 // pred_region
    _
  $region45: #{rnn_lstm_forward.1} parent=0 // pred_fallthru
    _

</llo_original>
